<compile_context>
chip_gen: v7x
topology: tpu7x:2x2x1
jax: 0.10.0
libtpu: 0.0.40
codegen_flags: <defaults>
</compile_context>

<pallas_src>
import functools

import jax
import jax.numpy as jnp
from jax import lax
from jax.experimental import pallas as pl
from jax.experimental.pallas import tpu as pltpu


# ----------------------------------------------------------------------------
# Fused Pallas kernel.  Grid point = (layer l, node-row tile r).
# ----------------------------------------------------------------------------
def _fused_graphsage_kernel(x_ref, a_ref, dinv_ref, wl_ref, wr_ref, bl_ref,
                            wf0_ref, wfs_ref, bf_ref, o_ref,
                            act0, act1, acc_ref, *, tm):
    # x_ref:    [Np, Fp]    bf16  padded input features (constant block, resident)
    # a_ref:    [tm, Np]    bf16  0/1 adjacency pattern, row tile r (streamed)
    # dinv_ref: [tm, 1]     f32   1/deg for this row tile (mean-agg scale)
    # wl_ref:   [1, Fp, Fp] bf16  layer-l neighbor weight W_l
    # wr_ref:   [1, Fp, Fp] bf16  layer-l root weight     W_r
    # bl_ref:   [1, 1, Fp]  f32   layer-l bias            b_l
    # wf0_ref:  [Fp, Fp]    bf16  final-linear rows for concat segment 0 (raw x)
    # wfs_ref:  [1, Fp, Fp] bf16  final-linear rows for concat segment l+1
    # bf_ref:   [1, Fp]     f32   final-linear bias
    # o_ref:    [tm, Fp]    f32   output row tile (lane-dense, unmasked stores)
    # act0/1:   [Np, Fp]    bf16  ping-pong activation buffers (layer parity)
    # acc_ref:  [Np, Fp]    f32   final-linear accumulator (concat never built)
    l = pl.program_id(0)
    r = pl.program_id(1)
    row0 = pl.multiple_of(r * tm, tm)

    # Prime the ping-pong buffer with the input features exactly once.
    @pl.when(jnp.logical_and(l == 0, r == 0))
    def _():
        act0[...] = x_ref[...]

    def layer_body(src_ref, dst_ref):
        # Mean aggregation for this row tile: 0/1-pattern matmul with f32
        # accumulation, then a per-row 1/deg scale on the VPU.
        agg = dinv_ref[...] * jnp.dot(a_ref[...], src_ref[...],
                                      preferred_element_type=jnp.float32)
        x_tile = src_ref[pl.ds(row0, tm), :]              # [tm, Fp] bf16 (root)

        # SAGEConv: h = agg @ W_l + x @ W_r + b_l  (two dots, no concat slab).
        h = (jnp.dot(agg.astype(jnp.bfloat16), wl_ref[0],
                     preferred_element_type=jnp.float32)
             + jnp.dot(x_tile, wr_ref[0], preferred_element_type=jnp.float32)
             + bl_ref[0])
        y = jnp.maximum(h, 0.0).astype(jnp.bfloat16)      # f32 epilogue
        dst_ref[pl.ds(row0, tm), :] = y

        # Final-linear contribution of concat segment l+1 (plus segment 0 and
        # the bias at the first layer).  Accumulated in f32 in VMEM scratch.
        seg = jnp.dot(y, wfs_ref[0], preferred_element_type=jnp.float32)

        @pl.when(l == 0)
        def _():
            acc_ref[pl.ds(row0, tm), :] = (
                jnp.dot(x_tile, wf0_ref[...], preferred_element_type=jnp.float32)
                + bf_ref[...] + seg)

        @pl.when(l != 0)
        def _():
            acc_ref[pl.ds(row0, tm), :] = acc_ref[pl.ds(row0, tm), :] + seg

        # Write the running value; the final (last-layer) writeback is the
        # correct output, earlier writebacks are overwritten in HBM.
        o_ref[...] = acc_ref[pl.ds(row0, tm), :]

    read_even = lax.rem(l, 2) == 0

    @pl.when(read_even)
    def _():
        layer_body(act0, act1)

    @pl.when(jnp.logical_not(read_even))
    def _():
        layer_body(act1, act0)


# ----------------------------------------------------------------------------
# Helpers
# ----------------------------------------------------------------------------
def _round_up(v, m):
    return (v + m - 1) // m * m


def _pad2(a, rows, cols, dtype):
    out = jnp.zeros((rows, cols), dtype)
    return out.at[:a.shape[0], :a.shape[1]].set(a.astype(dtype))


def _pick_row_tile(npad):
    # >=256 (ideally 512) fills v6e/v7x's 256^2 MXUs; 128 saturates v5e.
    for t in (512, 256, 128):
        if npad % t == 0:
            return t
    return npad


# ----------------------------------------------------------------------------
# GraphSAGE forward (cat=True, lin=True, dropout=0.0, eval mode)
# ----------------------------------------------------------------------------
def graphsage_forward(params, x, edge_index, edge_attr=None):
    del edge_attr  # unused by the reference forward (SAGEConv takes edge_index)
    n, f_in = x.shape
    convs = params["convs"]
    num_layers = len(convs)
    f_out = convs[0][0].shape[1]
    w_f, b_f = params["final"]

    fp = _round_up(max(f_in, f_out), 128)
    npad = _round_up(n, 128)
    tm = _pick_row_tile(npad)
    n_row_tiles = npad // tm

    # Adjacency: 0/1 pattern built directly at padded shape in bf16 (exact),
    # 1/deg folded into the kernel as a per-row multiply.  Messages flow
    # src -> dst (PyG: x_j = x[edge_index[0]] aggregated at edge_index[1]).
    src, dst = edge_index[0], edge_index[1]
    a01 = jnp.zeros((npad, npad), jnp.bfloat16).at[dst, src].add(
        jnp.ones(src.shape, jnp.bfloat16))
    deg = jnp.zeros((npad,), jnp.float32).at[dst].add(1.0)
    inv_deg = (1.0 / jnp.maximum(deg, 1.0)).reshape(npad, 1)

    x_pad = _pad2(x, npad, fp, jnp.bfloat16)

    wl_stack = jnp.stack([_pad2(w_l, fp, fp, jnp.bfloat16) for (w_l, _, _) in convs])
    wr_stack = jnp.stack([_pad2(w_r, fp, fp, jnp.bfloat16) for (_, _, w_r) in convs])
    bl_stack = jnp.stack([_pad2(b_l, 1, fp, jnp.float32) for (_, b_l, _) in convs])

    # Final linear split into row blocks matching the (virtual) concat segments.
    seg_sizes = [f_in] + [f_out] * num_layers
    wf_blocks, off = [], 0
    for s in seg_sizes:
        wf_blocks.append(_pad2(w_f[off:off + s], fp, fp, jnp.bfloat16))
        off += s
    wf0 = wf_blocks[0]                       # [fp, fp]  segment 0 (raw input x)
    wf_rest = jnp.stack(wf_blocks[1:])       # [L, fp, fp]  segments 1..L
    bf_pad = _pad2(b_f, 1, fp, jnp.float32)  # [1, fp]

    # VMEM footprint (default double-buffered blocks + persistent scratch) so
    # the scoped limit can grow with problem size; 32 MiB default at toy sizes.
    block_bytes = (2 * (npad * fp * 2)        # x (constant block)
                   + 2 * (tm * npad * 2)      # A row tile
                   + 2 * (tm * 128 * 4)       # inv-deg tile (layout padded)
                   + 2 * 4 * (fp * fp * 2)    # W_l, W_r, W_f seg, W_f seg0
                   + 2 * (tm * fp * 4))       # output tile
    scratch_bytes = 2 * npad * fp * 2 + npad * fp * 4
    vmem_limit = max(32 * 1024 * 1024, int(1.5 * (block_bytes + scratch_bytes)))

    flops = (2 * num_layers * npad * npad * fp            # aggregation
             + 2 * num_layers * 2 * npad * fp * fp        # W_l, W_r
             + 2 * (num_layers + 1) * npad * fp * fp)     # final-linear segments
    bytes_accessed = (num_layers * npad * npad * 2        # A streamed per layer
                      + npad * fp * 2                     # x in
                      + num_layers * npad * fp * 4        # output writebacks
                      + (3 * num_layers + 1) * fp * fp * 2)

    kernel = functools.partial(_fused_graphsage_kernel, tm=tm)

    out_pad = pl.pallas_call(
        kernel,
        out_shape=jax.ShapeDtypeStruct((npad, fp), jnp.float32),
        grid=(num_layers, n_row_tiles),
        in_specs=[
            pl.BlockSpec((npad, fp), lambda l, r: (0, 0)),        # x (resident)
            pl.BlockSpec((tm, npad), lambda l, r: (r, 0)),        # A row tile
            pl.BlockSpec((tm, 1), lambda l, r: (r, 0)),           # 1/deg tile
            pl.BlockSpec((1, fp, fp), lambda l, r: (l, 0, 0)),    # W_l
            pl.BlockSpec((1, fp, fp), lambda l, r: (l, 0, 0)),    # W_r
            pl.BlockSpec((1, 1, fp), lambda l, r: (l, 0, 0)),     # b_l
            pl.BlockSpec((fp, fp), lambda l, r: (0, 0)),          # W_f segment 0
            pl.BlockSpec((1, fp, fp), lambda l, r: (l, 0, 0)),    # W_f segment l+1
            pl.BlockSpec((1, fp), lambda l, r: (0, 0)),           # b_f
        ],
        out_specs=pl.BlockSpec((tm, fp), lambda l, r: (r, 0)),
        scratch_shapes=[
            pltpu.VMEM((npad, fp), jnp.bfloat16),   # activations (ping)
            pltpu.VMEM((npad, fp), jnp.bfloat16),   # activations (pong)
            pltpu.VMEM((npad, fp), jnp.float32),    # final-linear accumulator
        ],
        compiler_params=pltpu.CompilerParams(
            dimension_semantics=("arbitrary", "arbitrary"),
            vmem_limit_bytes=vmem_limit),
        cost_estimate=pl.CostEstimate(
            flops=int(flops), transcendentals=0,
            bytes_accessed=int(bytes_accessed)),
    )(x_pad, a01, inv_deg, wl_stack, wr_stack, bl_stack, wf0, wf_rest, bf_pad)

    return out_pad[:n, :f_out]


def init_params(key, in_channels, out_channels, num_layers):
    params = {"convs": [], "final": None}
    for i in range(num_layers):
        f_in = in_channels if i == 0 else out_channels
        key, k1, k2, k3 = jax.random.split(key, 4)
        scale = 1.0 / jnp.sqrt(jnp.float32(f_in))
        w_l = jax.random.normal(k1, (f_in, out_channels), jnp.float32) * scale
        w_r = jax.random.normal(k2, (f_in, out_channels), jnp.float32) * scale
        b_l = jax.random.normal(k3, (1, out_channels), jnp.float32) * 0.1
        params["convs"].append((w_l, b_l, w_r))
    cat_channels = in_channels + num_layers * out_channels
    key, k1, k2 = jax.random.split(key, 3)
    scale = 1.0 / jnp.sqrt(jnp.float32(cat_channels))
    w_f = jax.random.normal(k1, (cat_channels, out_channels), jnp.float32) * scale
    b_f = jax.random.normal(k2, (1, out_channels), jnp.float32) * 0.1
    params["final"] = (w_f, b_f)
    return params


# Plain-JAX reference.  match_kernel=True mirrors the kernel's bf16-input /
# f32-accumulate rounding points; False is the exact module math in f32.
def _reference_forward(params, x, edge_index, match_kernel=False):
    n = x.shape[0]
    src, dst = edge_index[0], edge_index[1]
    deg = jnp.zeros((n,), jnp.float32).at[dst].add(1.0)
    inv_deg = (1.0 / jnp.maximum(deg, 1.0))[:, None]
    a01 = jnp.zeros((n, n), jnp.float32).at[dst, src].add(1.0)
    if match_kernel:
        a01 = a01.astype(jnp.bfloat16)
        cast = lambda t: t.astype(jnp.bfloat16)
    else:
        cast = lambda t: t
    xs = [cast(x)]
    for (w_l, b_l, w_r) in params["convs"]:
        agg = inv_deg * jnp.dot(a01, xs[-1], preferred_element_type=jnp.float32)
        h = (jnp.dot(cast(agg), cast(w_l), preferred_element_type=jnp.float32)
             + b_l
             + jnp.dot(xs[-1], cast(w_r), preferred_element_type=jnp.float32))
        xs.append(cast(jnp.maximum(h, 0.0)))
    x_cat = jnp.concatenate(xs, axis=-1)
    w_f, b_f = params["final"]
    return jnp.dot(x_cat, cast(w_f), preferred_element_type=jnp.float32) + b_f


if __name__ == "__main__":
    # Small, forward-consistent shapes.
    num_nodes = 16
    num_edges = 48
    in_channels = 8
    out_channels = 16
    num_layers = 3

    key = jax.random.PRNGKey(0)
    key, kx, ks, kd = jax.random.split(key, 4)
    x = jax.random.normal(kx, (num_nodes, in_channels), jnp.float32)
    src = jax.random.randint(ks, (num_edges,), 0, num_nodes, jnp.int32)
    dst = jax.random.randint(kd, (num_edges,), 0, num_nodes, jnp.int32)
    edge_index = jnp.stack([src, dst], axis=0)            # (2, E)
    edge_attr = jnp.ones((num_edges, 4), jnp.float32)     # unused, matches sig

    params = init_params(jax.random.PRNGKey(1), in_channels, out_channels,
                         num_layers)

    out = graphsage_forward(params, x, edge_index, edge_attr)
    out = jax.block_until_ready(out)
    assert out.shape == (num_nodes, out_channels)

    # Kernel-matched rounding (bf16 MXU inputs, f32 accumulation): tight check.
    ref_bf16 = _reference_forward(params, x, edge_index, match_kernel=True)
    assert jnp.allclose(out, ref_bf16, atol=2e-2, rtol=2e-2), (
        float(jnp.max(jnp.abs(out - ref_bf16))))
    # Pure-f32 module math: loose bound covering bf16 MXU-input rounding.
    ref_f32 = _reference_forward(params, x, edge_index, match_kernel=False)
    assert jnp.allclose(out, ref_f32, atol=1.5e-1, rtol=1.5e-1), (
        float(jnp.max(jnp.abs(out - ref_f32))))

    print("KERNEL_OK")
</pallas_src>

<mosaic_0001>
module attributes {stable_mosaic.version = 11 : i64} {
  func.func @_fused_graphsage_kernel(%arg0: i32, %arg1: i32, %arg2: memref<128x128xbf16, #tpu.memory_space<vmem>>, %arg3: memref<128x128xbf16, #tpu.memory_space<vmem>>, %arg4: memref<128x1xf32, #tpu.memory_space<vmem>>, %arg5: memref<1x128x128xbf16, #tpu.memory_space<vmem>>, %arg6: memref<1x128x128xbf16, #tpu.memory_space<vmem>>, %arg7: memref<1x1x128xf32, #tpu.memory_space<vmem>>, %arg8: memref<128x128xbf16, #tpu.memory_space<vmem>>, %arg9: memref<1x128x128xbf16, #tpu.memory_space<vmem>>, %arg10: memref<1x128xf32, #tpu.memory_space<vmem>>, %arg11: memref<128x128xf32, #tpu.memory_space<vmem>>, %arg12: memref<128x128xbf16, #tpu.memory_space<vmem>>, %arg13: memref<128x128xbf16, #tpu.memory_space<vmem>>, %arg14: memref<128x128xf32, #tpu.memory_space<vmem>>) attributes {dimension_semantics = [#tpu.dimension_semantics<arbitrary>, #tpu.dimension_semantics<arbitrary>], iteration_bounds = array<i64: 3, 1>, scalar_prefetch = 0 : i64, scratch_operands = 3 : i64, tpu.core_type = #tpu.core_type<tc>, window_params = [{pipeline_mode = #tpu.pipeline_mode<synchronous>, transform_indices = @transform_0, window_bounds = array<i64: 128, 128>}, {transform_indices = @transform_1, window_bounds = array<i64: 128, 128>}, {transform_indices = @transform_2, window_bounds = array<i64: 128, 1>}, {transform_indices = @transform_3, window_bounds = array<i64: 1, 128, 128>}, {transform_indices = @transform_4, window_bounds = array<i64: 1, 128, 128>}, {transform_indices = @transform_5, window_bounds = array<i64: 1, 1, 128>}, {pipeline_mode = #tpu.pipeline_mode<synchronous>, transform_indices = @transform_6, window_bounds = array<i64: 128, 128>}, {transform_indices = @transform_7, window_bounds = array<i64: 1, 128, 128>}, {pipeline_mode = #tpu.pipeline_mode<synchronous>, transform_indices = @transform_8, window_bounds = array<i64: 1, 128>}, {transform_indices = @transform_9, window_bounds = array<i64: 128, 128>}]} {
    %c128_i32 = arith.constant 128 : i32
    %0 = arith.muli %arg1, %c128_i32 : i32
    %1 = tpu.assume_multiple %0, 128 : i32
    %c0_i32 = arith.constant 0 : i32
    %2 = arith.cmpi eq, %arg0, %c0_i32 : i32
    %c0_i32_0 = arith.constant 0 : i32
    %3 = arith.cmpi eq, %arg1, %c0_i32_0 : i32
    %4 = arith.andi %2, %3 : i1
    %5 = arith.extui %4 : i1 to i32
    %c0_i32_1 = arith.constant 0 : i32
    %6 = arith.cmpi ne, %5, %c0_i32_1 : i32
    scf.if %6 {
      %c0 = arith.constant 0 : index
      %c0_5 = arith.constant 0 : index
      %14 = vector.load %arg2[%c0, %c0_5] : memref<128x128xbf16, #tpu.memory_space<vmem>>, vector<128x128xbf16>
      %c0_6 = arith.constant 0 : index
      %c0_7 = arith.constant 0 : index
      %15 = vector.load %arg12[%c0_6, %c0_7] : memref<128x128xbf16, #tpu.memory_space<vmem>>, vector<128x128xbf16>
      tpu.vector_store %arg12[%c0_6, %c0_7], %14 {strides = array<i32>} : memref<128x128xbf16, #tpu.memory_space<vmem>>, vector<128x128xbf16>,
    } else {
    }
    %c2_i32 = arith.constant 2 : i32
    %7 = arith.remsi %arg0, %c2_i32 : i32
    %c0_i32_2 = arith.constant 0 : i32
    %8 = arith.cmpi eq, %7, %c0_i32_2 : i32
    %9 = arith.extui %8 : i1 to i32
    %c0_i32_3 = arith.constant 0 : i32
    %10 = arith.cmpi ne, %9, %c0_i32_3 : i32
    scf.if %10 {
      %c0 = arith.constant 0 : index
      %c0_5 = arith.constant 0 : index
      %14 = vector.load %arg4[%c0, %c0_5] : memref<128x1xf32, #tpu.memory_space<vmem>>, vector<128x1xf32>
      %c0_6 = arith.constant 0 : index
      %c0_7 = arith.constant 0 : index
      %15 = vector.load %arg3[%c0_6, %c0_7] : memref<128x128xbf16, #tpu.memory_space<vmem>>, vector<128x128xbf16>
      %c0_8 = arith.constant 0 : index
      %c0_9 = arith.constant 0 : index
      %16 = vector.load %arg12[%c0_8, %c0_9] : memref<128x128xbf16, #tpu.memory_space<vmem>>, vector<128x128xbf16>
      %cst = arith.constant dense<0.000000e+00> : vector<128x128xf32>
      %17 = tpu.matmul %15, %16, %cst {dimension_numbers = #tpu.dot_dimension_numbers<[1], [0], [0], [1], [0, 0, 1, 1], [], []>} : vector<128x128xbf16>, vector<128x128xbf16>, vector<128x128xf32> -> vector<128x128xf32>
      %18 = vector.broadcast %14 : vector<128x1xf32> to vector<128x128xf32>
      %19 = arith.mulf %18, %17 : vector<128x128xf32>
      %20 = arith.index_cast %1 : i32 to index
      %c0_10 = arith.constant 0 : index
      %21 = vector.load %arg12[%20, %c0_10] : memref<128x128xbf16, #tpu.memory_space<vmem>>, vector<128x128xbf16>
      %22 = arith.truncf %19 : vector<128x128xf32> to vector<128x128xbf16>
      %c0_11 = arith.constant 0 : index
      %c0_12 = arith.constant 0 : index
      %c0_13 = arith.constant 0 : index
      %23 = vector.load %arg5[%c0_11, %c0_12, %c0_13] : memref<1x128x128xbf16, #tpu.memory_space<vmem>>, vector<1x128x128xbf16>
      %24 = vector.shape_cast %23 : vector<1x128x128xbf16> to vector<128x128xbf16>
      %cst_14 = arith.constant dense<0.000000e+00> : vector<128x128xf32>
      %25 = tpu.matmul %22, %24, %cst_14 {dimension_numbers = #tpu.dot_dimension_numbers<[1], [0], [0], [1], [0, 0, 1, 1], [], []>} : vector<128x128xbf16>, vector<128x128xbf16>, vector<128x128xf32> -> vector<128x128xf32>
      %c0_15 = arith.constant 0 : index
      %c0_16 = arith.constant 0 : index
      %c0_17 = arith.constant 0 : index
      %26 = vector.load %arg6[%c0_15, %c0_16, %c0_17] : memref<1x128x128xbf16, #tpu.memory_space<vmem>>, vector<1x128x128xbf16>
      %27 = vector.shape_cast %26 : vector<1x128x128xbf16> to vector<128x128xbf16>
      %cst_18 = arith.constant dense<0.000000e+00> : vector<128x128xf32>
      %28 = tpu.matmul %21, %27, %cst_18 {dimension_numbers = #tpu.dot_dimension_numbers<[1], [0], [0], [1], [0, 0, 1, 1], [], []>} : vector<128x128xbf16>, vector<128x128xbf16>, vector<128x128xf32> -> vector<128x128xf32>
      %29 = arith.addf %25, %28 : vector<128x128xf32>
      %c0_19 = arith.constant 0 : index
      %c0_20 = arith.constant 0 : index
      %c0_21 = arith.constant 0 : index
      %30 = vector.load %arg7[%c0_19, %c0_20, %c0_21] : memref<1x1x128xf32, #tpu.memory_space<vmem>>, vector<1x1x128xf32>
      %31 = vector.shape_cast %30 : vector<1x1x128xf32> to vector<1x128xf32>
      %32 = vector.broadcast %31 : vector<1x128xf32> to vector<128x128xf32>
      %33 = arith.addf %29, %32 : vector<128x128xf32>
      %cst_22 = arith.constant 0.000000e+00 : f32
      %34 = vector.broadcast %cst_22 : f32 to vector<128x128xf32>
      %35 = arith.maximumf %33, %34 : vector<128x128xf32>
      %36 = arith.truncf %35 : vector<128x128xf32> to vector<128x128xbf16>
      %37 = arith.index_cast %1 : i32 to index
      %c0_23 = arith.constant 0 : index
      %38 = vector.load %arg13[%37, %c0_23] : memref<128x128xbf16, #tpu.memory_space<vmem>>, vector<128x128xbf16>
      tpu.vector_store %arg13[%37, %c0_23], %36 {strides = array<i32>} : memref<128x128xbf16, #tpu.memory_space<vmem>>, vector<128x128xbf16>,
      %c0_24 = arith.constant 0 : index
      %c0_25 = arith.constant 0 : index
      %c0_26 = arith.constant 0 : index
      %39 = vector.load %arg9[%c0_24, %c0_25, %c0_26] : memref<1x128x128xbf16, #tpu.memory_space<vmem>>, vector<1x128x128xbf16>
      %40 = vector.shape_cast %39 : vector<1x128x128xbf16> to vector<128x128xbf16>
      %cst_27 = arith.constant dense<0.000000e+00> : vector<128x128xf32>
      %41 = tpu.matmul %36, %40, %cst_27 {dimension_numbers = #tpu.dot_dimension_numbers<[1], [0], [0], [1], [0, 0, 1, 1], [], []>} : vector<128x128xbf16>, vector<128x128xbf16>, vector<128x128xf32> -> vector<128x128xf32>
      %c0_i32_28 = arith.constant 0 : i32
      %42 = arith.cmpi eq, %arg0, %c0_i32_28 : i32
      %43 = arith.extui %42 : i1 to i32
      %c0_i32_29 = arith.constant 0 : i32
      %44 = arith.cmpi ne, %43, %c0_i32_29 : i32
      scf.if %44 {
        %c0_35 = arith.constant 0 : index
        %c0_36 = arith.constant 0 : index
        %51 = vector.load %arg8[%c0_35, %c0_36] : memref<128x128xbf16, #tpu.memory_space<vmem>>, vector<128x128xbf16>
        %cst_37 = arith.constant dense<0.000000e+00> : vector<128x128xf32>
        %52 = tpu.matmul %21, %51, %cst_37 {dimension_numbers = #tpu.dot_dimension_numbers<[1], [0], [0], [1], [0, 0, 1, 1], [], []>} : vector<128x128xbf16>, vector<128x128xbf16>, vector<128x128xf32> -> vector<128x128xf32>
        %c0_38 = arith.constant 0 : index
        %c0_39 = arith.constant 0 : index
        %53 = vector.load %arg10[%c0_38, %c0_39] : memref<1x128xf32, #tpu.memory_space<vmem>>, vector<1x128xf32>
        %54 = vector.broadcast %53 : vector<1x128xf32> to vector<128x128xf32>
        %55 = arith.addf %52, %54 : vector<128x128xf32>
        %56 = arith.addf %55, %41 : vector<128x128xf32>
        %57 = arith.index_cast %1 : i32 to index
        %c0_40 = arith.constant 0 : index
        %58 = vector.load %arg14[%57, %c0_40] : memref<128x128xf32, #tpu.memory_space<vmem>>, vector<128x128xf32>
        tpu.vector_store %arg14[%57, %c0_40], %56 {strides = array<i32>} : memref<128x128xf32, #tpu.memory_space<vmem>>, vector<128x128xf32>,
      } else {
      }
      %c0_i32_30 = arith.constant 0 : i32
      %45 = arith.cmpi ne, %arg0, %c0_i32_30 : i32
      %46 = arith.extui %45 : i1 to i32
      %c0_i32_31 = arith.constant 0 : i32
      %47 = arith.cmpi ne, %46, %c0_i32_31 : i32
      scf.if %47 {
        %51 = arith.index_cast %1 : i32 to index
        %c0_35 = arith.constant 0 : index
        %52 = vector.load %arg14[%51, %c0_35] : memref<128x128xf32, #tpu.memory_space<vmem>>, vector<128x128xf32>
        %53 = arith.addf %52, %41 : vector<128x128xf32>
        %54 = arith.index_cast %1 : i32 to index
        %c0_36 = arith.constant 0 : index
        %55 = vector.load %arg14[%54, %c0_36] : memref<128x128xf32, #tpu.memory_space<vmem>>, vector<128x128xf32>
        tpu.vector_store %arg14[%54, %c0_36], %53 {strides = array<i32>} : memref<128x128xf32, #tpu.memory_space<vmem>>, vector<128x128xf32>,
      } else {
      }
      %48 = arith.index_cast %1 : i32 to index
      %c0_32 = arith.constant 0 : index
      %49 = vector.load %arg14[%48, %c0_32] : memref<128x128xf32, #tpu.memory_space<vmem>>, vector<128x128xf32>
      %c0_33 = arith.constant 0 : index
      %c0_34 = arith.constant 0 : index
      %50 = vector.load %arg11[%c0_33, %c0_34] : memref<128x128xf32, #tpu.memory_space<vmem>>, vector<128x128xf32>
      tpu.vector_store %arg11[%c0_33, %c0_34], %49 {strides = array<i32>} : memref<128x128xf32, #tpu.memory_space<vmem>>, vector<128x128xf32>,
    } else {
    }
    %true = arith.constant true
    %11 = arith.xori %8, %true : i1
    %12 = arith.extui %11 : i1 to i32
    %c0_i32_4 = arith.constant 0 : i32
    %13 = arith.cmpi ne, %12, %c0_i32_4 : i32
    scf.if %13 {
      %c0 = arith.constant 0 : index
      %c0_5 = arith.constant 0 : index
      %14 = vector.load %arg4[%c0, %c0_5] : memref<128x1xf32, #tpu.memory_space<vmem>>, vector<128x1xf32>
      %c0_6 = arith.constant 0 : index
      %c0_7 = arith.constant 0 : index
      %15 = vector.load %arg3[%c0_6, %c0_7] : memref<128x128xbf16, #tpu.memory_space<vmem>>, vector<128x128xbf16>
      %c0_8 = arith.constant 0 : index
      %c0_9 = arith.constant 0 : index
      %16 = vector.load %arg13[%c0_8, %c0_9] : memref<128x128xbf16, #tpu.memory_space<vmem>>, vector<128x128xbf16>
      %cst = arith.constant dense<0.000000e+00> : vector<128x128xf32>
      %17 = tpu.matmul %15, %16, %cst {dimension_numbers = #tpu.dot_dimension_numbers<[1], [0], [0], [1], [0, 0, 1, 1], [], []>} : vector<128x128xbf16>, vector<128x128xbf16>, vector<128x128xf32> -> vector<128x128xf32>
      %18 = vector.broadcast %14 : vector<128x1xf32> to vector<128x128xf32>
      %19 = arith.mulf %18, %17 : vector<128x128xf32>
      %20 = arith.index_cast %1 : i32 to index
      %c0_10 = arith.constant 0 : index
      %21 = vector.load %arg13[%20, %c0_10] : memref<128x128xbf16, #tpu.memory_space<vmem>>, vector<128x128xbf16>
      %22 = arith.truncf %19 : vector<128x128xf32> to vector<128x128xbf16>
      %c0_11 = arith.constant 0 : index
      %c0_12 = arith.constant 0 : index
      %c0_13 = arith.constant 0 : index
      %23 = vector.load %arg5[%c0_11, %c0_12, %c0_13] : memref<1x128x128xbf16, #tpu.memory_space<vmem>>, vector<1x128x128xbf16>
      %24 = vector.shape_cast %23 : vector<1x128x128xbf16> to vector<128x128xbf16>
      %cst_14 = arith.constant dense<0.000000e+00> : vector<128x128xf32>
      %25 = tpu.matmul %22, %24, %cst_14 {dimension_numbers = #tpu.dot_dimension_numbers<[1], [0], [0], [1], [0, 0, 1, 1], [], []>} : vector<128x128xbf16>, vector<128x128xbf16>, vector<128x128xf32> -> vector<128x128xf32>
      %c0_15 = arith.constant 0 : index
      %c0_16 = arith.constant 0 : index
      %c0_17 = arith.constant 0 : index
      %26 = vector.load %arg6[%c0_15, %c0_16, %c0_17] : memref<1x128x128xbf16, #tpu.memory_space<vmem>>, vector<1x128x128xbf16>
      %27 = vector.shape_cast %26 : vector<1x128x128xbf16> to vector<128x128xbf16>
      %cst_18 = arith.constant dense<0.000000e+00> : vector<128x128xf32>
      %28 = tpu.matmul %21, %27, %cst_18 {dimension_numbers = #tpu.dot_dimension_numbers<[1], [0], [0], [1], [0, 0, 1, 1], [], []>} : vector<128x128xbf16>, vector<128x128xbf16>, vector<128x128xf32> -> vector<128x128xf32>
      %29 = arith.addf %25, %28 : vector<128x128xf32>
      %c0_19 = arith.constant 0 : index
      %c0_20 = arith.constant 0 : index
      %c0_21 = arith.constant 0 : index
      %30 = vector.load %arg7[%c0_19, %c0_20, %c0_21] : memref<1x1x128xf32, #tpu.memory_space<vmem>>, vector<1x1x128xf32>
      %31 = vector.shape_cast %30 : vector<1x1x128xf32> to vector<1x128xf32>
      %32 = vector.broadcast %31 : vector<1x128xf32> to vector<128x128xf32>
      %33 = arith.addf %29, %32 : vector<128x128xf32>
      %cst_22 = arith.constant 0.000000e+00 : f32
      %34 = vector.broadcast %cst_22 : f32 to vector<128x128xf32>
      %35 = arith.maximumf %33, %34 : vector<128x128xf32>
      %36 = arith.truncf %35 : vector<128x128xf32> to vector<128x128xbf16>
      %37 = arith.index_cast %1 : i32 to index
      %c0_23 = arith.constant 0 : index
      %38 = vector.load %arg12[%37, %c0_23] : memref<128x128xbf16, #tpu.memory_space<vmem>>, vector<128x128xbf16>
      tpu.vector_store %arg12[%37, %c0_23], %36 {strides = array<i32>} : memref<128x128xbf16, #tpu.memory_space<vmem>>, vector<128x128xbf16>,
      %c0_24 = arith.constant 0 : index
      %c0_25 = arith.constant 0 : index
      %c0_26 = arith.constant 0 : index
      %39 = vector.load %arg9[%c0_24, %c0_25, %c0_26] : memref<1x128x128xbf16, #tpu.memory_space<vmem>>, vector<1x128x128xbf16>
      %40 = vector.shape_cast %39 : vector<1x128x128xbf16> to vector<128x128xbf16>
      %cst_27 = arith.constant dense<0.000000e+00> : vector<128x128xf32>
      %41 = tpu.matmul %36, %40, %cst_27 {dimension_numbers = #tpu.dot_dimension_numbers<[1], [0], [0], [1], [0, 0, 1, 1], [], []>} : vector<128x128xbf16>, vector<128x128xbf16>, vector<128x128xf32> -> vector<128x128xf32>
      %c0_i32_28 = arith.constant 0 : i32
      %42 = arith.cmpi eq, %arg0, %c0_i32_28 : i32
      %43 = arith.extui %42 : i1 to i32
      %c0_i32_29 = arith.constant 0 : i32
      %44 = arith.cmpi ne, %43, %c0_i32_29 : i32
      scf.if %44 {
        %c0_35 = arith.constant 0 : index
        %c0_36 = arith.constant 0 : index
        %51 = vector.load %arg8[%c0_35, %c0_36] : memref<128x128xbf16, #tpu.memory_space<vmem>>, vector<128x128xbf16>
        %cst_37 = arith.constant dense<0.000000e+00> : vector<128x128xf32>
        %52 = tpu.matmul %21, %51, %cst_37 {dimension_numbers = #tpu.dot_dimension_numbers<[1], [0], [0], [1], [0, 0, 1, 1], [], []>} : vector<128x128xbf16>, vector<128x128xbf16>, vector<128x128xf32> -> vector<128x128xf32>
        %c0_38 = arith.constant 0 : index
        %c0_39 = arith.constant 0 : index
        %53 = vector.load %arg10[%c0_38, %c0_39] : memref<1x128xf32, #tpu.memory_space<vmem>>, vector<1x128xf32>
        %54 = vector.broadcast %53 : vector<1x128xf32> to vector<128x128xf32>
        %55 = arith.addf %52, %54 : vector<128x128xf32>
        %56 = arith.addf %55, %41 : vector<128x128xf32>
        %57 = arith.index_cast %1 : i32 to index
        %c0_40 = arith.constant 0 : index
        %58 = vector.load %arg14[%57, %c0_40] : memref<128x128xf32, #tpu.memory_space<vmem>>, vector<128x128xf32>
        tpu.vector_store %arg14[%57, %c0_40], %56 {strides = array<i32>} : memref<128x128xf32, #tpu.memory_space<vmem>>, vector<128x128xf32>,
      } else {
      }
      %c0_i32_30 = arith.constant 0 : i32
      %45 = arith.cmpi ne, %arg0, %c0_i32_30 : i32
      %46 = arith.extui %45 : i1 to i32
      %c0_i32_31 = arith.constant 0 : i32
      %47 = arith.cmpi ne, %46, %c0_i32_31 : i32
      scf.if %47 {
        %51 = arith.index_cast %1 : i32 to index
        %c0_35 = arith.constant 0 : index
        %52 = vector.load %arg14[%51, %c0_35] : memref<128x128xf32, #tpu.memory_space<vmem>>, vector<128x128xf32>
        %53 = arith.addf %52, %41 : vector<128x128xf32>
        %54 = arith.index_cast %1 : i32 to index
        %c0_36 = arith.constant 0 : index
        %55 = vector.load %arg14[%54, %c0_36] : memref<128x128xf32, #tpu.memory_space<vmem>>, vector<128x128xf32>
        tpu.vector_store %arg14[%54, %c0_36], %53 {strides = array<i32>} : memref<128x128xf32, #tpu.memory_space<vmem>>, vector<128x128xf32>,
      } else {
      }
      %48 = arith.index_cast %1 : i32 to index
      %c0_32 = arith.constant 0 : index
      %49 = vector.load %arg14[%48, %c0_32] : memref<128x128xf32, #tpu.memory_space<vmem>>, vector<128x128xf32>
      %c0_33 = arith.constant 0 : index
      %c0_34 = arith.constant 0 : index
      %50 = vector.load %arg11[%c0_33, %c0_34] : memref<128x128xf32, #tpu.memory_space<vmem>>, vector<128x128xf32>
      tpu.vector_store %arg11[%c0_33, %c0_34], %49 {strides = array<i32>} : memref<128x128xf32, #tpu.memory_space<vmem>>, vector<128x128xf32>,
    } else {
    }
    return
  }
  func.func @transform_0(%arg0: i32, %arg1: i32) -> (i32, i32) {
    %c0_i32 = arith.constant 0 : i32
    %c0_i32_0 = arith.constant 0 : i32
    %c0_i32_1 = arith.constant 0 : i32
    return %c0_i32, %c0_i32_0 : i32, i32
  }
  func.func @transform_1(%arg0: i32, %arg1: i32) -> (i32, i32) {
    %c0_i32 = arith.constant 0 : i32
    %c0_i32_0 = arith.constant 0 : i32
    return %arg1, %c0_i32 : i32, i32
  }
  func.func @transform_2(%arg0: i32, %arg1: i32) -> (i32, i32) {
    %c0_i32 = arith.constant 0 : i32
    %c0_i32_0 = arith.constant 0 : i32
    return %arg1, %c0_i32 : i32, i32
  }
  func.func @transform_3(%arg0: i32, %arg1: i32) -> (i32, i32, i32) {
    %c0_i32 = arith.constant 0 : i32
    %c0_i32_0 = arith.constant 0 : i32
    %c0_i32_1 = arith.constant 0 : i32
    return %arg0, %c0_i32, %c0_i32_0 : i32, i32, i32
  }
  func.func @transform_4(%arg0: i32, %arg1: i32) -> (i32, i32, i32) {
    %c0_i32 = arith.constant 0 : i32
    %c0_i32_0 = arith.constant 0 : i32
    %c0_i32_1 = arith.constant 0 : i32
    return %arg0, %c0_i32, %c0_i32_0 : i32, i32, i32
  }
  func.func @transform_5(%arg0: i32, %arg1: i32) -> (i32, i32, i32) {
    %c0_i32 = arith.constant 0 : i32
    %c0_i32_0 = arith.constant 0 : i32
    %c0_i32_1 = arith.constant 0 : i32
    return %arg0, %c0_i32, %c0_i32_0 : i32, i32, i32
  }
  func.func @transform_6(%arg0: i32, %arg1: i32) -> (i32, i32) {
    %c0_i32 = arith.constant 0 : i32
    %c0_i32_0 = arith.constant 0 : i32
    %c0_i32_1 = arith.constant 0 : i32
    return %c0_i32, %c0_i32_0 : i32, i32
  }
  func.func @transform_7(%arg0: i32, %arg1: i32) -> (i32, i32, i32) {
    %c0_i32 = arith.constant 0 : i32
    %c0_i32_0 = arith.constant 0 : i32
    %c0_i32_1 = arith.constant 0 : i32
    return %arg0, %c0_i32, %c0_i32_0 : i32, i32, i32
  }
  func.func @transform_8(%arg0: i32, %arg1: i32) -> (i32, i32) {
    %c0_i32 = arith.constant 0 : i32
    %c0_i32_0 = arith.constant 0 : i32
    %c0_i32_1 = arith.constant 0 : i32
    return %c0_i32, %c0_i32_0 : i32, i32
  }
  func.func @transform_9(%arg0: i32, %arg1: i32) -> (i32, i32) {
    %c0_i32 = arith.constant 0 : i32
    %c0_i32_0 = arith.constant 0 : i32
    return %arg1, %c0_i32 : i32, i32
  }
}

</mosaic_0001>

<llo_original>
// kernel: tpu_custom_call.1
$region0: #{tpu_custom_call.1}
  #allocation0 [shape = 'u32[]', space=smem, size = 0x4, offset = 0x4, fixed_abs, tag = 'smem constant byte address 0x4 - core index']
  #allocation1 [shape = 'u32[144,128]{1,0:T(1,128)}', space=vmem, size = 0x12000, scoped, tag = 'internal scratch']
  #allocation2 [shape = 'bf16[128,128]{1,0:T(16,128)(2,1)}', space=vmem, size = 0x8000, scoped, tag = 'scratch operand']
  #allocation3 [shape = 'bf16[128,128]{1,0:T(16,128)(2,1)}', space=vmem, size = 0x8000, scoped, tag = 'scratch operand']
  #allocation4 [shape = 'f32[128,128]{1,0:T(8,128)}', space=vmem, size = 0x10000, scoped, tag = 'scratch operand']
  %s0 = inlined_call_operand.vmem [shape: bf16[128,128], index: 0, kind: input, shape index: {}]
  %s1 = inlined_call_operand.vmem [shape: bf16[128,128], index: 1, kind: input, shape index: {}]
  %s2 = inlined_call_operand.vmem [shape: f32[128,1], index: 2, kind: input, shape index: {}]
  %s3 = inlined_call_operand.hbm [shape: bf16[3,128,128], index: 3, kind: input, shape index: {}]
  %s4 = inlined_call_operand.hbm [shape: bf16[3,128,128], index: 4, kind: input, shape index: {}]
  %s5 = inlined_call_operand.vmem [shape: f32[3,1,128], index: 5, kind: input, shape index: {}]
  %s6 = inlined_call_operand.hbm [shape: bf16[128,128], index: 6, kind: input, shape index: {}]
  %s7 = inlined_call_operand.hbm [shape: bf16[3,128,128], index: 7, kind: input, shape index: {}]
  %s8 = inlined_call_operand.vmem [shape: f32[1,128], index: 8, kind: input, shape index: {}]
  %s9 = inlined_call_operand.hbm [shape: f32[128,128], index: 9, kind: output, shape index: {}]
  %s10 = sld [smem:[#allocation0]]
  $region113: #{tpu_custom_call.1} parent=0
    _
  %s12 = ssub.s32 1, %s10
  %s13 = scalar_select 0, %s12, %s10
  $region1: #{tpu_custom_call.1} parent=0
    #allocation5 [shape = 'u8[65536]{0}', space=vmem, size = 0x10000, scoped, tag = 'input window, operand 3']
    #allocation6 [shape = 's32[2]{0}', space=sflag, size = 0x8, scoped, tag = 'scoped memory for tpu_custom_call.1']
    #allocation7 [shape = 's32[2]{0}', space=sflag, size = 0x8, scoped, tag = 'scoped memory for tpu_custom_call.1']
    #allocation8 [shape = 'u8[65536]{0}', space=vmem, size = 0x10000, scoped, tag = 'input window, operand 4']
    #allocation9 [shape = 's32[2]{0}', space=sflag, size = 0x8, scoped, tag = 'scoped memory for tpu_custom_call.1']
    #allocation10 [shape = 'u8[32768]{0}', space=vmem, size = 0x8000, scoped, tag = 'input window, operand 6, single buffered']
    #allocation11 [shape = 'u8[65536]{0}', space=vmem, size = 0x10000, scoped, tag = 'input window, operand 7']
    #allocation12 [shape = 's32[2]{0}', space=sflag, size = 0x8, scoped, tag = 'scoped memory for tpu_custom_call.1']
    #allocation13 [shape = 'u8[65536]{0}', space=vmem, size = 0x10000, scoped, tag = 'output window, operand 0, single buffered']
    %14 = vsyncpa [#allocation6], 0
    %s15 = scalar_lea.sflag [#allocation6], 1
    %16 = vsyncpa %s15, 0
    %17 = vsyncpa [#allocation9], 0
    %s18 = scalar_lea.sflag [#allocation9], 1
    %19 = vsyncpa %s18, 0
    %20 = vsyncpa [#allocation12], 0
    %s21 = scalar_lea.sflag [#allocation12], 1
    %22 = vsyncpa %s21, 0
    %23 = vsyncpa [#allocation7], 0
    loop: start=0, step=1, limit=5
    $region2: #{tpu_custom_call.1} parent=1 // loop_pre_header
      _
    $region3: #{tpu_custom_call.1} parent=1 // loop_header
      %s25 = sphi 0, %s29
      %p26 = scmp.ge.s32.totalorder %s25, 5
      %s32 = sphi 0, %s44
      %s33 = sphi 0, %s40
      %s34 = sphi 0, %s32
      %s35 = sphi 0, %s33
      %s36 = sphi 0, %s34
      %s37 = sphi 0, %s35
      %s45 = sphi 0, %s45
      %s47 = sphi 0, %s45
      %s48 = sphi 0, %s47
      %s62 = sphi 0, %s48
      %s68 = sphi 0, %s70
      %s71 = sphi 0, %s68
      %s72 = sphi 0, %s71
      %s88 = sphi 0, %s72
      %s94 = sphi 0, %s96
      %s97 = sphi 0, %s94
      %s98 = sphi 0, %s97
      %s114 = sphi 0, %s98
      %s120 = sphi 0, %s122
      %s123 = sphi 0, %s120
      %s124 = sphi 0, %s123
      %s140 = sphi 0, %s124
      %s146 = sphi 0, %s148
      %s149 = sphi 0, %s146
      %s150 = sphi 0, %s149
      %s166 = sphi 0, %s150
      %s172 = sphi 0, %s174
      %s175 = sphi 0, %s172
      %s176 = sphi 0, %s175
      %s192 = sphi 0, %s176
      %s196 = sphi 0, %s196
      %s198 = sphi 0, %s196
      %s199 = sphi 0, %s198
      %s213 = sphi 0, %s199
      %s219 = sphi 0, %s221
      %s222 = sphi 0, %s219
      %s223 = sphi 0, %s222
      %s239 = sphi 0, %s223
      %s243 = sphi 0, %s243
      %s245 = sphi 0, %s243
      %s246 = sphi 0, %s245
      %s260 = sphi 0, %s246
      %s266 = sphi 0, %s268
      %s269 = sphi 0, %s266
      %s270 = sphi 0, %s269
      %s286 = sphi 0, %s270
    $region4: #{tpu_custom_call.1} parent=1 // loop_header_branch
      %28 = sbr.rel (%p26) target = $region8
    $region5: #{tpu_custom_call.1} parent=1 // loop_body
      %s30 = ssub.s32 %s25, 1
      %s31 = ssub.s32 %s25, 2
      %s38 = sadd.s32 1, %s33
      %p39 = scmp.ge.s32.totalorder %s38, 1
      %s40 = scalar_select %p39, 0, %s38
      %s41 = sadd.s32 1, %s32
      %s42 = scalar_select %p39, %s41, %s32
      %p43 = scmp.ge.s32.totalorder %s42, 3
      %s44 = scalar_select %p43, 0, %s42
      %s46 = sadd.s32 %s45, 1
      %p49 = scmp.eq.s32.totalorder %s25, 2
      %p50 = scmp.ne.s32.totalorder %s45, %s47
      %p51 = scmp.eq.s32.totalorder %s25, 0
      %p52 = por %p50, %p51
      %p53 = scmp.ne.s32.totalorder %s45, %s47
      %p54 = scmp.eq.s32.totalorder %s30, 2
      %p55 = por %p53, %p54
      %p56 = scmp.ne.s32.totalorder %s47, %s48
      %p57 = scmp.eq.s32.totalorder %s30, 0
      %p58 = por %p56, %p57
      %p59 = scmp.ne.s32.totalorder %s47, %s48
      %p60 = scmp.eq.s32.totalorder %s31, 2
      %p61 = por %p59, %p60
      %p63 = scmp.ne.s32.totalorder %s48, %s62
      %p64 = scmp.eq.s32.totalorder %s31, 0
      %p65 = por %p63, %p64
      %s66 = ssub.s32 %s33, %s40
      %p67 = scmp.eq.s32.totalorder %s66, 0
      %s69 = sadd.s32 %s68, 1
      %s70 = scalar_select %p67, %s68, %s69
      %p73 = pneg %p67
      %p74 = scmp.eq.s32.totalorder %s25, 2
      %p75 = por %p73, %p74
      %p76 = scmp.ne.s32.totalorder %s68, %s71
      %p77 = scmp.eq.s32.totalorder %s25, 0
      %p78 = por %p76, %p77
      %p79 = scmp.ne.s32.totalorder %s68, %s71
      %p80 = scmp.eq.s32.totalorder %s30, 2
      %p81 = por %p79, %p80
      %p82 = scmp.ne.s32.totalorder %s71, %s72
      %p83 = scmp.eq.s32.totalorder %s30, 0
      %p84 = por %p82, %p83
      %p85 = scmp.ne.s32.totalorder %s71, %s72
      %p86 = scmp.eq.s32.totalorder %s31, 2
      %p87 = por %p85, %p86
      %p89 = scmp.ne.s32.totalorder %s72, %s88
      %p90 = scmp.eq.s32.totalorder %s31, 0
      %p91 = por %p89, %p90
      %s92 = ssub.s32 %s33, %s40
      %p93 = scmp.eq.s32.totalorder %s92, 0
      %s95 = sadd.s32 %s94, 1
      %s96 = scalar_select %p93, %s94, %s95
      %p99 = pneg %p93
      %p100 = scmp.eq.s32.totalorder %s25, 2
      %p101 = por %p99, %p100
      %p102 = scmp.ne.s32.totalorder %s94, %s97
      %p103 = scmp.eq.s32.totalorder %s25, 0
      %p104 = por %p102, %p103
      %p105 = scmp.ne.s32.totalorder %s94, %s97
      %p106 = scmp.eq.s32.totalorder %s30, 2
      %p107 = por %p105, %p106
      %p108 = scmp.ne.s32.totalorder %s97, %s98
      %p109 = scmp.eq.s32.totalorder %s30, 0
      %p110 = por %p108, %p109
      %p111 = scmp.ne.s32.totalorder %s97, %s98
      %p112 = scmp.eq.s32.totalorder %s31, 2
      %p113 = por %p111, %p112
      %p115 = scmp.ne.s32.totalorder %s98, %s114
      %p116 = scmp.eq.s32.totalorder %s31, 0
      %p117 = por %p115, %p116
      %s118 = ssub.s32 %s32, %s44
      %p119 = scmp.eq.s32.totalorder %s118, 0
      %s121 = sadd.s32 %s120, 1
      %s122 = scalar_select %p119, %s120, %s121
      %p125 = pneg %p119
      %p126 = scmp.eq.s32.totalorder %s25, 2
      %p127 = por %p125, %p126
      %p128 = scmp.ne.s32.totalorder %s120, %s123
      %p129 = scmp.eq.s32.totalorder %s25, 0
      %p130 = por %p128, %p129
      %p131 = scmp.ne.s32.totalorder %s120, %s123
      %p132 = scmp.eq.s32.totalorder %s30, 2
      %p133 = por %p131, %p132
      %p134 = scmp.ne.s32.totalorder %s123, %s124
      %p135 = scmp.eq.s32.totalorder %s30, 0
      %p136 = por %p134, %p135
      %p137 = scmp.ne.s32.totalorder %s123, %s124
      %p138 = scmp.eq.s32.totalorder %s31, 2
      %p139 = por %p137, %p138
      %p141 = scmp.ne.s32.totalorder %s124, %s140
      %p142 = scmp.eq.s32.totalorder %s31, 0
      %p143 = por %p141, %p142
      %s144 = ssub.s32 %s32, %s44
      %p145 = scmp.eq.s32.totalorder %s144, 0
      %s147 = sadd.s32 %s146, 1
      %s148 = scalar_select %p145, %s146, %s147
      %p151 = pneg %p145
      %p152 = scmp.eq.s32.totalorder %s25, 2
      %p153 = por %p151, %p152
      %p154 = scmp.ne.s32.totalorder %s146, %s149
      %p155 = scmp.eq.s32.totalorder %s25, 0
      %p156 = por %p154, %p155
      %p157 = scmp.ne.s32.totalorder %s146, %s149
      %p158 = scmp.eq.s32.totalorder %s30, 2
      %p159 = por %p157, %p158
      %p160 = scmp.ne.s32.totalorder %s149, %s150
      %p161 = scmp.eq.s32.totalorder %s30, 0
      %p162 = por %p160, %p161
      %p163 = scmp.ne.s32.totalorder %s149, %s150
      %p164 = scmp.eq.s32.totalorder %s31, 2
      %p165 = por %p163, %p164
      %p167 = scmp.ne.s32.totalorder %s150, %s166
      %p168 = scmp.eq.s32.totalorder %s31, 0
      %p169 = por %p167, %p168
      %s170 = ssub.s32 %s32, %s44
      %p171 = scmp.eq.s32.totalorder %s170, 0
      %s173 = sadd.s32 %s172, 1
      %s174 = scalar_select %p171, %s172, %s173
      %p177 = pneg %p171
      %p178 = scmp.eq.s32.totalorder %s25, 2
      %p179 = por %p177, %p178
      %p180 = scmp.ne.s32.totalorder %s172, %s175
      %p181 = scmp.eq.s32.totalorder %s25, 0
      %p182 = por %p180, %p181
      %p183 = scmp.ne.s32.totalorder %s172, %s175
      %p184 = scmp.eq.s32.totalorder %s30, 2
      %p185 = por %p183, %p184
      %p186 = scmp.ne.s32.totalorder %s175, %s176
      %p187 = scmp.eq.s32.totalorder %s30, 0
      %p188 = por %p186, %p187
      %p189 = scmp.ne.s32.totalorder %s175, %s176
      %p190 = scmp.eq.s32.totalorder %s31, 2
      %p191 = por %p189, %p190
      %p193 = scmp.ne.s32.totalorder %s176, %s192
      %p194 = scmp.eq.s32.totalorder %s31, 0
      %p195 = por %p193, %p194
      %s197 = sadd.s32 %s196, 1
      %p200 = scmp.eq.s32.totalorder %s25, 2
      %p201 = scmp.ne.s32.totalorder %s196, %s198
      %p202 = scmp.eq.s32.totalorder %s25, 0
      %p203 = por %p201, %p202
      %p204 = scmp.ne.s32.totalorder %s196, %s198
      %p205 = scmp.eq.s32.totalorder %s30, 2
      %p206 = por %p204, %p205
      %p207 = scmp.ne.s32.totalorder %s198, %s199
      %p208 = scmp.eq.s32.totalorder %s30, 0
      %p209 = por %p207, %p208
      %p210 = scmp.ne.s32.totalorder %s198, %s199
      %p211 = scmp.eq.s32.totalorder %s31, 2
      %p212 = por %p210, %p211
      %p214 = scmp.ne.s32.totalorder %s199, %s213
      %p215 = scmp.eq.s32.totalorder %s31, 0
      %p216 = por %p214, %p215
      %s217 = ssub.s32 %s32, %s44
      %p218 = scmp.eq.s32.totalorder %s217, 0
      %s220 = sadd.s32 %s219, 1
      %s221 = scalar_select %p218, %s219, %s220
      %p224 = pneg %p218
      %p225 = scmp.eq.s32.totalorder %s25, 2
      %p226 = por %p224, %p225
      %p227 = scmp.ne.s32.totalorder %s219, %s222
      %p228 = scmp.eq.s32.totalorder %s25, 0
      %p229 = por %p227, %p228
      %p230 = scmp.ne.s32.totalorder %s219, %s222
      %p231 = scmp.eq.s32.totalorder %s30, 2
      %p232 = por %p230, %p231
      %p233 = scmp.ne.s32.totalorder %s222, %s223
      %p234 = scmp.eq.s32.totalorder %s30, 0
      %p235 = por %p233, %p234
      %p236 = scmp.ne.s32.totalorder %s222, %s223
      %p237 = scmp.eq.s32.totalorder %s31, 2
      %p238 = por %p236, %p237
      %p240 = scmp.ne.s32.totalorder %s223, %s239
      %p241 = scmp.eq.s32.totalorder %s31, 0
      %p242 = por %p240, %p241
      %s244 = sadd.s32 %s243, 1
      %p247 = scmp.eq.s32.totalorder %s25, 2
      %p248 = scmp.ne.s32.totalorder %s243, %s245
      %p249 = scmp.eq.s32.totalorder %s25, 0
      %p250 = por %p248, %p249
      %p251 = scmp.ne.s32.totalorder %s243, %s245
      %p252 = scmp.eq.s32.totalorder %s30, 2
      %p253 = por %p251, %p252
      %p254 = scmp.ne.s32.totalorder %s245, %s246
      %p255 = scmp.eq.s32.totalorder %s30, 0
      %p256 = por %p254, %p255
      %p257 = scmp.ne.s32.totalorder %s245, %s246
      %p258 = scmp.eq.s32.totalorder %s31, 2
      %p259 = por %p257, %p258
      %p261 = scmp.ne.s32.totalorder %s246, %s260
      %p262 = scmp.eq.s32.totalorder %s31, 0
      %p263 = por %p261, %p262
      %s264 = ssub.s32 %s33, %s40
      %p265 = scmp.eq.s32.totalorder %s264, 0
      %s267 = sadd.s32 %s266, 1
      %s268 = scalar_select %p265, %s266, %s267
      %p271 = pneg %p265
      %p272 = scmp.eq.s32.totalorder %s25, 2
      %p273 = por %p271, %p272
      %p274 = scmp.ne.s32.totalorder %s266, %s269
      %p275 = scmp.eq.s32.totalorder %s25, 0
      %p276 = por %p274, %p275
      %p277 = scmp.ne.s32.totalorder %s266, %s269
      %p278 = scmp.eq.s32.totalorder %s30, 2
      %p279 = por %p277, %p278
      %p280 = scmp.ne.s32.totalorder %s269, %s270
      %p281 = scmp.eq.s32.totalorder %s30, 0
      %p282 = por %p280, %p281
      %p283 = scmp.ne.s32.totalorder %s269, %s270
      %p284 = scmp.eq.s32.totalorder %s31, 2
      %p285 = por %p283, %p284
      %p287 = scmp.ne.s32.totalorder %s270, %s286
      %p288 = scmp.eq.s32.totalorder %s31, 0
      %p289 = por %p287, %p288
      %p290 = scmp.le.s32.totalorder 1, %s25
      %p291 = scmp.lt.s32.totalorder %s25, 4
      %p292 = pnand %p290, %p291
      %p293 = pneg %p292
      // Predicated region
      $region9: #{tpu_custom_call.1} parent=5 // pred_check
        _
      $region10: #{tpu_custom_call.1} parent=5 // pred_check_branch
        %295 = sbr.rel (%p292) target = $region12
      $region11: #{tpu_custom_call.1} parent=5 // pred_region
        %s296 = ssub.s32 %s25, 1
        // Predicated region
        $region13: #{tpu_custom_call.1} parent=11 // pred_check
          %p297 = pneg %p58
        $region14: #{tpu_custom_call.1} parent=11 // pred_check_branch
          %299 = sbr.rel (%p297) target = $region16
        $region15: #{tpu_custom_call.1} parent=11 // pred_region
          _
        $region16: #{tpu_custom_call.1} parent=11 // pred_fallthru
          _
        // Predicated region
        $region17: #{tpu_custom_call.1} parent=11 // pred_check
          %p300 = pneg %p84
        $region18: #{tpu_custom_call.1} parent=11 // pred_check_branch
          %302 = sbr.rel (%p300) target = $region20
        $region19: #{tpu_custom_call.1} parent=11 // pred_region
          %s303 = smul.u32 16, %s35
          %p304 = scmp.lt.s32.totalorder %s303, 15
          %s305 = scalar_select %p304, %s303, 15
          %s306 = smul.addr %s305, 4
          %s307 = scalar_lea.vmem %s1, %s306
          %s308 = smul.u32 16, %s35
        $region20: #{tpu_custom_call.1} parent=11 // pred_fallthru
          _
        // Predicated region
        $region21: #{tpu_custom_call.1} parent=11 // pred_check
          %p309 = pneg %p110
        $region22: #{tpu_custom_call.1} parent=11 // pred_check_branch
          %311 = sbr.rel (%p309) target = $region24
        $region23: #{tpu_custom_call.1} parent=11 // pred_region
          %s312 = smul.u32 16, %s35
          %p313 = scmp.lt.s32.totalorder %s312, 15
          %s314 = scalar_select %p313, %s312, 15
          %s315 = smul.addr %s314, 8
          %s316 = scalar_lea.vmem %s2, %s315
          %s317 = smul.u32 16, %s35
        $region24: #{tpu_custom_call.1} parent=11 // pred_fallthru
          _
        // Predicated region
        $region25: #{tpu_custom_call.1} parent=11 // pred_check
          %p318 = pneg %p209
        $region26: #{tpu_custom_call.1} parent=11 // pred_check_branch
          %320 = sbr.rel (%p318) target = $region28
        $region27: #{tpu_custom_call.1} parent=11 // pred_region
          %s322 = ssub.s32 1024, 1024
          %323 = vsyncadd [#allocation9], %s322
          %s324 = sshll.u32 [#allocation10], 4
          %s325 = int_to_ptr.vmem [resolvable:$true] %s324
          %330 = dma.hbm_to_vmem [thread:$0]  %s6, 1024, %s325, [#allocation9], 64, 64, 4
        $region28: #{tpu_custom_call.1} parent=11 // pred_fallthru
          _
        // Predicated region
        $region29: #{tpu_custom_call.1} parent=11 // pred_check
          %p331 = pneg %p256
        $region30: #{tpu_custom_call.1} parent=11 // pred_check_branch
          %333 = sbr.rel (%p331) target = $region32
        $region31: #{tpu_custom_call.1} parent=11 // pred_region
          _
        $region32: #{tpu_custom_call.1} parent=11 // pred_fallthru
          _
      $region12: #{tpu_custom_call.1} parent=5 // pred_fallthru
        _
      %p334 = scmp.lt.s32.totalorder %s25, 3
      // Predicated region
      $region33: #{tpu_custom_call.1} parent=5 // pred_check
        %p335 = pneg %p334
      $region34: #{tpu_custom_call.1} parent=5 // pred_check_branch
        %337 = sbr.rel (%p335) target = $region36
      $region35: #{tpu_custom_call.1} parent=5 // pred_region
        // Predicated region
        $region37: #{tpu_custom_call.1} parent=35 // pred_check
          %p338 = pneg %p130
        $region38: #{tpu_custom_call.1} parent=35 // pred_check_branch
          %340 = sbr.rel (%p338) target = $region40
        $region39: #{tpu_custom_call.1} parent=35 // pred_region
          %s341 = sand.u32 %s120, 1
          %s342 = scalar_lea.sflag [#allocation6], %s341
          %s343 = sand.u32 %s120, 1
          %s344 = smul.addr %s343, 64
          %s345 = scalar_lea.vmem [#allocation5], %s344
          %s347 = ssub.s32 1024, 1024
          %348 = vsyncadd %s342, %s347
          %s349 = smul.addr %s32, 16
          %s350 = smul.addr %s349, 64
          %s351 = scalar_lea.hbm %s3, %s350
          %s352 = sshll.u32 %s345, 4
          %s353 = int_to_ptr.vmem [resolvable:$true] %s352
          %358 = dma.hbm_to_vmem [thread:$0]  %s351, 1024, %s353, %s342, 64, 64, 4
        $region40: #{tpu_custom_call.1} parent=35 // pred_fallthru
          _
        // Predicated region
        $region41: #{tpu_custom_call.1} parent=35 // pred_check
          %p359 = pneg %p156
        $region42: #{tpu_custom_call.1} parent=35 // pred_check_branch
          %361 = sbr.rel (%p359) target = $region44
        $region43: #{tpu_custom_call.1} parent=35 // pred_region
          %s362 = sand.u32 %s25, 1
          %s363 = scalar_lea.sflag [#allocation9], %s362
          %s364 = sand.u32 %s146, 1
          %s365 = smul.addr %s364, 64
          %s366 = scalar_lea.vmem [#allocation8], %s365
          %s368 = ssub.s32 1024, 1024
          %369 = vsyncadd %s363, %s368
          %s370 = smul.addr %s32, 16
          %s371 = smul.addr %s370, 64
          %s372 = scalar_lea.hbm %s4, %s371
          %s373 = sshll.u32 %s366, 4
          %s374 = int_to_ptr.vmem [resolvable:$true] %s373
          %379 = dma.hbm_to_vmem [thread:$0]  %s372, 1024, %s374, %s363, 64, 64, 4
        $region44: #{tpu_custom_call.1} parent=35 // pred_fallthru
          _
        // Predicated region
        $region45: #{tpu_custom_call.1} parent=35 // pred_check
          %p380 = pneg %p182
        $region46: #{tpu_custom_call.1} parent=35 // pred_check_branch
          %382 = sbr.rel (%p380) target = $region48
        $region47: #{tpu_custom_call.1} parent=35 // pred_region
          %p383 = scmp.lt.s32.totalorder %s32, 2
          %s384 = scalar_select %p383, %s32, 2
          %s385 = scalar_lea.vmem %s5, %s384
        $region48: #{tpu_custom_call.1} parent=35 // pred_fallthru
          _
        // Predicated region
        $region49: #{tpu_custom_call.1} parent=35 // pred_check
          %p386 = pneg %p229
        $region50: #{tpu_custom_call.1} parent=35 // pred_check_branch
          %388 = sbr.rel (%p386) target = $region52
        $region51: #{tpu_custom_call.1} parent=35 // pred_region
          %s389 = sand.u32 %s219, 1
          %s390 = scalar_lea.sflag [#allocation12], %s389
          %s391 = sand.u32 %s219, 1
          %s392 = smul.addr %s391, 64
          %s393 = scalar_lea.vmem [#allocation11], %s392
          %s395 = ssub.s32 1024, 1024
          %396 = vsyncadd %s390, %s395
          %s397 = smul.addr %s32, 16
          %s398 = smul.addr %s397, 64
          %s399 = scalar_lea.hbm %s7, %s398
          %s400 = sshll.u32 %s393, 4
          %s401 = int_to_ptr.vmem [resolvable:$true] %s400
          %406 = dma.hbm_to_vmem [thread:$0]  %s399, 1024, %s401, %s390, 64, 64, 4
        $region52: #{tpu_custom_call.1} parent=35 // pred_fallthru
          _
      $region36: #{tpu_custom_call.1} parent=5 // pred_fallthru
        _
      %p407 = scmp.le.s32.totalorder 1, %s25
      %p408 = scmp.lt.s32.totalorder %s25, 4
      %p409 = pnand %p407, %p408
      %p410 = pneg %p409
      // Predicated region
      $region53: #{tpu_custom_call.1} parent=5 // pred_check
        _
      $region54: #{tpu_custom_call.1} parent=5 // pred_check_branch
        %412 = sbr.rel (%p409) target = $region56
      $region55: #{tpu_custom_call.1} parent=5 // pred_region
        %s413 = ssub.s32 %s25, 1
        %s414 = sand.u32 %s123, 1
        %s415 = scalar_lea.sflag [#allocation6], %s414
        %s416 = sand.u32 %s123, 1
        %s417 = smul.addr %s416, 64
        %s418 = scalar_lea.vmem [#allocation5], %s417
        // Predicated region
        $region57: #{tpu_custom_call.1} parent=55 // pred_check
          %p419 = pneg %p136
        $region58: #{tpu_custom_call.1} parent=55 // pred_check_branch
          %421 = sbr.rel (%p419) target = $region60
        $region59: #{tpu_custom_call.1} parent=55 // pred_region
          %422 = dma.done %s415, 1024
        $region60: #{tpu_custom_call.1} parent=55 // pred_fallthru
          _
        %s423 = sand.u32 %s30, 1
        %s424 = scalar_lea.sflag [#allocation9], %s423
        %s425 = sand.u32 %s149, 1
        %s426 = smul.addr %s425, 64
        %s427 = scalar_lea.vmem [#allocation8], %s426
        // Predicated region
        $region61: #{tpu_custom_call.1} parent=55 // pred_check
          %p428 = pneg %p162
        $region62: #{tpu_custom_call.1} parent=55 // pred_check_branch
          %430 = sbr.rel (%p428) target = $region64
        $region63: #{tpu_custom_call.1} parent=55 // pred_region
          %431 = dma.done %s424, 1024
        $region64: #{tpu_custom_call.1} parent=55 // pred_fallthru
          _
        // Predicated region
        $region65: #{tpu_custom_call.1} parent=55 // pred_check
          %p432 = pneg %p209
        $region66: #{tpu_custom_call.1} parent=55 // pred_check_branch
          %434 = sbr.rel (%p432) target = $region68
        $region67: #{tpu_custom_call.1} parent=55 // pred_region
          %435 = dma.done [#allocation9], 1024
        $region68: #{tpu_custom_call.1} parent=55 // pred_fallthru
          _
        %s436 = sand.u32 %s222, 1
        %s437 = scalar_lea.sflag [#allocation12], %s436
        %s438 = sand.u32 %s222, 1
        %s439 = smul.addr %s438, 64
        %s440 = scalar_lea.vmem [#allocation11], %s439
        // Predicated region
        $region69: #{tpu_custom_call.1} parent=55 // pred_check
          %p441 = pneg %p235
        $region70: #{tpu_custom_call.1} parent=55 // pred_check_branch
          %443 = sbr.rel (%p441) target = $region72
        $region71: #{tpu_custom_call.1} parent=55 // pred_region
          %444 = dma.done %s437, 1024
        $region72: #{tpu_custom_call.1} parent=55 // pred_fallthru
          _
        %p445 = pneg %p58
        %p446 = pneg %p55
        %s447 = smul.u32 16, %s35
        %p448 = scmp.lt.s32.totalorder %s447, 15
        %s449 = scalar_select %p448, %s447, 15
        %s450 = smul.addr %s449, 4
        %s451 = scalar_lea.vmem %s1, %s450
        %p452 = pneg %p84
        %p453 = pneg %p81
        %s454 = smul.u32 16, %s35
        %p455 = scmp.lt.s32.totalorder %s454, 15
        %s456 = scalar_select %p455, %s454, 15
        %s457 = smul.addr %s456, 8
        %s458 = scalar_lea.vmem %s2, %s457
        %p459 = pneg %p110
        %p460 = pneg %p107
        %s461 = sand.u32 %s123, 1
        %s462 = scalar_lea.sflag [#allocation6], %s461
        %s463 = sand.u32 %s123, 1
        %s464 = smul.addr %s463, 64
        %s465 = scalar_lea.vmem [#allocation5], %s464
        %p466 = pneg %p136
        %p467 = pneg %p133
        %s468 = sand.u32 %s30, 1
        %s469 = scalar_lea.sflag [#allocation9], %s468
        %s470 = sand.u32 %s149, 1
        %s471 = smul.addr %s470, 64
        %s472 = scalar_lea.vmem [#allocation8], %s471
        %p473 = pneg %p162
        %p474 = pneg %p159
        %p475 = scmp.lt.s32.totalorder %s34, 2
        %s476 = scalar_select %p475, %s34, 2
        %s477 = scalar_lea.vmem %s5, %s476
        %p478 = pneg %p188
        %p479 = pneg %p185
        %p480 = pneg %p209
        %p481 = pneg %p206
        %s482 = sand.u32 %s222, 1
        %s483 = scalar_lea.sflag [#allocation12], %s482
        %s484 = sand.u32 %s222, 1
        %s485 = smul.addr %s484, 64
        %s486 = scalar_lea.vmem [#allocation11], %s485
        %p487 = pneg %p235
        %p488 = pneg %p232
        %p489 = pneg %p256
        %p490 = pneg %p253
        %p491 = pneg %p282
        %p492 = pneg %p279
        %s493 = smul.u32 16, %s35
        %p494 = scmp.lt.s32.totalorder %s493, 15
        %s495 = scalar_select %p494, %s493, 15
        %s496 = smul.addr %s495, 4
        %s497 = scalar_lea.vmem %s1, %s496
        %s498 = smul.u32 16, %s35
        %s499 = smul.u32 16, %s35
        %p500 = scmp.lt.s32.totalorder %s499, 15
        %s501 = scalar_select %p500, %s499, 15
        %s502 = smul.addr %s501, 8
        %s503 = scalar_lea.vmem %s2, %s502
        %s504 = smul.u32 16, %s35
        %p505 = scmp.lt.s32.totalorder %s34, 2
        %s506 = scalar_select %p505, %s34, 2
        %s507 = scalar_lea.vmem %s5, %s506
        %s508 = smul.u32 16, %s35
        %s510 = smul.u32 %s35, 128
        %p511 = scmp.eq.s32.totalorder %s34, 0
        %p512 = scmp.eq.s32.totalorder %s35, 0
        %p513 = pnand %p511, %p512
        %p514 = pneg %p513
        // Predicated region
        $region73: #{tpu_custom_call.1} parent=55 // pred_check
          _
        $region74: #{tpu_custom_call.1} parent=55 // pred_check_branch
          %516 = sbr.rel (%p513) target = $region76
        $region75: #{tpu_custom_call.1} parent=55 // pred_region
          %v517 = vld [vmem:[%s0] sm:$0xf]
          %v518 = vld [vmem:[%s0 + $0x4] sm:$0xf]
          %v519 = vld [vmem:[%s0 + $0x8] sm:$0xf]
          %v520 = vld [vmem:[%s0 + $0xc] sm:$0xf]
          %v521 = vld [vmem:[%s0 + $0x10] sm:$0xf]
          %v522 = vld [vmem:[%s0 + $0x14] sm:$0xf]
          %v523 = vld [vmem:[%s0 + $0x18] sm:$0xf]
          %v524 = vld [vmem:[%s0 + $0x1c] sm:$0xf]
          %v525 = vld [vmem:[%s0 + $0x20] sm:$0xf]
          %v526 = vld [vmem:[%s0 + $0x24] sm:$0xf]
          %v527 = vld [vmem:[%s0 + $0x28] sm:$0xf]
          %v528 = vld [vmem:[%s0 + $0x2c] sm:$0xf]
          %v529 = vld [vmem:[%s0 + $0x30] sm:$0xf]
          %v530 = vld [vmem:[%s0 + $0x34] sm:$0xf]
          %v531 = vld [vmem:[%s0 + $0x38] sm:$0xf]
          %v532 = vld [vmem:[%s0 + $0x3c] sm:$0xf]
          %v549 = vunpack.c.l.b16 %v517
          %v550 = vunpack.c.l.b16 %v518
          %v551 = vunpack.c.l.b16 %v519
          %v552 = vunpack.c.l.b16 %v520
          %v553 = vunpack.c.l.b16 %v521
          %v554 = vunpack.c.l.b16 %v522
          %v555 = vunpack.c.l.b16 %v523
          %v556 = vunpack.c.l.b16 %v524
          %v557 = vunpack.c.l.b16 %v525
          %v558 = vunpack.c.l.b16 %v526
          %v559 = vunpack.c.l.b16 %v527
          %v560 = vunpack.c.l.b16 %v528
          %v561 = vunpack.c.l.b16 %v529
          %v562 = vunpack.c.l.b16 %v530
          %v563 = vunpack.c.l.b16 %v531
          %v564 = vunpack.c.l.b16 %v532
          %v565 = vpack.c.b16 %v550, %v549
          %v566 = vpack.c.b16 %v552, %v551
          %v567 = vpack.c.b16 %v554, %v553
          %v568 = vpack.c.b16 %v556, %v555
          %v569 = vpack.c.b16 %v558, %v557
          %v570 = vpack.c.b16 %v560, %v559
          %v571 = vpack.c.b16 %v562, %v561
          %v572 = vpack.c.b16 %v564, %v563
          %581 = vst [vmem:[#allocation2] sm:$0xff] %v565
          %582 = vst [vmem:[#allocation2 + $0x8] sm:$0xff] %v566
          %583 = vst [vmem:[#allocation2 + $0x10] sm:$0xff] %v567
          %584 = vst [vmem:[#allocation2 + $0x18] sm:$0xff] %v568
          %585 = vst [vmem:[#allocation2 + $0x20] sm:$0xff] %v569
          %586 = vst [vmem:[#allocation2 + $0x28] sm:$0xff] %v570
          %587 = vst [vmem:[#allocation2 + $0x30] sm:$0xff] %v571
          %588 = vst [vmem:[#allocation2 + $0x38] sm:$0xff] %v572
        $region76: #{tpu_custom_call.1} parent=55 // pred_fallthru
          _
        %p589 = scmp.lt.s32.totalorder %s34, 0
        %s590 = ssub.s32 0, %s34
        %s591 = scalar_select %p589, %s590, %s34
        %s592 = sand.u32 %s591, 1
        %s593 = ssub.s32 0, %s592
        %s594 = scalar_select %p589, %s593, %s592
        %p595 = scmp.eq.s32.totalorder %s594, 0
        // Predicated region
        $region77: #{tpu_custom_call.1} parent=55 // pred_check
          %p596 = pneg %p595
        $region78: #{tpu_custom_call.1} parent=55 // pred_check_branch
          %598 = sbr.rel (%p596) target = $region80
        $region79: #{tpu_custom_call.1} parent=55 // pred_region
          %v599 = vld [vmem:[%s503] sm:$0xff]
          %v600 = vld [vmem:[%s503 + $0x8] sm:$0xff]
          %v601 = vld [vmem:[%s503 + $0x10] sm:$0xff]
          %v602 = vld [vmem:[%s503 + $0x18] sm:$0xff]
          %v603 = vld [vmem:[%s503 + $0x20] sm:$0xff]
          %v604 = vld [vmem:[%s503 + $0x28] sm:$0xff]
          %v605 = vld [vmem:[%s503 + $0x30] sm:$0xff]
          %v606 = vld [vmem:[%s503 + $0x38] sm:$0xff]
          %v607 = vld [vmem:[%s503 + $0x40] sm:$0xff]
          %v608 = vld [vmem:[%s503 + $0x48] sm:$0xff]
          %v609 = vld [vmem:[%s503 + $0x50] sm:$0xff]
          %v610 = vld [vmem:[%s503 + $0x58] sm:$0xff]
          %v611 = vld [vmem:[%s503 + $0x60] sm:$0xff]
          %v612 = vld [vmem:[%s503 + $0x68] sm:$0xff]
          %v613 = vld [vmem:[%s503 + $0x70] sm:$0xff]
          %v614 = vld [vmem:[%s503 + $0x78] sm:$0xff]
          %v615 = vld [vmem:[%s497] sm:$0xf]
          %v616 = vld [vmem:[%s497 + $0x4] sm:$0xf]
          %v617 = vld [vmem:[%s497 + $0x8] sm:$0xf]
          %v618 = vld [vmem:[%s497 + $0xc] sm:$0xf]
          %v619 = vld [vmem:[%s497 + $0x10] sm:$0xf]
          %v620 = vld [vmem:[%s497 + $0x14] sm:$0xf]
          %v621 = vld [vmem:[%s497 + $0x18] sm:$0xf]
          %v622 = vld [vmem:[%s497 + $0x1c] sm:$0xf]
          %v623 = vld [vmem:[%s497 + $0x20] sm:$0xf]
          %v624 = vld [vmem:[%s497 + $0x24] sm:$0xf]
          %v625 = vld [vmem:[%s497 + $0x28] sm:$0xf]
          %v626 = vld [vmem:[%s497 + $0x2c] sm:$0xf]
          %v627 = vld [vmem:[%s497 + $0x30] sm:$0xf]
          %v628 = vld [vmem:[%s497 + $0x34] sm:$0xf]
          %v629 = vld [vmem:[%s497 + $0x38] sm:$0xf]
          %v630 = vld [vmem:[%s497 + $0x3c] sm:$0xf]
          %v631 = vld [vmem:[#allocation2] sm:$0xff]
          %v632 = vld [vmem:[#allocation2 + $0x8] sm:$0xff]
          %v633 = vld [vmem:[#allocation2 + $0x10] sm:$0xff]
          %v634 = vld [vmem:[#allocation2 + $0x18] sm:$0xff]
          %v635 = vld [vmem:[#allocation2 + $0x20] sm:$0xff]
          %v636 = vld [vmem:[#allocation2 + $0x28] sm:$0xff]
          %v637 = vld [vmem:[#allocation2 + $0x30] sm:$0xff]
          %v638 = vld [vmem:[#allocation2 + $0x38] sm:$0xff]
          %v655 = vunpack.c.l.b16 %v615
          %v656 = vunpack.c.l.b16 %v616
          %v657 = vunpack.c.l.b16 %v617
          %v658 = vunpack.c.l.b16 %v618
          %v659 = vunpack.c.l.b16 %v619
          %v660 = vunpack.c.l.b16 %v620
          %v661 = vunpack.c.l.b16 %v621
          %v662 = vunpack.c.l.b16 %v622
          %v663 = vunpack.c.l.b16 %v623
          %v664 = vunpack.c.l.b16 %v624
          %v665 = vunpack.c.l.b16 %v625
          %v666 = vunpack.c.l.b16 %v626
          %v667 = vunpack.c.l.b16 %v627
          %v668 = vunpack.c.l.b16 %v628
          %v669 = vunpack.c.l.b16 %v629
          %v670 = vunpack.c.l.b16 %v630
          %v671 = vpack.c.b16 %v656, %v655
          %v672 = vpack.c.b16 %v658, %v657
          %v673 = vpack.c.b16 %v660, %v659
          %v674 = vpack.c.b16 %v662, %v661
          %v675 = vpack.c.b16 %v664, %v663
          %v676 = vpack.c.b16 %v666, %v665
          %v677 = vpack.c.b16 %v668, %v667
          %v678 = vpack.c.b16 %v670, %v669
          %687 = vmatprep.subr.bf16.mxu0 0
          %688 = vmatpush1.bf16.msra.mxu0 %v631
          %689 = vmatprep.subr.bf16.mxu0 0
          %690 = vmatpush1.bf16.msra.mxu0 %v632
          %691 = vmatprep.subr.bf16.mxu0 0
          %692 = vmatpush1.bf16.msra.mxu0 %v633
          %693 = vmatprep.subr.bf16.mxu0 0
          %694 = vmatpush1.bf16.msra.mxu0 %v634
          %695 = vmatprep.subr.bf16.mxu0 0
          %696 = vmatpush1.bf16.msra.mxu0 %v635
          %697 = vmatprep.subr.bf16.mxu0 0
          %698 = vmatpush1.bf16.msra.mxu0 %v636
          %699 = vmatprep.subr.bf16.mxu0 0
          %700 = vmatpush1.bf16.msra.mxu0 %v637
          %701 = vmatprep.subr.bf16.mxu0 0
          %702 = vmatpush1.bf16.msra.mxu0 %v638
          %703 = vmatprep.subr.bf16.mxu0 0
          %704 = vmatpush1.bf16.msra.mxu0 0
          %705 = vmatprep.subr.bf16.mxu0 0
          %706 = vmatpush1.bf16.msra.mxu0 0
          %707 = vmatprep.subr.bf16.mxu0 0
          %708 = vmatpush1.bf16.msra.mxu0 0
          %709 = vmatprep.subr.bf16.mxu0 0
          %710 = vmatpush1.bf16.msra.mxu0 0
          %711 = vmatprep.subr.bf16.mxu0 0
          %712 = vmatpush1.bf16.msra.mxu0 0
          %713 = vmatprep.subr.bf16.mxu0 0
          %714 = vmatpush1.bf16.msra.mxu0 0
          %715 = vmatprep.subr.bf16.mxu0 0
          %716 = vmatpush1.bf16.msra.mxu0 0
          %717 = vmatprep.subr.bf16.mxu0 0
          %718 = vmatpush1.bf16.msra.mxu0 0
          %719 = vmatprep.mubr.bf16.mxu0 0
          %720 = vmatmul.mubr.bf16.gmra.mrb[0].mxu0 %v671
          %v721 = vpop.f32.mrb[0].mxu0
          %v722 = vadd.f32 0.0, %v721
          %v723 = vpop.f32.mrb[0].mxu0
          %v724 = vpop.f32.mrb[0].mxu0
          %v725 = vadd.f32 0.0, %v724
          %v726 = vpop.f32.mrb[0].mxu0
          %727 = vmatprep.mubr.bf16.mxu0 0
          %728 = vmatmul.mubr.bf16.gmra.mrb[0].mxu0 %v672
          %v729 = vpop.f32.mrb[0].mxu0
          %v730 = vadd.f32 0.0, %v729
          %v731 = vpop.f32.mrb[0].mxu0
          %v732 = vpop.f32.mrb[0].mxu0
          %v733 = vadd.f32 0.0, %v732
          %v734 = vpop.f32.mrb[0].mxu0
          %735 = vmatprep.mubr.bf16.mxu0 0
          %736 = vmatmul.mubr.bf16.gmra.mrb[0].mxu0 %v673
          %v737 = vpop.f32.mrb[0].mxu0
          %v738 = vadd.f32 0.0, %v737
          %v739 = vpop.f32.mrb[0].mxu0
          %v740 = vpop.f32.mrb[0].mxu0
          %v741 = vadd.f32 0.0, %v740
          %v742 = vpop.f32.mrb[0].mxu0
          %743 = vmatprep.mubr.bf16.mxu0 0
          %744 = vmatmul.mubr.bf16.gmra.mrb[0].mxu0 %v674
          %v745 = vpop.f32.mrb[0].mxu0
          %v746 = vadd.f32 0.0, %v745
          %v747 = vpop.f32.mrb[0].mxu0
          %v748 = vpop.f32.mrb[0].mxu0
          %v749 = vadd.f32 0.0, %v748
          %v750 = vpop.f32.mrb[0].mxu0
          %751 = vmatprep.mubr.bf16.mxu0 0
          %752 = vmatmul.mubr.bf16.gmra.mrb[0].mxu0 %v675
          %v753 = vpop.f32.mrb[0].mxu0
          %v754 = vadd.f32 0.0, %v753
          %v755 = vpop.f32.mrb[0].mxu0
          %v756 = vpop.f32.mrb[0].mxu0
          %v757 = vadd.f32 0.0, %v756
          %v758 = vpop.f32.mrb[0].mxu0
          %759 = vmatprep.mubr.bf16.mxu0 0
          %760 = vmatmul.mubr.bf16.gmra.mrb[0].mxu0 %v676
          %v761 = vpop.f32.mrb[0].mxu0
          %v762 = vadd.f32 0.0, %v761
          %v763 = vpop.f32.mrb[0].mxu0
          %v764 = vpop.f32.mrb[0].mxu0
          %v765 = vadd.f32 0.0, %v764
          %v766 = vpop.f32.mrb[0].mxu0
          %767 = vmatprep.mubr.bf16.mxu0 0
          %768 = vmatmul.mubr.bf16.gmra.mrb[0].mxu0 %v677
          %v769 = vpop.f32.mrb[0].mxu0
          %v770 = vadd.f32 0.0, %v769
          %v771 = vpop.f32.mrb[0].mxu0
          %v772 = vpop.f32.mrb[0].mxu0
          %v773 = vadd.f32 0.0, %v772
          %v774 = vpop.f32.mrb[0].mxu0
          %775 = vmatprep.mubr.bf16.mxu0 0
          %776 = vmatmul.mubr.bf16.gmra.mrb[0].mxu0 %v678
          %v777 = vpop.f32.mrb[0].mxu0
          %v778 = vadd.f32 0.0, %v777
          %v779 = vpop.f32.mrb[0].mxu0
          %v780 = vpop.f32.mrb[0].mxu0
          %v781 = vadd.f32 0.0, %v780
          %v782 = vpop.f32.mrb[0].mxu0
          %783 = vdwg.mxu0
          %785 = vset.pattern.permute.xlu0 0
          %786 = vperm.xlu0 %785, %v599
          %v787 = vpop.permute.xlu0 %786
          %790 = vset.pattern.permute.xlu0 0
          %791 = vperm.xlu0 %790, %v600
          %v792 = vpop.permute.xlu0 %791
          %795 = vset.pattern.permute.xlu0 0
          %796 = vperm.xlu0 %795, %v601
          %v797 = vpop.permute.xlu0 %796
          %800 = vset.pattern.permute.xlu0 0
          %801 = vperm.xlu0 %800, %v602
          %v802 = vpop.permute.xlu0 %801
          %805 = vset.pattern.permute.xlu0 0
          %806 = vperm.xlu0 %805, %v603
          %v807 = vpop.permute.xlu0 %806
          %810 = vset.pattern.permute.xlu0 0
          %811 = vperm.xlu0 %810, %v604
          %v812 = vpop.permute.xlu0 %811
          %815 = vset.pattern.permute.xlu0 0
          %816 = vperm.xlu0 %815, %v605
          %v817 = vpop.permute.xlu0 %816
          %820 = vset.pattern.permute.xlu0 0
          %821 = vperm.xlu0 %820, %v606
          %v822 = vpop.permute.xlu0 %821
          %825 = vset.pattern.permute.xlu0 0
          %826 = vperm.xlu0 %825, %v607
          %v827 = vpop.permute.xlu0 %826
          %830 = vset.pattern.permute.xlu0 0
          %831 = vperm.xlu0 %830, %v608
          %v832 = vpop.permute.xlu0 %831
          %835 = vset.pattern.permute.xlu0 0
          %836 = vperm.xlu0 %835, %v609
          %v837 = vpop.permute.xlu0 %836
          %840 = vset.pattern.permute.xlu0 0
          %841 = vperm.xlu0 %840, %v610
          %v842 = vpop.permute.xlu0 %841
          %845 = vset.pattern.permute.xlu0 0
          %846 = vperm.xlu0 %845, %v611
          %v847 = vpop.permute.xlu0 %846
          %850 = vset.pattern.permute.xlu0 0
          %851 = vperm.xlu0 %850, %v612
          %v852 = vpop.permute.xlu0 %851
          %855 = vset.pattern.permute.xlu0 0
          %856 = vperm.xlu0 %855, %v613
          %v857 = vpop.permute.xlu0 %856
          %860 = vset.pattern.permute.xlu0 0
          %861 = vperm.xlu0 %860, %v614
          %v862 = vpop.permute.xlu0 %861
          %v864 = vmul.f32 %v787, %v722
          %v865 = vmul.f32 %v792, %v725
          %v866 = vmul.f32 %v797, %v730
          %v867 = vmul.f32 %v802, %v733
          %v868 = vmul.f32 %v807, %v738
          %v869 = vmul.f32 %v812, %v741
          %v870 = vmul.f32 %v817, %v746
          %v871 = vmul.f32 %v822, %v749
          %v872 = vmul.f32 %v827, %v754
          %v873 = vmul.f32 %v832, %v757
          %v874 = vmul.f32 %v837, %v762
          %v875 = vmul.f32 %v842, %v765
          %v876 = vmul.f32 %v847, %v770
          %v877 = vmul.f32 %v852, %v773
          %v878 = vmul.f32 %v857, %v778
          %v879 = vmul.f32 %v862, %v781
          %s880 = sshra.s32 %s510, 4
          %s881 = sand.u32 %s510, 15
          %s882 = smul.addr %s880, 8
          %s883 = scalar_lea.vmem [#allocation2], %s882
          %v884 = vld [vmem:[%s883] sm:$0xff]
          %v885 = vld [vmem:[%s883 + $0x8] sm:$0xff]
          %v886 = vld [vmem:[%s883 + $0x10] sm:$0xff]
          %v887 = vld [vmem:[%s883 + $0x18] sm:$0xff]
          %v888 = vld [vmem:[%s883 + $0x20] sm:$0xff]
          %v889 = vld [vmem:[%s883 + $0x28] sm:$0xff]
          %v890 = vld [vmem:[%s883 + $0x30] sm:$0xff]
          %v891 = vld [vmem:[%s883 + $0x38] sm:$0xff]
          %v892 = vpack.c.bf16 %v865, %v864
          %v893 = vpack.c.bf16 %v867, %v866
          %v894 = vpack.c.bf16 %v869, %v868
          %v895 = vpack.c.bf16 %v871, %v870
          %v896 = vpack.c.bf16 %v873, %v872
          %v897 = vpack.c.bf16 %v875, %v874
          %v898 = vpack.c.bf16 %v877, %v876
          %v899 = vpack.c.bf16 %v879, %v878
          %v900 = vld [vmem:[%s418] sm:$0xf]
          %v901 = vld [vmem:[%s418 + $0x4] sm:$0xf]
          %v902 = vld [vmem:[%s418 + $0x8] sm:$0xf]
          %v903 = vld [vmem:[%s418 + $0xc] sm:$0xf]
          %v904 = vld [vmem:[%s418 + $0x10] sm:$0xf]
          %v905 = vld [vmem:[%s418 + $0x14] sm:$0xf]
          %v906 = vld [vmem:[%s418 + $0x18] sm:$0xf]
          %v907 = vld [vmem:[%s418 + $0x1c] sm:$0xf]
          %v908 = vld [vmem:[%s418 + $0x20] sm:$0xf]
          %v909 = vld [vmem:[%s418 + $0x24] sm:$0xf]
          %v910 = vld [vmem:[%s418 + $0x28] sm:$0xf]
          %v911 = vld [vmem:[%s418 + $0x2c] sm:$0xf]
          %v912 = vld [vmem:[%s418 + $0x30] sm:$0xf]
          %v913 = vld [vmem:[%s418 + $0x34] sm:$0xf]
          %v914 = vld [vmem:[%s418 + $0x38] sm:$0xf]
          %v915 = vld [vmem:[%s418 + $0x3c] sm:$0xf]
          %v916 = vld [vmem:[%s427] sm:$0xf]
          %v917 = vld [vmem:[%s427 + $0x4] sm:$0xf]
          %v918 = vld [vmem:[%s427 + $0x8] sm:$0xf]
          %v919 = vld [vmem:[%s427 + $0xc] sm:$0xf]
          %v920 = vld [vmem:[%s427 + $0x10] sm:$0xf]
          %v921 = vld [vmem:[%s427 + $0x14] sm:$0xf]
          %v922 = vld [vmem:[%s427 + $0x18] sm:$0xf]
          %v923 = vld [vmem:[%s427 + $0x1c] sm:$0xf]
          %v924 = vld [vmem:[%s427 + $0x20] sm:$0xf]
          %v925 = vld [vmem:[%s427 + $0x24] sm:$0xf]
          %v926 = vld [vmem:[%s427 + $0x28] sm:$0xf]
          %v927 = vld [vmem:[%s427 + $0x2c] sm:$0xf]
          %v928 = vld [vmem:[%s427 + $0x30] sm:$0xf]
          %v929 = vld [vmem:[%s427 + $0x34] sm:$0xf]
          %v930 = vld [vmem:[%s427 + $0x38] sm:$0xf]
          %v931 = vld [vmem:[%s427 + $0x3c] sm:$0xf]
          %v948 = vunpack.c.l.b16 %v916
          %v949 = vunpack.c.l.b16 %v917
          %v950 = vunpack.c.l.b16 %v918
          %v951 = vunpack.c.l.b16 %v919
          %v952 = vunpack.c.l.b16 %v920
          %v953 = vunpack.c.l.b16 %v921
          %v954 = vunpack.c.l.b16 %v922
          %v955 = vunpack.c.l.b16 %v923
          %v956 = vunpack.c.l.b16 %v924
          %v957 = vunpack.c.l.b16 %v925
          %v958 = vunpack.c.l.b16 %v926
          %v959 = vunpack.c.l.b16 %v927
          %v960 = vunpack.c.l.b16 %v928
          %v961 = vunpack.c.l.b16 %v929
          %v962 = vunpack.c.l.b16 %v930
          %v963 = vunpack.c.l.b16 %v931
          %v964 = vpack.c.b16 %v949, %v948
          %v965 = vpack.c.b16 %v951, %v950
          %v966 = vpack.c.b16 %v953, %v952
          %v967 = vpack.c.b16 %v955, %v954
          %v968 = vpack.c.b16 %v957, %v956
          %v969 = vpack.c.b16 %v959, %v958
          %v970 = vpack.c.b16 %v961, %v960
          %v971 = vpack.c.b16 %v963, %v962
          %980 = vmatprep.subr.bf16.mxu0 0
          %981 = vmatpush1.bf16.msra.mxu0 %v964
          %982 = vmatprep.subr.bf16.mxu0 0
          %983 = vmatpush1.bf16.msra.mxu0 %v965
          %984 = vmatprep.subr.bf16.mxu0 0
          %985 = vmatpush1.bf16.msra.mxu0 %v966
          %986 = vmatprep.subr.bf16.mxu0 0
          %987 = vmatpush1.bf16.msra.mxu0 %v967
          %988 = vmatprep.subr.bf16.mxu0 0
          %989 = vmatpush1.bf16.msra.mxu0 %v968
          %990 = vmatprep.subr.bf16.mxu0 0
          %991 = vmatpush1.bf16.msra.mxu0 %v969
          %992 = vmatprep.subr.bf16.mxu0 0
          %993 = vmatpush1.bf16.msra.mxu0 %v970
          %994 = vmatprep.subr.bf16.mxu0 0
          %995 = vmatpush1.bf16.msra.mxu0 %v971
          %996 = vmatprep.subr.bf16.mxu0 0
          %997 = vmatpush1.bf16.msra.mxu0 0
          %998 = vmatprep.subr.bf16.mxu0 0
          %999 = vmatpush1.bf16.msra.mxu0 0
          %1000 = vmatprep.subr.bf16.mxu0 0
          %1001 = vmatpush1.bf16.msra.mxu0 0
          %1002 = vmatprep.subr.bf16.mxu0 0
          %1003 = vmatpush1.bf16.msra.mxu0 0
          %1004 = vmatprep.subr.bf16.mxu0 0
          %1005 = vmatpush1.bf16.msra.mxu0 0
          %1006 = vmatprep.subr.bf16.mxu0 0
          %1007 = vmatpush1.bf16.msra.mxu0 0
          %1008 = vmatprep.subr.bf16.mxu0 0
          %1009 = vmatpush1.bf16.msra.mxu0 0
          %1010 = vmatprep.subr.bf16.mxu0 0
          %1011 = vmatpush1.bf16.msra.mxu0 0
          %1012 = vmatprep.mubr.bf16.mxu0 0
          %1013 = vmatmul.mubr.bf16.gmra.mrb[0].mxu0 %v884
          %v1014 = vpop.f32.mrb[0].mxu0
          %v1015 = vadd.f32 0.0, %v1014
          %v1016 = vpop.f32.mrb[0].mxu0
          %v1017 = vpop.f32.mrb[0].mxu0
          %v1018 = vadd.f32 0.0, %v1017
          %v1019 = vpop.f32.mrb[0].mxu0
          %1020 = vmatprep.mubr.bf16.mxu0 0
          %1021 = vmatmul.mubr.bf16.gmra.mrb[0].mxu0 %v885
          %v1022 = vpop.f32.mrb[0].mxu0
          %v1023 = vadd.f32 0.0, %v1022
          %v1024 = vpop.f32.mrb[0].mxu0
          %v1025 = vpop.f32.mrb[0].mxu0
          %v1026 = vadd.f32 0.0, %v1025
          %v1027 = vpop.f32.mrb[0].mxu0
          %1028 = vmatprep.mubr.bf16.mxu0 0
          %1029 = vmatmul.mubr.bf16.gmra.mrb[0].mxu0 %v886
          %v1030 = vpop.f32.mrb[0].mxu0
          %v1031 = vadd.f32 0.0, %v1030
          %v1032 = vpop.f32.mrb[0].mxu0
          %v1033 = vpop.f32.mrb[0].mxu0
          %v1034 = vadd.f32 0.0, %v1033
          %v1035 = vpop.f32.mrb[0].mxu0
          %1036 = vmatprep.mubr.bf16.mxu0 0
          %1037 = vmatmul.mubr.bf16.gmra.mrb[0].mxu0 %v887
          %v1038 = vpop.f32.mrb[0].mxu0
          %v1039 = vadd.f32 0.0, %v1038
          %v1040 = vpop.f32.mrb[0].mxu0
          %v1041 = vpop.f32.mrb[0].mxu0
          %v1042 = vadd.f32 0.0, %v1041
          %v1043 = vpop.f32.mrb[0].mxu0
          %1044 = vmatprep.mubr.bf16.mxu0 0
          %1045 = vmatmul.mubr.bf16.gmra.mrb[0].mxu0 %v888
          %v1046 = vpop.f32.mrb[0].mxu0
          %v1047 = vadd.f32 0.0, %v1046
          %v1048 = vpop.f32.mrb[0].mxu0
          %v1049 = vpop.f32.mrb[0].mxu0
          %v1050 = vadd.f32 0.0, %v1049
          %v1051 = vpop.f32.mrb[0].mxu0
          %1052 = vmatprep.mubr.bf16.mxu0 0
          %1053 = vmatmul.mubr.bf16.gmra.mrb[0].mxu0 %v889
          %v1054 = vpop.f32.mrb[0].mxu0
          %v1055 = vadd.f32 0.0, %v1054
          %v1056 = vpop.f32.mrb[0].mxu0
          %v1057 = vpop.f32.mrb[0].mxu0
          %v1058 = vadd.f32 0.0, %v1057
          %v1059 = vpop.f32.mrb[0].mxu0
          %1060 = vmatprep.mubr.bf16.mxu0 0
          %1061 = vmatmul.mubr.bf16.gmra.mrb[0].mxu0 %v890
          %v1062 = vpop.f32.mrb[0].mxu0
          %v1063 = vadd.f32 0.0, %v1062
          %v1064 = vpop.f32.mrb[0].mxu0
          %v1065 = vpop.f32.mrb[0].mxu0
          %v1066 = vadd.f32 0.0, %v1065
          %v1067 = vpop.f32.mrb[0].mxu0
          %1068 = vmatprep.mubr.bf16.mxu0 0
          %1069 = vmatmul.mubr.bf16.gmra.mrb[0].mxu0 %v891
          %v1070 = vpop.f32.mrb[0].mxu0
          %v1071 = vadd.f32 0.0, %v1070
          %v1072 = vpop.f32.mrb[0].mxu0
          %v1073 = vpop.f32.mrb[0].mxu0
          %v1074 = vadd.f32 0.0, %v1073
          %v1075 = vpop.f32.mrb[0].mxu0
          %1076 = vdwg.mxu0
          %v1093 = vunpack.c.l.b16 %v900
          %v1094 = vunpack.c.l.b16 %v901
          %v1095 = vunpack.c.l.b16 %v902
          %v1096 = vunpack.c.l.b16 %v903
          %v1097 = vunpack.c.l.b16 %v904
          %v1098 = vunpack.c.l.b16 %v905
          %v1099 = vunpack.c.l.b16 %v906
          %v1100 = vunpack.c.l.b16 %v907
          %v1101 = vunpack.c.l.b16 %v908
          %v1102 = vunpack.c.l.b16 %v909
          %v1103 = vunpack.c.l.b16 %v910
          %v1104 = vunpack.c.l.b16 %v911
          %v1105 = vunpack.c.l.b16 %v912
          %v1106 = vunpack.c.l.b16 %v913
          %v1107 = vunpack.c.l.b16 %v914
          %v1108 = vunpack.c.l.b16 %v915
          %v1109 = vpack.c.b16 %v1094, %v1093
          %v1110 = vpack.c.b16 %v1096, %v1095
          %v1111 = vpack.c.b16 %v1098, %v1097
          %v1112 = vpack.c.b16 %v1100, %v1099
          %v1113 = vpack.c.b16 %v1102, %v1101
          %v1114 = vpack.c.b16 %v1104, %v1103
          %v1115 = vpack.c.b16 %v1106, %v1105
          %v1116 = vpack.c.b16 %v1108, %v1107
          %1125 = vmatprep.subr.bf16.mxu0 0
          %1126 = vmatpush1.bf16.msra.mxu0 %v1109
          %1127 = vmatprep.subr.bf16.mxu0 0
          %1128 = vmatpush1.bf16.msra.mxu0 %v1110
          %1129 = vmatprep.subr.bf16.mxu0 0
          %1130 = vmatpush1.bf16.msra.mxu0 %v1111
          %1131 = vmatprep.subr.bf16.mxu0 0
          %1132 = vmatpush1.bf16.msra.mxu0 %v1112
          %1133 = vmatprep.subr.bf16.mxu0 0
          %1134 = vmatpush1.bf16.msra.mxu0 %v1113
          %1135 = vmatprep.subr.bf16.mxu0 0
          %1136 = vmatpush1.bf16.msra.mxu0 %v1114
          %1137 = vmatprep.subr.bf16.mxu0 0
          %1138 = vmatpush1.bf16.msra.mxu0 %v1115
          %1139 = vmatprep.subr.bf16.mxu0 0
          %1140 = vmatpush1.bf16.msra.mxu0 %v1116
          %1141 = vmatprep.subr.bf16.mxu0 0
          %1142 = vmatpush1.bf16.msra.mxu0 0
          %1143 = vmatprep.subr.bf16.mxu0 0
          %1144 = vmatpush1.bf16.msra.mxu0 0
          %1145 = vmatprep.subr.bf16.mxu0 0
          %1146 = vmatpush1.bf16.msra.mxu0 0
          %1147 = vmatprep.subr.bf16.mxu0 0
          %1148 = vmatpush1.bf16.msra.mxu0 0
          %1149 = vmatprep.subr.bf16.mxu0 0
          %1150 = vmatpush1.bf16.msra.mxu0 0
          %1151 = vmatprep.subr.bf16.mxu0 0
          %1152 = vmatpush1.bf16.msra.mxu0 0
          %1153 = vmatprep.subr.bf16.mxu0 0
          %1154 = vmatpush1.bf16.msra.mxu0 0
          %1155 = vmatprep.subr.bf16.mxu0 0
          %1156 = vmatpush1.bf16.msra.mxu0 0
          %1157 = vmatprep.mubr.bf16.mxu0 0
          %1158 = vmatmul.mubr.bf16.gmra.mrb[0].mxu0 %v892
          %v1159 = vpop.f32.mrb[0].mxu0
          %v1160 = vadd.f32 %v1015, %v1159
          %v1161 = vpop.f32.mrb[0].mxu0
          %v1162 = vpop.f32.mrb[0].mxu0
          %v1163 = vadd.f32 %v1018, %v1162
          %v1164 = vpop.f32.mrb[0].mxu0
          %1165 = vmatprep.mubr.bf16.mxu0 0
          %1166 = vmatmul.mubr.bf16.gmra.mrb[0].mxu0 %v893
          %v1167 = vpop.f32.mrb[0].mxu0
          %v1168 = vadd.f32 %v1023, %v1167
          %v1169 = vpop.f32.mrb[0].mxu0
          %v1170 = vpop.f32.mrb[0].mxu0
          %v1171 = vadd.f32 %v1026, %v1170
          %v1172 = vpop.f32.mrb[0].mxu0
          %1173 = vmatprep.mubr.bf16.mxu0 0
          %1174 = vmatmul.mubr.bf16.gmra.mrb[0].mxu0 %v894
          %v1175 = vpop.f32.mrb[0].mxu0
          %v1176 = vadd.f32 %v1031, %v1175
          %v1177 = vpop.f32.mrb[0].mxu0
          %v1178 = vpop.f32.mrb[0].mxu0
          %v1179 = vadd.f32 %v1034, %v1178
          %v1180 = vpop.f32.mrb[0].mxu0
          %1181 = vmatprep.mubr.bf16.mxu0 0
          %1182 = vmatmul.mubr.bf16.gmra.mrb[0].mxu0 %v895
          %v1183 = vpop.f32.mrb[0].mxu0
          %v1184 = vadd.f32 %v1039, %v1183
          %v1185 = vpop.f32.mrb[0].mxu0
          %v1186 = vpop.f32.mrb[0].mxu0
          %v1187 = vadd.f32 %v1042, %v1186
          %v1188 = vpop.f32.mrb[0].mxu0
          %1189 = vmatprep.mubr.bf16.mxu0 0
          %1190 = vmatmul.mubr.bf16.gmra.mrb[0].mxu0 %v896
          %v1191 = vpop.f32.mrb[0].mxu0
          %v1192 = vadd.f32 %v1047, %v1191
          %v1193 = vpop.f32.mrb[0].mxu0
          %v1194 = vpop.f32.mrb[0].mxu0
          %v1195 = vadd.f32 %v1050, %v1194
          %v1196 = vpop.f32.mrb[0].mxu0
          %1197 = vmatprep.mubr.bf16.mxu0 0
          %1198 = vmatmul.mubr.bf16.gmra.mrb[0].mxu0 %v897
          %v1199 = vpop.f32.mrb[0].mxu0
          %v1200 = vadd.f32 %v1055, %v1199
          %v1201 = vpop.f32.mrb[0].mxu0
          %v1202 = vpop.f32.mrb[0].mxu0
          %v1203 = vadd.f32 %v1058, %v1202
          %v1204 = vpop.f32.mrb[0].mxu0
          %1205 = vmatprep.mubr.bf16.mxu0 0
          %1206 = vmatmul.mubr.bf16.gmra.mrb[0].mxu0 %v898
          %v1207 = vpop.f32.mrb[0].mxu0
          %v1208 = vadd.f32 %v1063, %v1207
          %v1209 = vpop.f32.mrb[0].mxu0
          %v1210 = vpop.f32.mrb[0].mxu0
          %v1211 = vadd.f32 %v1066, %v1210
          %v1212 = vpop.f32.mrb[0].mxu0
          %1213 = vmatprep.mubr.bf16.mxu0 0
          %1214 = vmatmul.mubr.bf16.gmra.mrb[0].mxu0 %v899
          %v1215 = vpop.f32.mrb[0].mxu0
          %v1216 = vadd.f32 %v1071, %v1215
          %v1217 = vpop.f32.mrb[0].mxu0
          %v1218 = vpop.f32.mrb[0].mxu0
          %v1219 = vadd.f32 %v1074, %v1218
          %v1220 = vpop.f32.mrb[0].mxu0
          %1221 = vdwg.mxu0
          %v1222 = vld [vmem:[%s507] sm:$0x1]
          %v1224 = vlaneseq
          %v1225 = vshrl.u32 %v1224, 7
          %v1226 = vsub.s32 0, %v1225
          %v1227 = vrot.slane %v1222, %v1226
          %v1229 = vadd.f32 %v1160, %v1227
          %v1230 = vadd.f32 %v1163, %v1227
          %v1231 = vadd.f32 %v1168, %v1227
          %v1232 = vadd.f32 %v1171, %v1227
          %v1233 = vadd.f32 %v1176, %v1227
          %v1234 = vadd.f32 %v1179, %v1227
          %v1235 = vadd.f32 %v1184, %v1227
          %v1236 = vadd.f32 %v1187, %v1227
          %v1237 = vadd.f32 %v1192, %v1227
          %v1238 = vadd.f32 %v1195, %v1227
          %v1239 = vadd.f32 %v1200, %v1227
          %v1240 = vadd.f32 %v1203, %v1227
          %v1241 = vadd.f32 %v1208, %v1227
          %v1242 = vadd.f32 %v1211, %v1227
          %v1243 = vadd.f32 %v1216, %v1227
          %v1244 = vadd.f32 %v1219, %v1227
          %v1245 = vmax.f32 %v1229, 0.0
          %v1246 = vmax.f32 %v1230, 0.0
          %v1247 = vmax.f32 %v1231, 0.0
          %v1248 = vmax.f32 %v1232, 0.0
          %v1249 = vmax.f32 %v1233, 0.0
          %v1250 = vmax.f32 %v1234, 0.0
          %v1251 = vmax.f32 %v1235, 0.0
          %v1252 = vmax.f32 %v1236, 0.0
          %v1253 = vmax.f32 %v1237, 0.0
          %v1254 = vmax.f32 %v1238, 0.0
          %v1255 = vmax.f32 %v1239, 0.0
          %v1256 = vmax.f32 %v1240, 0.0
          %v1257 = vmax.f32 %v1241, 0.0
          %v1258 = vmax.f32 %v1242, 0.0
          %v1259 = vmax.f32 %v1243, 0.0
          %v1260 = vmax.f32 %v1244, 0.0
          %v1261 = vpack.c.bf16 %v1246, %v1245
          %v1262 = vpack.c.bf16 %v1248, %v1247
          %v1263 = vpack.c.bf16 %v1250, %v1249
          %v1264 = vpack.c.bf16 %v1252, %v1251
          %v1265 = vpack.c.bf16 %v1254, %v1253
          %v1266 = vpack.c.bf16 %v1256, %v1255
          %v1267 = vpack.c.bf16 %v1258, %v1257
          %v1268 = vpack.c.bf16 %v1260, %v1259
          %s1269 = smul.addr %s880, 8
          %s1270 = scalar_lea.vmem [#allocation3], %s1269
          %1271 = vst [vmem:[%s1270] sm:$0xff] %v1261
          %1272 = vst [vmem:[%s1270 + $0x8] sm:$0xff] %v1262
          %1273 = vst [vmem:[%s1270 + $0x10] sm:$0xff] %v1263
          %1274 = vst [vmem:[%s1270 + $0x18] sm:$0xff] %v1264
          %1275 = vst [vmem:[%s1270 + $0x20] sm:$0xff] %v1265
          %1276 = vst [vmem:[%s1270 + $0x28] sm:$0xff] %v1266
          %1277 = vst [vmem:[%s1270 + $0x30] sm:$0xff] %v1267
          %1278 = vst [vmem:[%s1270 + $0x38] sm:$0xff] %v1268
          %v1279 = vld [vmem:[%s440] sm:$0xf]
          %v1280 = vld [vmem:[%s440 + $0x4] sm:$0xf]
          %v1281 = vld [vmem:[%s440 + $0x8] sm:$0xf]
          %v1282 = vld [vmem:[%s440 + $0xc] sm:$0xf]
          %v1283 = vld [vmem:[%s440 + $0x10] sm:$0xf]
          %v1284 = vld [vmem:[%s440 + $0x14] sm:$0xf]
          %v1285 = vld [vmem:[%s440 + $0x18] sm:$0xf]
          %v1286 = vld [vmem:[%s440 + $0x1c] sm:$0xf]
          %v1287 = vld [vmem:[%s440 + $0x20] sm:$0xf]
          %v1288 = vld [vmem:[%s440 + $0x24] sm:$0xf]
          %v1289 = vld [vmem:[%s440 + $0x28] sm:$0xf]
          %v1290 = vld [vmem:[%s440 + $0x2c] sm:$0xf]
          %v1291 = vld [vmem:[%s440 + $0x30] sm:$0xf]
          %v1292 = vld [vmem:[%s440 + $0x34] sm:$0xf]
          %v1293 = vld [vmem:[%s440 + $0x38] sm:$0xf]
          %v1294 = vld [vmem:[%s440 + $0x3c] sm:$0xf]
          %v1311 = vunpack.c.l.b16 %v1279
          %v1312 = vunpack.c.l.b16 %v1280
          %v1313 = vunpack.c.l.b16 %v1281
          %v1314 = vunpack.c.l.b16 %v1282
          %v1315 = vunpack.c.l.b16 %v1283
          %v1316 = vunpack.c.l.b16 %v1284
          %v1317 = vunpack.c.l.b16 %v1285
          %v1318 = vunpack.c.l.b16 %v1286
          %v1319 = vunpack.c.l.b16 %v1287
          %v1320 = vunpack.c.l.b16 %v1288
          %v1321 = vunpack.c.l.b16 %v1289
          %v1322 = vunpack.c.l.b16 %v1290
          %v1323 = vunpack.c.l.b16 %v1291
          %v1324 = vunpack.c.l.b16 %v1292
          %v1325 = vunpack.c.l.b16 %v1293
          %v1326 = vunpack.c.l.b16 %v1294
          %v1327 = vpack.c.b16 %v1312, %v1311
          %v1328 = vpack.c.b16 %v1314, %v1313
          %v1329 = vpack.c.b16 %v1316, %v1315
          %v1330 = vpack.c.b16 %v1318, %v1317
          %v1331 = vpack.c.b16 %v1320, %v1319
          %v1332 = vpack.c.b16 %v1322, %v1321
          %v1333 = vpack.c.b16 %v1324, %v1323
          %v1334 = vpack.c.b16 %v1326, %v1325
          %1343 = vmatprep.subr.bf16.mxu0 0
          %1344 = vmatpush1.bf16.msra.mxu0 %v1327
          %1345 = vmatprep.subr.bf16.mxu0 0
          %1346 = vmatpush1.bf16.msra.mxu0 %v1328
          %1347 = vmatprep.subr.bf16.mxu0 0
          %1348 = vmatpush1.bf16.msra.mxu0 %v1329
          %1349 = vmatprep.subr.bf16.mxu0 0
          %1350 = vmatpush1.bf16.msra.mxu0 %v1330
          %1351 = vmatprep.subr.bf16.mxu0 0
          %1352 = vmatpush1.bf16.msra.mxu0 %v1331
          %1353 = vmatprep.subr.bf16.mxu0 0
          %1354 = vmatpush1.bf16.msra.mxu0 %v1332
          %1355 = vmatprep.subr.bf16.mxu0 0
          %1356 = vmatpush1.bf16.msra.mxu0 %v1333
          %1357 = vmatprep.subr.bf16.mxu0 0
          %1358 = vmatpush1.bf16.msra.mxu0 %v1334
          %1359 = vmatprep.subr.bf16.mxu0 0
          %1360 = vmatpush1.bf16.msra.mxu0 0
          %1361 = vmatprep.subr.bf16.mxu0 0
          %1362 = vmatpush1.bf16.msra.mxu0 0
          %1363 = vmatprep.subr.bf16.mxu0 0
          %1364 = vmatpush1.bf16.msra.mxu0 0
          %1365 = vmatprep.subr.bf16.mxu0 0
          %1366 = vmatpush1.bf16.msra.mxu0 0
          %1367 = vmatprep.subr.bf16.mxu0 0
          %1368 = vmatpush1.bf16.msra.mxu0 0
          %1369 = vmatprep.subr.bf16.mxu0 0
          %1370 = vmatpush1.bf16.msra.mxu0 0
          %1371 = vmatprep.subr.bf16.mxu0 0
          %1372 = vmatpush1.bf16.msra.mxu0 0
          %1373 = vmatprep.subr.bf16.mxu0 0
          %1374 = vmatpush1.bf16.msra.mxu0 0
          %1375 = vmatprep.mubr.bf16.mxu0 0
          %1376 = vmatmul.mubr.bf16.gmra.mrb[0].mxu0 %v1261
          %v1377 = vpop.f32.mrb[0].mxu0
          %v1378 = vadd.f32 0.0, %v1377
          %v1379 = vpop.f32.mrb[0].mxu0
          %v1380 = vpop.f32.mrb[0].mxu0
          %v1381 = vadd.f32 0.0, %v1380
          %v1382 = vpop.f32.mrb[0].mxu0
          %1383 = vmatprep.mubr.bf16.mxu0 0
          %1384 = vmatmul.mubr.bf16.gmra.mrb[0].mxu0 %v1262
          %v1385 = vpop.f32.mrb[0].mxu0
          %v1386 = vadd.f32 0.0, %v1385
          %v1387 = vpop.f32.mrb[0].mxu0
          %v1388 = vpop.f32.mrb[0].mxu0
          %v1389 = vadd.f32 0.0, %v1388
          %v1390 = vpop.f32.mrb[0].mxu0
          %1391 = vmatprep.mubr.bf16.mxu0 0
          %1392 = vmatmul.mubr.bf16.gmra.mrb[0].mxu0 %v1263
          %v1393 = vpop.f32.mrb[0].mxu0
          %v1394 = vadd.f32 0.0, %v1393
          %v1395 = vpop.f32.mrb[0].mxu0
          %v1396 = vpop.f32.mrb[0].mxu0
          %v1397 = vadd.f32 0.0, %v1396
          %v1398 = vpop.f32.mrb[0].mxu0
          %1399 = vmatprep.mubr.bf16.mxu0 0
          %1400 = vmatmul.mubr.bf16.gmra.mrb[0].mxu0 %v1264
          %v1401 = vpop.f32.mrb[0].mxu0
          %v1402 = vadd.f32 0.0, %v1401
          %v1403 = vpop.f32.mrb[0].mxu0
          %v1404 = vpop.f32.mrb[0].mxu0
          %v1405 = vadd.f32 0.0, %v1404
          %v1406 = vpop.f32.mrb[0].mxu0
          %1407 = vmatprep.mubr.bf16.mxu0 0
          %1408 = vmatmul.mubr.bf16.gmra.mrb[0].mxu0 %v1265
          %v1409 = vpop.f32.mrb[0].mxu0
          %v1410 = vadd.f32 0.0, %v1409
          %v1411 = vpop.f32.mrb[0].mxu0
          %v1412 = vpop.f32.mrb[0].mxu0
          %v1413 = vadd.f32 0.0, %v1412
          %v1414 = vpop.f32.mrb[0].mxu0
          %1415 = vmatprep.mubr.bf16.mxu0 0
          %1416 = vmatmul.mubr.bf16.gmra.mrb[0].mxu0 %v1266
          %v1417 = vpop.f32.mrb[0].mxu0
          %v1418 = vadd.f32 0.0, %v1417
          %v1419 = vpop.f32.mrb[0].mxu0
          %v1420 = vpop.f32.mrb[0].mxu0
          %v1421 = vadd.f32 0.0, %v1420
          %v1422 = vpop.f32.mrb[0].mxu0
          %1423 = vmatprep.mubr.bf16.mxu0 0
          %1424 = vmatmul.mubr.bf16.gmra.mrb[0].mxu0 %v1267
          %v1425 = vpop.f32.mrb[0].mxu0
          %v1426 = vadd.f32 0.0, %v1425
          %v1427 = vpop.f32.mrb[0].mxu0
          %v1428 = vpop.f32.mrb[0].mxu0
          %v1429 = vadd.f32 0.0, %v1428
          %v1430 = vpop.f32.mrb[0].mxu0
          %1431 = vmatprep.mubr.bf16.mxu0 0
          %1432 = vmatmul.mubr.bf16.gmra.mrb[0].mxu0 %v1268
          %v1433 = vpop.f32.mrb[0].mxu0
          %v1434 = vadd.f32 0.0, %v1433
          %v1435 = vpop.f32.mrb[0].mxu0
          %v1436 = vpop.f32.mrb[0].mxu0
          %v1437 = vadd.f32 0.0, %v1436
          %v1438 = vpop.f32.mrb[0].mxu0
          %1439 = vdwg.mxu0
          // Predicated region
          $region81: #{tpu_custom_call.1} parent=79 // pred_check
            %p1440 = pneg %p511
          $region82: #{tpu_custom_call.1} parent=79 // pred_check_branch
            %1442 = sbr.rel (%p1440) target = $region84
          $region83: #{tpu_custom_call.1} parent=79 // pred_region
            %v1443 = vld [vmem:[#allocation10] sm:$0xf]
            %v1444 = vld [vmem:[#allocation10 + $0x4] sm:$0xf]
            %v1445 = vld [vmem:[#allocation10 + $0x8] sm:$0xf]
            %v1446 = vld [vmem:[#allocation10 + $0xc] sm:$0xf]
            %v1447 = vld [vmem:[#allocation10 + $0x10] sm:$0xf]
            %v1448 = vld [vmem:[#allocation10 + $0x14] sm:$0xf]
            %v1449 = vld [vmem:[#allocation10 + $0x18] sm:$0xf]
            %v1450 = vld [vmem:[#allocation10 + $0x1c] sm:$0xf]
            %v1451 = vld [vmem:[#allocation10 + $0x20] sm:$0xf]
            %v1452 = vld [vmem:[#allocation10 + $0x24] sm:$0xf]
            %v1453 = vld [vmem:[#allocation10 + $0x28] sm:$0xf]
            %v1454 = vld [vmem:[#allocation10 + $0x2c] sm:$0xf]
            %v1455 = vld [vmem:[#allocation10 + $0x30] sm:$0xf]
            %v1456 = vld [vmem:[#allocation10 + $0x34] sm:$0xf]
            %v1457 = vld [vmem:[#allocation10 + $0x38] sm:$0xf]
            %v1458 = vld [vmem:[#allocation10 + $0x3c] sm:$0xf]
            %v1459 = vld [vmem:[%s8] sm:$0x1]
            %v1461 = vlaneseq
            %v1462 = vshrl.u32 %v1461, 7
            %v1463 = vsub.s32 0, %v1462
            %v1464 = vrot.slane %v1459, %v1463
            %v1482 = vunpack.c.l.b16 %v1443
            %v1483 = vunpack.c.l.b16 %v1444
            %v1484 = vunpack.c.l.b16 %v1445
            %v1485 = vunpack.c.l.b16 %v1446
            %v1486 = vunpack.c.l.b16 %v1447
            %v1487 = vunpack.c.l.b16 %v1448
            %v1488 = vunpack.c.l.b16 %v1449
            %v1489 = vunpack.c.l.b16 %v1450
            %v1490 = vunpack.c.l.b16 %v1451
            %v1491 = vunpack.c.l.b16 %v1452
            %v1492 = vunpack.c.l.b16 %v1453
            %v1493 = vunpack.c.l.b16 %v1454
            %v1494 = vunpack.c.l.b16 %v1455
            %v1495 = vunpack.c.l.b16 %v1456
            %v1496 = vunpack.c.l.b16 %v1457
            %v1497 = vunpack.c.l.b16 %v1458
            %v1498 = vpack.c.b16 %v1483, %v1482
            %v1499 = vpack.c.b16 %v1485, %v1484
            %v1500 = vpack.c.b16 %v1487, %v1486
            %v1501 = vpack.c.b16 %v1489, %v1488
            %v1502 = vpack.c.b16 %v1491, %v1490
            %v1503 = vpack.c.b16 %v1493, %v1492
            %v1504 = vpack.c.b16 %v1495, %v1494
            %v1505 = vpack.c.b16 %v1497, %v1496
            %1514 = vmatprep.subr.bf16.mxu0 0
            %1515 = vmatpush1.bf16.msra.mxu0 %v1498
            %1516 = vmatprep.subr.bf16.mxu0 0
            %1517 = vmatpush1.bf16.msra.mxu0 %v1499
            %1518 = vmatprep.subr.bf16.mxu0 0
            %1519 = vmatpush1.bf16.msra.mxu0 %v1500
            %1520 = vmatprep.subr.bf16.mxu0 0
            %1521 = vmatpush1.bf16.msra.mxu0 %v1501
            %1522 = vmatprep.subr.bf16.mxu0 0
            %1523 = vmatpush1.bf16.msra.mxu0 %v1502
            %1524 = vmatprep.subr.bf16.mxu0 0
            %1525 = vmatpush1.bf16.msra.mxu0 %v1503
            %1526 = vmatprep.subr.bf16.mxu0 0
            %1527 = vmatpush1.bf16.msra.mxu0 %v1504
            %1528 = vmatprep.subr.bf16.mxu0 0
            %1529 = vmatpush1.bf16.msra.mxu0 %v1505
            %1530 = vmatprep.subr.bf16.mxu0 0
            %1531 = vmatpush1.bf16.msra.mxu0 0
            %1532 = vmatprep.subr.bf16.mxu0 0
            %1533 = vmatpush1.bf16.msra.mxu0 0
            %1534 = vmatprep.subr.bf16.mxu0 0
            %1535 = vmatpush1.bf16.msra.mxu0 0
            %1536 = vmatprep.subr.bf16.mxu0 0
            %1537 = vmatpush1.bf16.msra.mxu0 0
            %1538 = vmatprep.subr.bf16.mxu0 0
            %1539 = vmatpush1.bf16.msra.mxu0 0
            %1540 = vmatprep.subr.bf16.mxu0 0
            %1541 = vmatpush1.bf16.msra.mxu0 0
            %1542 = vmatprep.subr.bf16.mxu0 0
            %1543 = vmatpush1.bf16.msra.mxu0 0
            %1544 = vmatprep.subr.bf16.mxu0 0
            %1545 = vmatpush1.bf16.msra.mxu0 0
            %1546 = vmatprep.mubr.bf16.mxu0 0
            %1547 = vmatmul.mubr.bf16.gmra.mrb[0].mxu0 %v884
            %v1548 = vpop.f32.mrb[0].mxu0
            %v1549 = vadd.f32 %v1464, %v1548
            %v1550 = vpop.f32.mrb[0].mxu0
            %v1551 = vpop.f32.mrb[0].mxu0
            %v1552 = vadd.f32 %v1464, %v1551
            %v1553 = vpop.f32.mrb[0].mxu0
            %1554 = vmatprep.mubr.bf16.mxu0 0
            %1555 = vmatmul.mubr.bf16.gmra.mrb[0].mxu0 %v885
            %v1556 = vpop.f32.mrb[0].mxu0
            %v1557 = vadd.f32 %v1464, %v1556
            %v1558 = vpop.f32.mrb[0].mxu0
            %v1559 = vpop.f32.mrb[0].mxu0
            %v1560 = vadd.f32 %v1464, %v1559
            %v1561 = vpop.f32.mrb[0].mxu0
            %1562 = vmatprep.mubr.bf16.mxu0 0
            %1563 = vmatmul.mubr.bf16.gmra.mrb[0].mxu0 %v886
            %v1564 = vpop.f32.mrb[0].mxu0
            %v1565 = vadd.f32 %v1464, %v1564
            %v1566 = vpop.f32.mrb[0].mxu0
            %v1567 = vpop.f32.mrb[0].mxu0
            %v1568 = vadd.f32 %v1464, %v1567
            %v1569 = vpop.f32.mrb[0].mxu0
            %1570 = vmatprep.mubr.bf16.mxu0 0
            %1571 = vmatmul.mubr.bf16.gmra.mrb[0].mxu0 %v887
            %v1572 = vpop.f32.mrb[0].mxu0
            %v1573 = vadd.f32 %v1464, %v1572
            %v1574 = vpop.f32.mrb[0].mxu0
            %v1575 = vpop.f32.mrb[0].mxu0
            %v1576 = vadd.f32 %v1464, %v1575
            %v1577 = vpop.f32.mrb[0].mxu0
            %1578 = vmatprep.mubr.bf16.mxu0 0
            %1579 = vmatmul.mubr.bf16.gmra.mrb[0].mxu0 %v888
            %v1580 = vpop.f32.mrb[0].mxu0
            %v1581 = vadd.f32 %v1464, %v1580
            %v1582 = vpop.f32.mrb[0].mxu0
            %v1583 = vpop.f32.mrb[0].mxu0
            %v1584 = vadd.f32 %v1464, %v1583
            %v1585 = vpop.f32.mrb[0].mxu0
            %1586 = vmatprep.mubr.bf16.mxu0 0
            %1587 = vmatmul.mubr.bf16.gmra.mrb[0].mxu0 %v889
            %v1588 = vpop.f32.mrb[0].mxu0
            %v1589 = vadd.f32 %v1464, %v1588
            %v1590 = vpop.f32.mrb[0].mxu0
            %v1591 = vpop.f32.mrb[0].mxu0
            %v1592 = vadd.f32 %v1464, %v1591
            %v1593 = vpop.f32.mrb[0].mxu0
            %1594 = vmatprep.mubr.bf16.mxu0 0
            %1595 = vmatmul.mubr.bf16.gmra.mrb[0].mxu0 %v890
            %v1596 = vpop.f32.mrb[0].mxu0
            %v1597 = vadd.f32 %v1464, %v1596
            %v1598 = vpop.f32.mrb[0].mxu0
            %v1599 = vpop.f32.mrb[0].mxu0
            %v1600 = vadd.f32 %v1464, %v1599
            %v1601 = vpop.f32.mrb[0].mxu0
            %1602 = vmatprep.mubr.bf16.mxu0 0
            %1603 = vmatmul.mubr.bf16.gmra.mrb[0].mxu0 %v891
            %v1604 = vpop.f32.mrb[0].mxu0
            %v1605 = vadd.f32 %v1464, %v1604
            %v1606 = vpop.f32.mrb[0].mxu0
            %v1607 = vpop.f32.mrb[0].mxu0
            %v1608 = vadd.f32 %v1464, %v1607
            %v1609 = vpop.f32.mrb[0].mxu0
            %1610 = vdwg.mxu0
            %v1611 = vadd.f32 %v1549, %v1378
            %v1612 = vadd.f32 %v1552, %v1381
            %v1613 = vadd.f32 %v1557, %v1386
            %v1614 = vadd.f32 %v1560, %v1389
            %v1615 = vadd.f32 %v1565, %v1394
            %v1616 = vadd.f32 %v1568, %v1397
            %v1617 = vadd.f32 %v1573, %v1402
            %v1618 = vadd.f32 %v1576, %v1405
            %v1619 = vadd.f32 %v1581, %v1410
            %v1620 = vadd.f32 %v1584, %v1413
            %v1621 = vadd.f32 %v1589, %v1418
            %v1622 = vadd.f32 %v1592, %v1421
            %v1623 = vadd.f32 %v1597, %v1426
            %v1624 = vadd.f32 %v1600, %v1429
            %v1625 = vadd.f32 %v1605, %v1434
            %v1626 = vadd.f32 %v1608, %v1437
            %s1627 = scalar_lea.vmem [#allocation4], %s510
            %1628 = vst [vmem:[%s1627] sm:$0xff] %v1611
            %1629 = vst [vmem:[%s1627 + $0x8] sm:$0xff] %v1612
            %1630 = vst [vmem:[%s1627 + $0x10] sm:$0xff] %v1613
            %1631 = vst [vmem:[%s1627 + $0x18] sm:$0xff] %v1614
            %1632 = vst [vmem:[%s1627 + $0x20] sm:$0xff] %v1615
            %1633 = vst [vmem:[%s1627 + $0x28] sm:$0xff] %v1616
            %1634 = vst [vmem:[%s1627 + $0x30] sm:$0xff] %v1617
            %1635 = vst [vmem:[%s1627 + $0x38] sm:$0xff] %v1618
            %1636 = vst [vmem:[%s1627 + $0x40] sm:$0xff] %v1619
            %1637 = vst [vmem:[%s1627 + $0x48] sm:$0xff] %v1620
            %1638 = vst [vmem:[%s1627 + $0x50] sm:$0xff] %v1621
            %1639 = vst [vmem:[%s1627 + $0x58] sm:$0xff] %v1622
            %1640 = vst [vmem:[%s1627 + $0x60] sm:$0xff] %v1623
            %1641 = vst [vmem:[%s1627 + $0x68] sm:$0xff] %v1624
            %1642 = vst [vmem:[%s1627 + $0x70] sm:$0xff] %v1625
            %1643 = vst [vmem:[%s1627 + $0x78] sm:$0xff] %v1626
          $region84: #{tpu_custom_call.1} parent=79 // pred_fallthru
            _
          %p1644 = scmp.ne.s32.totalorder %s34, 0
          // Predicated region
          $region85: #{tpu_custom_call.1} parent=79 // pred_check
            %p1645 = pneg %p1644
          $region86: #{tpu_custom_call.1} parent=79 // pred_check_branch
            %1647 = sbr.rel (%p1645) target = $region88
          $region87: #{tpu_custom_call.1} parent=79 // pred_region
            %s1648 = scalar_lea.vmem [#allocation4], %s510
            %v1649 = vld [vmem:[%s1648] sm:$0xff]
            %v1650 = vld [vmem:[%s1648 + $0x8] sm:$0xff]
            %v1651 = vld [vmem:[%s1648 + $0x10] sm:$0xff]
            %v1652 = vld [vmem:[%s1648 + $0x18] sm:$0xff]
            %v1653 = vld [vmem:[%s1648 + $0x20] sm:$0xff]
            %v1654 = vld [vmem:[%s1648 + $0x28] sm:$0xff]
            %v1655 = vld [vmem:[%s1648 + $0x30] sm:$0xff]
            %v1656 = vld [vmem:[%s1648 + $0x38] sm:$0xff]
            %v1657 = vld [vmem:[%s1648 + $0x40] sm:$0xff]
            %v1658 = vld [vmem:[%s1648 + $0x48] sm:$0xff]
            %v1659 = vld [vmem:[%s1648 + $0x50] sm:$0xff]
            %v1660 = vld [vmem:[%s1648 + $0x58] sm:$0xff]
            %v1661 = vld [vmem:[%s1648 + $0x60] sm:$0xff]
            %v1662 = vld [vmem:[%s1648 + $0x68] sm:$0xff]
            %v1663 = vld [vmem:[%s1648 + $0x70] sm:$0xff]
            %v1664 = vld [vmem:[%s1648 + $0x78] sm:$0xff]
            %v1665 = vadd.f32 %v1649, %v1378
            %v1666 = vadd.f32 %v1650, %v1381
            %v1667 = vadd.f32 %v1651, %v1386
            %v1668 = vadd.f32 %v1652, %v1389
            %v1669 = vadd.f32 %v1653, %v1394
            %v1670 = vadd.f32 %v1654, %v1397
            %v1671 = vadd.f32 %v1655, %v1402
            %v1672 = vadd.f32 %v1656, %v1405
            %v1673 = vadd.f32 %v1657, %v1410
            %v1674 = vadd.f32 %v1658, %v1413
            %v1675 = vadd.f32 %v1659, %v1418
            %v1676 = vadd.f32 %v1660, %v1421
            %v1677 = vadd.f32 %v1661, %v1426
            %v1678 = vadd.f32 %v1662, %v1429
            %v1679 = vadd.f32 %v1663, %v1434
            %v1680 = vadd.f32 %v1664, %v1437
            %1681 = vst [vmem:[%s1648] sm:$0xff] %v1665
            %1682 = vst [vmem:[%s1648 + $0x8] sm:$0xff] %v1666
            %1683 = vst [vmem:[%s1648 + $0x10] sm:$0xff] %v1667
            %1684 = vst [vmem:[%s1648 + $0x18] sm:$0xff] %v1668
            %1685 = vst [vmem:[%s1648 + $0x20] sm:$0xff] %v1669
            %1686 = vst [vmem:[%s1648 + $0x28] sm:$0xff] %v1670
            %1687 = vst [vmem:[%s1648 + $0x30] sm:$0xff] %v1671
            %1688 = vst [vmem:[%s1648 + $0x38] sm:$0xff] %v1672
            %1689 = vst [vmem:[%s1648 + $0x40] sm:$0xff] %v1673
            %1690 = vst [vmem:[%s1648 + $0x48] sm:$0xff] %v1674
            %1691 = vst [vmem:[%s1648 + $0x50] sm:$0xff] %v1675
            %1692 = vst [vmem:[%s1648 + $0x58] sm:$0xff] %v1676
            %1693 = vst [vmem:[%s1648 + $0x60] sm:$0xff] %v1677
            %1694 = vst [vmem:[%s1648 + $0x68] sm:$0xff] %v1678
            %1695 = vst [vmem:[%s1648 + $0x70] sm:$0xff] %v1679
            %1696 = vst [vmem:[%s1648 + $0x78] sm:$0xff] %v1680
          $region88: #{tpu_custom_call.1} parent=79 // pred_fallthru
            _
          %s1697 = scalar_lea.vmem [#allocation4], %s510
          %v1698 = vld [vmem:[%s1697] sm:$0xff]
          %v1699 = vld [vmem:[%s1697 + $0x8] sm:$0xff]
          %v1700 = vld [vmem:[%s1697 + $0x10] sm:$0xff]
          %v1701 = vld [vmem:[%s1697 + $0x18] sm:$0xff]
          %v1702 = vld [vmem:[%s1697 + $0x20] sm:$0xff]
          %v1703 = vld [vmem:[%s1697 + $0x28] sm:$0xff]
          %v1704 = vld [vmem:[%s1697 + $0x30] sm:$0xff]
          %v1705 = vld [vmem:[%s1697 + $0x38] sm:$0xff]
          %v1706 = vld [vmem:[%s1697 + $0x40] sm:$0xff]
          %v1707 = vld [vmem:[%s1697 + $0x48] sm:$0xff]
          %v1708 = vld [vmem:[%s1697 + $0x50] sm:$0xff]
          %v1709 = vld [vmem:[%s1697 + $0x58] sm:$0xff]
          %v1710 = vld [vmem:[%s1697 + $0x60] sm:$0xff]
          %v1711 = vld [vmem:[%s1697 + $0x68] sm:$0xff]
          %v1712 = vld [vmem:[%s1697 + $0x70] sm:$0xff]
          %v1713 = vld [vmem:[%s1697 + $0x78] sm:$0xff]
          %1714 = vst [vmem:[#allocation13] sm:$0xff] %v1698
          %1715 = vst [vmem:[#allocation13 + $0x8] sm:$0xff] %v1699
          %1716 = vst [vmem:[#allocation13 + $0x10] sm:$0xff] %v1700
          %1717 = vst [vmem:[#allocation13 + $0x18] sm:$0xff] %v1701
          %1718 = vst [vmem:[#allocation13 + $0x20] sm:$0xff] %v1702
          %1719 = vst [vmem:[#allocation13 + $0x28] sm:$0xff] %v1703
          %1720 = vst [vmem:[#allocation13 + $0x30] sm:$0xff] %v1704
          %1721 = vst [vmem:[#allocation13 + $0x38] sm:$0xff] %v1705
          %1722 = vst [vmem:[#allocation13 + $0x40] sm:$0xff] %v1706
          %1723 = vst [vmem:[#allocation13 + $0x48] sm:$0xff] %v1707
          %1724 = vst [vmem:[#allocation13 + $0x50] sm:$0xff] %v1708
          %1725 = vst [vmem:[#allocation13 + $0x58] sm:$0xff] %v1709
          %1726 = vst [vmem:[#allocation13 + $0x60] sm:$0xff] %v1710
          %1727 = vst [vmem:[#allocation13 + $0x68] sm:$0xff] %v1711
          %1728 = vst [vmem:[#allocation13 + $0x70] sm:$0xff] %v1712
          %1729 = vst [vmem:[#allocation13 + $0x78] sm:$0xff] %v1713
        $region80: #{tpu_custom_call.1} parent=55 // pred_fallthru
          _
        %p1730 = scmp.ne.s32.totalorder %s594, 0
        // Predicated region
        $region89: #{tpu_custom_call.1} parent=55 // pred_check
          %p1731 = pneg %p1730
        $region90: #{tpu_custom_call.1} parent=55 // pred_check_branch
          %1733 = sbr.rel (%p1731) target = $region92
        $region91: #{tpu_custom_call.1} parent=55 // pred_region
          %v1734 = vld [vmem:[%s503] sm:$0xff]
          %v1735 = vld [vmem:[%s503 + $0x8] sm:$0xff]
          %v1736 = vld [vmem:[%s503 + $0x10] sm:$0xff]
          %v1737 = vld [vmem:[%s503 + $0x18] sm:$0xff]
          %v1738 = vld [vmem:[%s503 + $0x20] sm:$0xff]
          %v1739 = vld [vmem:[%s503 + $0x28] sm:$0xff]
          %v1740 = vld [vmem:[%s503 + $0x30] sm:$0xff]
          %v1741 = vld [vmem:[%s503 + $0x38] sm:$0xff]
          %v1742 = vld [vmem:[%s503 + $0x40] sm:$0xff]
          %v1743 = vld [vmem:[%s503 + $0x48] sm:$0xff]
          %v1744 = vld [vmem:[%s503 + $0x50] sm:$0xff]
          %v1745 = vld [vmem:[%s503 + $0x58] sm:$0xff]
          %v1746 = vld [vmem:[%s503 + $0x60] sm:$0xff]
          %v1747 = vld [vmem:[%s503 + $0x68] sm:$0xff]
          %v1748 = vld [vmem:[%s503 + $0x70] sm:$0xff]
          %v1749 = vld [vmem:[%s503 + $0x78] sm:$0xff]
          %v1750 = vld [vmem:[%s497] sm:$0xf]
          %v1751 = vld [vmem:[%s497 + $0x4] sm:$0xf]
          %v1752 = vld [vmem:[%s497 + $0x8] sm:$0xf]
          %v1753 = vld [vmem:[%s497 + $0xc] sm:$0xf]
          %v1754 = vld [vmem:[%s497 + $0x10] sm:$0xf]
          %v1755 = vld [vmem:[%s497 + $0x14] sm:$0xf]
          %v1756 = vld [vmem:[%s497 + $0x18] sm:$0xf]
          %v1757 = vld [vmem:[%s497 + $0x1c] sm:$0xf]
          %v1758 = vld [vmem:[%s497 + $0x20] sm:$0xf]
          %v1759 = vld [vmem:[%s497 + $0x24] sm:$0xf]
          %v1760 = vld [vmem:[%s497 + $0x28] sm:$0xf]
          %v1761 = vld [vmem:[%s497 + $0x2c] sm:$0xf]
          %v1762 = vld [vmem:[%s497 + $0x30] sm:$0xf]
          %v1763 = vld [vmem:[%s497 + $0x34] sm:$0xf]
          %v1764 = vld [vmem:[%s497 + $0x38] sm:$0xf]
          %v1765 = vld [vmem:[%s497 + $0x3c] sm:$0xf]
          %v1766 = vld [vmem:[#allocation3] sm:$0xff]
          %v1767 = vld [vmem:[#allocation3 + $0x8] sm:$0xff]
          %v1768 = vld [vmem:[#allocation3 + $0x10] sm:$0xff]
          %v1769 = vld [vmem:[#allocation3 + $0x18] sm:$0xff]
          %v1770 = vld [vmem:[#allocation3 + $0x20] sm:$0xff]
          %v1771 = vld [vmem:[#allocation3 + $0x28] sm:$0xff]
          %v1772 = vld [vmem:[#allocation3 + $0x30] sm:$0xff]
          %v1773 = vld [vmem:[#allocation3 + $0x38] sm:$0xff]
          %v1790 = vunpack.c.l.b16 %v1750
          %v1791 = vunpack.c.l.b16 %v1751
          %v1792 = vunpack.c.l.b16 %v1752
          %v1793 = vunpack.c.l.b16 %v1753
          %v1794 = vunpack.c.l.b16 %v1754
          %v1795 = vunpack.c.l.b16 %v1755
          %v1796 = vunpack.c.l.b16 %v1756
          %v1797 = vunpack.c.l.b16 %v1757
          %v1798 = vunpack.c.l.b16 %v1758
          %v1799 = vunpack.c.l.b16 %v1759
          %v1800 = vunpack.c.l.b16 %v1760
          %v1801 = vunpack.c.l.b16 %v1761
          %v1802 = vunpack.c.l.b16 %v1762
          %v1803 = vunpack.c.l.b16 %v1763
          %v1804 = vunpack.c.l.b16 %v1764
          %v1805 = vunpack.c.l.b16 %v1765
          %v1806 = vpack.c.b16 %v1791, %v1790
          %v1807 = vpack.c.b16 %v1793, %v1792
          %v1808 = vpack.c.b16 %v1795, %v1794
          %v1809 = vpack.c.b16 %v1797, %v1796
          %v1810 = vpack.c.b16 %v1799, %v1798
          %v1811 = vpack.c.b16 %v1801, %v1800
          %v1812 = vpack.c.b16 %v1803, %v1802
          %v1813 = vpack.c.b16 %v1805, %v1804
          %1822 = vmatprep.subr.bf16.mxu0 0
          %1823 = vmatpush1.bf16.msra.mxu0 %v1766
          %1824 = vmatprep.subr.bf16.mxu0 0
          %1825 = vmatpush1.bf16.msra.mxu0 %v1767
          %1826 = vmatprep.subr.bf16.mxu0 0
          %1827 = vmatpush1.bf16.msra.mxu0 %v1768
          %1828 = vmatprep.subr.bf16.mxu0 0
          %1829 = vmatpush1.bf16.msra.mxu0 %v1769
          %1830 = vmatprep.subr.bf16.mxu0 0
          %1831 = vmatpush1.bf16.msra.mxu0 %v1770
          %1832 = vmatprep.subr.bf16.mxu0 0
          %1833 = vmatpush1.bf16.msra.mxu0 %v1771
          %1834 = vmatprep.subr.bf16.mxu0 0
          %1835 = vmatpush1.bf16.msra.mxu0 %v1772
          %1836 = vmatprep.subr.bf16.mxu0 0
          %1837 = vmatpush1.bf16.msra.mxu0 %v1773
          %1838 = vmatprep.subr.bf16.mxu0 0
          %1839 = vmatpush1.bf16.msra.mxu0 0
          %1840 = vmatprep.subr.bf16.mxu0 0
          %1841 = vmatpush1.bf16.msra.mxu0 0
          %1842 = vmatprep.subr.bf16.mxu0 0
          %1843 = vmatpush1.bf16.msra.mxu0 0
          %1844 = vmatprep.subr.bf16.mxu0 0
          %1845 = vmatpush1.bf16.msra.mxu0 0
          %1846 = vmatprep.subr.bf16.mxu0 0
          %1847 = vmatpush1.bf16.msra.mxu0 0
          %1848 = vmatprep.subr.bf16.mxu0 0
          %1849 = vmatpush1.bf16.msra.mxu0 0
          %1850 = vmatprep.subr.bf16.mxu0 0
          %1851 = vmatpush1.bf16.msra.mxu0 0
          %1852 = vmatprep.subr.bf16.mxu0 0
          %1853 = vmatpush1.bf16.msra.mxu0 0
          %1854 = vmatprep.mubr.bf16.mxu0 0
          %1855 = vmatmul.mubr.bf16.gmra.mrb[0].mxu0 %v1806
          %v1856 = vpop.f32.mrb[0].mxu0
          %v1857 = vadd.f32 0.0, %v1856
          %v1858 = vpop.f32.mrb[0].mxu0
          %v1859 = vpop.f32.mrb[0].mxu0
          %v1860 = vadd.f32 0.0, %v1859
          %v1861 = vpop.f32.mrb[0].mxu0
          %1862 = vmatprep.mubr.bf16.mxu0 0
          %1863 = vmatmul.mubr.bf16.gmra.mrb[0].mxu0 %v1807
          %v1864 = vpop.f32.mrb[0].mxu0
          %v1865 = vadd.f32 0.0, %v1864
          %v1866 = vpop.f32.mrb[0].mxu0
          %v1867 = vpop.f32.mrb[0].mxu0
          %v1868 = vadd.f32 0.0, %v1867
          %v1869 = vpop.f32.mrb[0].mxu0
          %1870 = vmatprep.mubr.bf16.mxu0 0
          %1871 = vmatmul.mubr.bf16.gmra.mrb[0].mxu0 %v1808
          %v1872 = vpop.f32.mrb[0].mxu0
          %v1873 = vadd.f32 0.0, %v1872
          %v1874 = vpop.f32.mrb[0].mxu0
          %v1875 = vpop.f32.mrb[0].mxu0
          %v1876 = vadd.f32 0.0, %v1875
          %v1877 = vpop.f32.mrb[0].mxu0
          %1878 = vmatprep.mubr.bf16.mxu0 0
          %1879 = vmatmul.mubr.bf16.gmra.mrb[0].mxu0 %v1809
          %v1880 = vpop.f32.mrb[0].mxu0
          %v1881 = vadd.f32 0.0, %v1880
          %v1882 = vpop.f32.mrb[0].mxu0
          %v1883 = vpop.f32.mrb[0].mxu0
          %v1884 = vadd.f32 0.0, %v1883
          %v1885 = vpop.f32.mrb[0].mxu0
          %1886 = vmatprep.mubr.bf16.mxu0 0
          %1887 = vmatmul.mubr.bf16.gmra.mrb[0].mxu0 %v1810
          %v1888 = vpop.f32.mrb[0].mxu0
          %v1889 = vadd.f32 0.0, %v1888
          %v1890 = vpop.f32.mrb[0].mxu0
          %v1891 = vpop.f32.mrb[0].mxu0
          %v1892 = vadd.f32 0.0, %v1891
          %v1893 = vpop.f32.mrb[0].mxu0
          %1894 = vmatprep.mubr.bf16.mxu0 0
          %1895 = vmatmul.mubr.bf16.gmra.mrb[0].mxu0 %v1811
          %v1896 = vpop.f32.mrb[0].mxu0
          %v1897 = vadd.f32 0.0, %v1896
          %v1898 = vpop.f32.mrb[0].mxu0
          %v1899 = vpop.f32.mrb[0].mxu0
          %v1900 = vadd.f32 0.0, %v1899
          %v1901 = vpop.f32.mrb[0].mxu0
          %1902 = vmatprep.mubr.bf16.mxu0 0
          %1903 = vmatmul.mubr.bf16.gmra.mrb[0].mxu0 %v1812
          %v1904 = vpop.f32.mrb[0].mxu0
          %v1905 = vadd.f32 0.0, %v1904
          %v1906 = vpop.f32.mrb[0].mxu0
          %v1907 = vpop.f32.mrb[0].mxu0
          %v1908 = vadd.f32 0.0, %v1907
          %v1909 = vpop.f32.mrb[0].mxu0
          %1910 = vmatprep.mubr.bf16.mxu0 0
          %1911 = vmatmul.mubr.bf16.gmra.mrb[0].mxu0 %v1813
          %v1912 = vpop.f32.mrb[0].mxu0
          %v1913 = vadd.f32 0.0, %v1912
          %v1914 = vpop.f32.mrb[0].mxu0
          %v1915 = vpop.f32.mrb[0].mxu0
          %v1916 = vadd.f32 0.0, %v1915
          %v1917 = vpop.f32.mrb[0].mxu0
          %1918 = vdwg.mxu0
          %1920 = vset.pattern.permute.xlu0 0
          %1921 = vperm.xlu0 %1920, %v1734
          %v1922 = vpop.permute.xlu0 %1921
          %1925 = vset.pattern.permute.xlu0 0
          %1926 = vperm.xlu0 %1925, %v1735
          %v1927 = vpop.permute.xlu0 %1926
          %1930 = vset.pattern.permute.xlu0 0
          %1931 = vperm.xlu0 %1930, %v1736
          %v1932 = vpop.permute.xlu0 %1931
          %1935 = vset.pattern.permute.xlu0 0
          %1936 = vperm.xlu0 %1935, %v1737
          %v1937 = vpop.permute.xlu0 %1936
          %1940 = vset.pattern.permute.xlu0 0
          %1941 = vperm.xlu0 %1940, %v1738
          %v1942 = vpop.permute.xlu0 %1941
          %1945 = vset.pattern.permute.xlu0 0
          %1946 = vperm.xlu0 %1945, %v1739
          %v1947 = vpop.permute.xlu0 %1946
          %1950 = vset.pattern.permute.xlu0 0
          %1951 = vperm.xlu0 %1950, %v1740
          %v1952 = vpop.permute.xlu0 %1951
          %1955 = vset.pattern.permute.xlu0 0
          %1956 = vperm.xlu0 %1955, %v1741
          %v1957 = vpop.permute.xlu0 %1956
          %1960 = vset.pattern.permute.xlu0 0
          %1961 = vperm.xlu0 %1960, %v1742
          %v1962 = vpop.permute.xlu0 %1961
          %1965 = vset.pattern.permute.xlu0 0
          %1966 = vperm.xlu0 %1965, %v1743
          %v1967 = vpop.permute.xlu0 %1966
          %1970 = vset.pattern.permute.xlu0 0
          %1971 = vperm.xlu0 %1970, %v1744
          %v1972 = vpop.permute.xlu0 %1971
          %1975 = vset.pattern.permute.xlu0 0
          %1976 = vperm.xlu0 %1975, %v1745
          %v1977 = vpop.permute.xlu0 %1976
          %1980 = vset.pattern.permute.xlu0 0
          %1981 = vperm.xlu0 %1980, %v1746
          %v1982 = vpop.permute.xlu0 %1981
          %1985 = vset.pattern.permute.xlu0 0
          %1986 = vperm.xlu0 %1985, %v1747
          %v1987 = vpop.permute.xlu0 %1986
          %1990 = vset.pattern.permute.xlu0 0
          %1991 = vperm.xlu0 %1990, %v1748
          %v1992 = vpop.permute.xlu0 %1991
          %1995 = vset.pattern.permute.xlu0 0
          %1996 = vperm.xlu0 %1995, %v1749
          %v1997 = vpop.permute.xlu0 %1996
          %v1999 = vmul.f32 %v1922, %v1857
          %v2000 = vmul.f32 %v1927, %v1860
          %v2001 = vmul.f32 %v1932, %v1865
          %v2002 = vmul.f32 %v1937, %v1868
          %v2003 = vmul.f32 %v1942, %v1873
          %v2004 = vmul.f32 %v1947, %v1876
          %v2005 = vmul.f32 %v1952, %v1881
          %v2006 = vmul.f32 %v1957, %v1884
          %v2007 = vmul.f32 %v1962, %v1889
          %v2008 = vmul.f32 %v1967, %v1892
          %v2009 = vmul.f32 %v1972, %v1897
          %v2010 = vmul.f32 %v1977, %v1900
          %v2011 = vmul.f32 %v1982, %v1905
          %v2012 = vmul.f32 %v1987, %v1908
          %v2013 = vmul.f32 %v1992, %v1913
          %v2014 = vmul.f32 %v1997, %v1916
          %s2015 = sshra.s32 %s510, 4
          %s2016 = sand.u32 %s510, 15
          %s2017 = smul.addr %s2015, 8
          %s2018 = scalar_lea.vmem [#allocation3], %s2017
          %v2019 = vld [vmem:[%s2018] sm:$0xff]
          %v2020 = vld [vmem:[%s2018 + $0x8] sm:$0xff]
          %v2021 = vld [vmem:[%s2018 + $0x10] sm:$0xff]
          %v2022 = vld [vmem:[%s2018 + $0x18] sm:$0xff]
          %v2023 = vld [vmem:[%s2018 + $0x20] sm:$0xff]
          %v2024 = vld [vmem:[%s2018 + $0x28] sm:$0xff]
          %v2025 = vld [vmem:[%s2018 + $0x30] sm:$0xff]
          %v2026 = vld [vmem:[%s2018 + $0x38] sm:$0xff]
          %v2027 = vpack.c.bf16 %v2000, %v1999
          %v2028 = vpack.c.bf16 %v2002, %v2001
          %v2029 = vpack.c.bf16 %v2004, %v2003
          %v2030 = vpack.c.bf16 %v2006, %v2005
          %v2031 = vpack.c.bf16 %v2008, %v2007
          %v2032 = vpack.c.bf16 %v2010, %v2009
          %v2033 = vpack.c.bf16 %v2012, %v2011
          %v2034 = vpack.c.bf16 %v2014, %v2013
          %v2035 = vld [vmem:[%s418] sm:$0xf]
          %v2036 = vld [vmem:[%s418 + $0x4] sm:$0xf]
          %v2037 = vld [vmem:[%s418 + $0x8] sm:$0xf]
          %v2038 = vld [vmem:[%s418 + $0xc] sm:$0xf]
          %v2039 = vld [vmem:[%s418 + $0x10] sm:$0xf]
          %v2040 = vld [vmem:[%s418 + $0x14] sm:$0xf]
          %v2041 = vld [vmem:[%s418 + $0x18] sm:$0xf]
          %v2042 = vld [vmem:[%s418 + $0x1c] sm:$0xf]
          %v2043 = vld [vmem:[%s418 + $0x20] sm:$0xf]
          %v2044 = vld [vmem:[%s418 + $0x24] sm:$0xf]
          %v2045 = vld [vmem:[%s418 + $0x28] sm:$0xf]
          %v2046 = vld [vmem:[%s418 + $0x2c] sm:$0xf]
          %v2047 = vld [vmem:[%s418 + $0x30] sm:$0xf]
          %v2048 = vld [vmem:[%s418 + $0x34] sm:$0xf]
          %v2049 = vld [vmem:[%s418 + $0x38] sm:$0xf]
          %v2050 = vld [vmem:[%s418 + $0x3c] sm:$0xf]
          %v2051 = vld [vmem:[%s427] sm:$0xf]
          %v2052 = vld [vmem:[%s427 + $0x4] sm:$0xf]
          %v2053 = vld [vmem:[%s427 + $0x8] sm:$0xf]
          %v2054 = vld [vmem:[%s427 + $0xc] sm:$0xf]
          %v2055 = vld [vmem:[%s427 + $0x10] sm:$0xf]
          %v2056 = vld [vmem:[%s427 + $0x14] sm:$0xf]
          %v2057 = vld [vmem:[%s427 + $0x18] sm:$0xf]
          %v2058 = vld [vmem:[%s427 + $0x1c] sm:$0xf]
          %v2059 = vld [vmem:[%s427 + $0x20] sm:$0xf]
          %v2060 = vld [vmem:[%s427 + $0x24] sm:$0xf]
          %v2061 = vld [vmem:[%s427 + $0x28] sm:$0xf]
          %v2062 = vld [vmem:[%s427 + $0x2c] sm:$0xf]
          %v2063 = vld [vmem:[%s427 + $0x30] sm:$0xf]
          %v2064 = vld [vmem:[%s427 + $0x34] sm:$0xf]
          %v2065 = vld [vmem:[%s427 + $0x38] sm:$0xf]
          %v2066 = vld [vmem:[%s427 + $0x3c] sm:$0xf]
          %v2083 = vunpack.c.l.b16 %v2051
          %v2084 = vunpack.c.l.b16 %v2052
          %v2085 = vunpack.c.l.b16 %v2053
          %v2086 = vunpack.c.l.b16 %v2054
          %v2087 = vunpack.c.l.b16 %v2055
          %v2088 = vunpack.c.l.b16 %v2056
          %v2089 = vunpack.c.l.b16 %v2057
          %v2090 = vunpack.c.l.b16 %v2058
          %v2091 = vunpack.c.l.b16 %v2059
          %v2092 = vunpack.c.l.b16 %v2060
          %v2093 = vunpack.c.l.b16 %v2061
          %v2094 = vunpack.c.l.b16 %v2062
          %v2095 = vunpack.c.l.b16 %v2063
          %v2096 = vunpack.c.l.b16 %v2064
          %v2097 = vunpack.c.l.b16 %v2065
          %v2098 = vunpack.c.l.b16 %v2066
          %v2099 = vpack.c.b16 %v2084, %v2083
          %v2100 = vpack.c.b16 %v2086, %v2085
          %v2101 = vpack.c.b16 %v2088, %v2087
          %v2102 = vpack.c.b16 %v2090, %v2089
          %v2103 = vpack.c.b16 %v2092, %v2091
          %v2104 = vpack.c.b16 %v2094, %v2093
          %v2105 = vpack.c.b16 %v2096, %v2095
          %v2106 = vpack.c.b16 %v2098, %v2097
          %2115 = vmatprep.subr.bf16.mxu0 0
          %2116 = vmatpush1.bf16.msra.mxu0 %v2099
          %2117 = vmatprep.subr.bf16.mxu0 0
          %2118 = vmatpush1.bf16.msra.mxu0 %v2100
          %2119 = vmatprep.subr.bf16.mxu0 0
          %2120 = vmatpush1.bf16.msra.mxu0 %v2101
          %2121 = vmatprep.subr.bf16.mxu0 0
          %2122 = vmatpush1.bf16.msra.mxu0 %v2102
          %2123 = vmatprep.subr.bf16.mxu0 0
          %2124 = vmatpush1.bf16.msra.mxu0 %v2103
          %2125 = vmatprep.subr.bf16.mxu0 0
          %2126 = vmatpush1.bf16.msra.mxu0 %v2104
          %2127 = vmatprep.subr.bf16.mxu0 0
          %2128 = vmatpush1.bf16.msra.mxu0 %v2105
          %2129 = vmatprep.subr.bf16.mxu0 0
          %2130 = vmatpush1.bf16.msra.mxu0 %v2106
          %2131 = vmatprep.subr.bf16.mxu0 0
          %2132 = vmatpush1.bf16.msra.mxu0 0
          %2133 = vmatprep.subr.bf16.mxu0 0
          %2134 = vmatpush1.bf16.msra.mxu0 0
          %2135 = vmatprep.subr.bf16.mxu0 0
          %2136 = vmatpush1.bf16.msra.mxu0 0
          %2137 = vmatprep.subr.bf16.mxu0 0
          %2138 = vmatpush1.bf16.msra.mxu0 0
          %2139 = vmatprep.subr.bf16.mxu0 0
          %2140 = vmatpush1.bf16.msra.mxu0 0
          %2141 = vmatprep.subr.bf16.mxu0 0
          %2142 = vmatpush1.bf16.msra.mxu0 0
          %2143 = vmatprep.subr.bf16.mxu0 0
          %2144 = vmatpush1.bf16.msra.mxu0 0
          %2145 = vmatprep.subr.bf16.mxu0 0
          %2146 = vmatpush1.bf16.msra.mxu0 0
          %2147 = vmatprep.mubr.bf16.mxu0 0
          %2148 = vmatmul.mubr.bf16.gmra.mrb[0].mxu0 %v2019
          %v2149 = vpop.f32.mrb[0].mxu0
          %v2150 = vadd.f32 0.0, %v2149
          %v2151 = vpop.f32.mrb[0].mxu0
          %v2152 = vpop.f32.mrb[0].mxu0
          %v2153 = vadd.f32 0.0, %v2152
          %v2154 = vpop.f32.mrb[0].mxu0
          %2155 = vmatprep.mubr.bf16.mxu0 0
          %2156 = vmatmul.mubr.bf16.gmra.mrb[0].mxu0 %v2020
          %v2157 = vpop.f32.mrb[0].mxu0
          %v2158 = vadd.f32 0.0, %v2157
          %v2159 = vpop.f32.mrb[0].mxu0
          %v2160 = vpop.f32.mrb[0].mxu0
          %v2161 = vadd.f32 0.0, %v2160
          %v2162 = vpop.f32.mrb[0].mxu0
          %2163 = vmatprep.mubr.bf16.mxu0 0
          %2164 = vmatmul.mubr.bf16.gmra.mrb[0].mxu0 %v2021
          %v2165 = vpop.f32.mrb[0].mxu0
          %v2166 = vadd.f32 0.0, %v2165
          %v2167 = vpop.f32.mrb[0].mxu0
          %v2168 = vpop.f32.mrb[0].mxu0
          %v2169 = vadd.f32 0.0, %v2168
          %v2170 = vpop.f32.mrb[0].mxu0
          %2171 = vmatprep.mubr.bf16.mxu0 0
          %2172 = vmatmul.mubr.bf16.gmra.mrb[0].mxu0 %v2022
          %v2173 = vpop.f32.mrb[0].mxu0
          %v2174 = vadd.f32 0.0, %v2173
          %v2175 = vpop.f32.mrb[0].mxu0
          %v2176 = vpop.f32.mrb[0].mxu0
          %v2177 = vadd.f32 0.0, %v2176
          %v2178 = vpop.f32.mrb[0].mxu0
          %2179 = vmatprep.mubr.bf16.mxu0 0
          %2180 = vmatmul.mubr.bf16.gmra.mrb[0].mxu0 %v2023
          %v2181 = vpop.f32.mrb[0].mxu0
          %v2182 = vadd.f32 0.0, %v2181
          %v2183 = vpop.f32.mrb[0].mxu0
          %v2184 = vpop.f32.mrb[0].mxu0
          %v2185 = vadd.f32 0.0, %v2184
          %v2186 = vpop.f32.mrb[0].mxu0
          %2187 = vmatprep.mubr.bf16.mxu0 0
          %2188 = vmatmul.mubr.bf16.gmra.mrb[0].mxu0 %v2024
          %v2189 = vpop.f32.mrb[0].mxu0
          %v2190 = vadd.f32 0.0, %v2189
          %v2191 = vpop.f32.mrb[0].mxu0
          %v2192 = vpop.f32.mrb[0].mxu0
          %v2193 = vadd.f32 0.0, %v2192
          %v2194 = vpop.f32.mrb[0].mxu0
          %2195 = vmatprep.mubr.bf16.mxu0 0
          %2196 = vmatmul.mubr.bf16.gmra.mrb[0].mxu0 %v2025
          %v2197 = vpop.f32.mrb[0].mxu0
          %v2198 = vadd.f32 0.0, %v2197
          %v2199 = vpop.f32.mrb[0].mxu0
          %v2200 = vpop.f32.mrb[0].mxu0
          %v2201 = vadd.f32 0.0, %v2200
          %v2202 = vpop.f32.mrb[0].mxu0
          %2203 = vmatprep.mubr.bf16.mxu0 0
          %2204 = vmatmul.mubr.bf16.gmra.mrb[0].mxu0 %v2026
          %v2205 = vpop.f32.mrb[0].mxu0
          %v2206 = vadd.f32 0.0, %v2205
          %v2207 = vpop.f32.mrb[0].mxu0
          %v2208 = vpop.f32.mrb[0].mxu0
          %v2209 = vadd.f32 0.0, %v2208
          %v2210 = vpop.f32.mrb[0].mxu0
          %2211 = vdwg.mxu0
          %v2228 = vunpack.c.l.b16 %v2035
          %v2229 = vunpack.c.l.b16 %v2036
          %v2230 = vunpack.c.l.b16 %v2037
          %v2231 = vunpack.c.l.b16 %v2038
          %v2232 = vunpack.c.l.b16 %v2039
          %v2233 = vunpack.c.l.b16 %v2040
          %v2234 = vunpack.c.l.b16 %v2041
          %v2235 = vunpack.c.l.b16 %v2042
          %v2236 = vunpack.c.l.b16 %v2043
          %v2237 = vunpack.c.l.b16 %v2044
          %v2238 = vunpack.c.l.b16 %v2045
          %v2239 = vunpack.c.l.b16 %v2046
          %v2240 = vunpack.c.l.b16 %v2047
          %v2241 = vunpack.c.l.b16 %v2048
          %v2242 = vunpack.c.l.b16 %v2049
          %v2243 = vunpack.c.l.b16 %v2050
          %v2244 = vpack.c.b16 %v2229, %v2228
          %v2245 = vpack.c.b16 %v2231, %v2230
          %v2246 = vpack.c.b16 %v2233, %v2232
          %v2247 = vpack.c.b16 %v2235, %v2234
          %v2248 = vpack.c.b16 %v2237, %v2236
          %v2249 = vpack.c.b16 %v2239, %v2238
          %v2250 = vpack.c.b16 %v2241, %v2240
          %v2251 = vpack.c.b16 %v2243, %v2242
          %2260 = vmatprep.subr.bf16.mxu0 0
          %2261 = vmatpush1.bf16.msra.mxu0 %v2244
          %2262 = vmatprep.subr.bf16.mxu0 0
          %2263 = vmatpush1.bf16.msra.mxu0 %v2245
          %2264 = vmatprep.subr.bf16.mxu0 0
          %2265 = vmatpush1.bf16.msra.mxu0 %v2246
          %2266 = vmatprep.subr.bf16.mxu0 0
          %2267 = vmatpush1.bf16.msra.mxu0 %v2247
          %2268 = vmatprep.subr.bf16.mxu0 0
          %2269 = vmatpush1.bf16.msra.mxu0 %v2248
          %2270 = vmatprep.subr.bf16.mxu0 0
          %2271 = vmatpush1.bf16.msra.mxu0 %v2249
          %2272 = vmatprep.subr.bf16.mxu0 0
          %2273 = vmatpush1.bf16.msra.mxu0 %v2250
          %2274 = vmatprep.subr.bf16.mxu0 0
          %2275 = vmatpush1.bf16.msra.mxu0 %v2251
          %2276 = vmatprep.subr.bf16.mxu0 0
          %2277 = vmatpush1.bf16.msra.mxu0 0
          %2278 = vmatprep.subr.bf16.mxu0 0
          %2279 = vmatpush1.bf16.msra.mxu0 0
          %2280 = vmatprep.subr.bf16.mxu0 0
          %2281 = vmatpush1.bf16.msra.mxu0 0
          %2282 = vmatprep.subr.bf16.mxu0 0
          %2283 = vmatpush1.bf16.msra.mxu0 0
          %2284 = vmatprep.subr.bf16.mxu0 0
          %2285 = vmatpush1.bf16.msra.mxu0 0
          %2286 = vmatprep.subr.bf16.mxu0 0
          %2287 = vmatpush1.bf16.msra.mxu0 0
          %2288 = vmatprep.subr.bf16.mxu0 0
          %2289 = vmatpush1.bf16.msra.mxu0 0
          %2290 = vmatprep.subr.bf16.mxu0 0
          %2291 = vmatpush1.bf16.msra.mxu0 0
          %2292 = vmatprep.mubr.bf16.mxu0 0
          %2293 = vmatmul.mubr.bf16.gmra.mrb[0].mxu0 %v2027
          %v2294 = vpop.f32.mrb[0].mxu0
          %v2295 = vadd.f32 %v2150, %v2294
          %v2296 = vpop.f32.mrb[0].mxu0
          %v2297 = vpop.f32.mrb[0].mxu0
          %v2298 = vadd.f32 %v2153, %v2297
          %v2299 = vpop.f32.mrb[0].mxu0
          %2300 = vmatprep.mubr.bf16.mxu0 0
          %2301 = vmatmul.mubr.bf16.gmra.mrb[0].mxu0 %v2028
          %v2302 = vpop.f32.mrb[0].mxu0
          %v2303 = vadd.f32 %v2158, %v2302
          %v2304 = vpop.f32.mrb[0].mxu0
          %v2305 = vpop.f32.mrb[0].mxu0
          %v2306 = vadd.f32 %v2161, %v2305
          %v2307 = vpop.f32.mrb[0].mxu0
          %2308 = vmatprep.mubr.bf16.mxu0 0
          %2309 = vmatmul.mubr.bf16.gmra.mrb[0].mxu0 %v2029
          %v2310 = vpop.f32.mrb[0].mxu0
          %v2311 = vadd.f32 %v2166, %v2310
          %v2312 = vpop.f32.mrb[0].mxu0
          %v2313 = vpop.f32.mrb[0].mxu0
          %v2314 = vadd.f32 %v2169, %v2313
          %v2315 = vpop.f32.mrb[0].mxu0
          %2316 = vmatprep.mubr.bf16.mxu0 0
          %2317 = vmatmul.mubr.bf16.gmra.mrb[0].mxu0 %v2030
          %v2318 = vpop.f32.mrb[0].mxu0
          %v2319 = vadd.f32 %v2174, %v2318
          %v2320 = vpop.f32.mrb[0].mxu0
          %v2321 = vpop.f32.mrb[0].mxu0
          %v2322 = vadd.f32 %v2177, %v2321
          %v2323 = vpop.f32.mrb[0].mxu0
          %2324 = vmatprep.mubr.bf16.mxu0 0
          %2325 = vmatmul.mubr.bf16.gmra.mrb[0].mxu0 %v2031
          %v2326 = vpop.f32.mrb[0].mxu0
          %v2327 = vadd.f32 %v2182, %v2326
          %v2328 = vpop.f32.mrb[0].mxu0
          %v2329 = vpop.f32.mrb[0].mxu0
          %v2330 = vadd.f32 %v2185, %v2329
          %v2331 = vpop.f32.mrb[0].mxu0
          %2332 = vmatprep.mubr.bf16.mxu0 0
          %2333 = vmatmul.mubr.bf16.gmra.mrb[0].mxu0 %v2032
          %v2334 = vpop.f32.mrb[0].mxu0
          %v2335 = vadd.f32 %v2190, %v2334
          %v2336 = vpop.f32.mrb[0].mxu0
          %v2337 = vpop.f32.mrb[0].mxu0
          %v2338 = vadd.f32 %v2193, %v2337
          %v2339 = vpop.f32.mrb[0].mxu0
          %2340 = vmatprep.mubr.bf16.mxu0 0
          %2341 = vmatmul.mubr.bf16.gmra.mrb[0].mxu0 %v2033
          %v2342 = vpop.f32.mrb[0].mxu0
          %v2343 = vadd.f32 %v2198, %v2342
          %v2344 = vpop.f32.mrb[0].mxu0
          %v2345 = vpop.f32.mrb[0].mxu0
          %v2346 = vadd.f32 %v2201, %v2345
          %v2347 = vpop.f32.mrb[0].mxu0
          %2348 = vmatprep.mubr.bf16.mxu0 0
          %2349 = vmatmul.mubr.bf16.gmra.mrb[0].mxu0 %v2034
          %v2350 = vpop.f32.mrb[0].mxu0
          %v2351 = vadd.f32 %v2206, %v2350
          %v2352 = vpop.f32.mrb[0].mxu0
          %v2353 = vpop.f32.mrb[0].mxu0
          %v2354 = vadd.f32 %v2209, %v2353
          %v2355 = vpop.f32.mrb[0].mxu0
          %2356 = vdwg.mxu0
          %v2357 = vld [vmem:[%s507] sm:$0x1]
          %v2359 = vlaneseq
          %v2360 = vshrl.u32 %v2359, 7
          %v2361 = vsub.s32 0, %v2360
          %v2362 = vrot.slane %v2357, %v2361
          %v2364 = vadd.f32 %v2295, %v2362
          %v2365 = vadd.f32 %v2298, %v2362
          %v2366 = vadd.f32 %v2303, %v2362
          %v2367 = vadd.f32 %v2306, %v2362
          %v2368 = vadd.f32 %v2311, %v2362
          %v2369 = vadd.f32 %v2314, %v2362
          %v2370 = vadd.f32 %v2319, %v2362
          %v2371 = vadd.f32 %v2322, %v2362
          %v2372 = vadd.f32 %v2327, %v2362
          %v2373 = vadd.f32 %v2330, %v2362
          %v2374 = vadd.f32 %v2335, %v2362
          %v2375 = vadd.f32 %v2338, %v2362
          %v2376 = vadd.f32 %v2343, %v2362
          %v2377 = vadd.f32 %v2346, %v2362
          %v2378 = vadd.f32 %v2351, %v2362
          %v2379 = vadd.f32 %v2354, %v2362
          %v2380 = vmax.f32 %v2364, 0.0
          %v2381 = vmax.f32 %v2365, 0.0
          %v2382 = vmax.f32 %v2366, 0.0
          %v2383 = vmax.f32 %v2367, 0.0
          %v2384 = vmax.f32 %v2368, 0.0
          %v2385 = vmax.f32 %v2369, 0.0
          %v2386 = vmax.f32 %v2370, 0.0
          %v2387 = vmax.f32 %v2371, 0.0
          %v2388 = vmax.f32 %v2372, 0.0
          %v2389 = vmax.f32 %v2373, 0.0
          %v2390 = vmax.f32 %v2374, 0.0
          %v2391 = vmax.f32 %v2375, 0.0
          %v2392 = vmax.f32 %v2376, 0.0
          %v2393 = vmax.f32 %v2377, 0.0
          %v2394 = vmax.f32 %v2378, 0.0
          %v2395 = vmax.f32 %v2379, 0.0
          %v2396 = vpack.c.bf16 %v2381, %v2380
          %v2397 = vpack.c.bf16 %v2383, %v2382
          %v2398 = vpack.c.bf16 %v2385, %v2384
          %v2399 = vpack.c.bf16 %v2387, %v2386
          %v2400 = vpack.c.bf16 %v2389, %v2388
          %v2401 = vpack.c.bf16 %v2391, %v2390
          %v2402 = vpack.c.bf16 %v2393, %v2392
          %v2403 = vpack.c.bf16 %v2395, %v2394
          %s2404 = smul.addr %s2015, 8
          %s2405 = scalar_lea.vmem [#allocation2], %s2404
          %2406 = vst [vmem:[%s2405] sm:$0xff] %v2396
          %2407 = vst [vmem:[%s2405 + $0x8] sm:$0xff] %v2397
          %2408 = vst [vmem:[%s2405 + $0x10] sm:$0xff] %v2398
          %2409 = vst [vmem:[%s2405 + $0x18] sm:$0xff] %v2399
          %2410 = vst [vmem:[%s2405 + $0x20] sm:$0xff] %v2400
          %2411 = vst [vmem:[%s2405 + $0x28] sm:$0xff] %v2401
          %2412 = vst [vmem:[%s2405 + $0x30] sm:$0xff] %v2402
          %2413 = vst [vmem:[%s2405 + $0x38] sm:$0xff] %v2403
          %v2414 = vld [vmem:[%s440] sm:$0xf]
          %v2415 = vld [vmem:[%s440 + $0x4] sm:$0xf]
          %v2416 = vld [vmem:[%s440 + $0x8] sm:$0xf]
          %v2417 = vld [vmem:[%s440 + $0xc] sm:$0xf]
          %v2418 = vld [vmem:[%s440 + $0x10] sm:$0xf]
          %v2419 = vld [vmem:[%s440 + $0x14] sm:$0xf]
          %v2420 = vld [vmem:[%s440 + $0x18] sm:$0xf]
          %v2421 = vld [vmem:[%s440 + $0x1c] sm:$0xf]
          %v2422 = vld [vmem:[%s440 + $0x20] sm:$0xf]
          %v2423 = vld [vmem:[%s440 + $0x24] sm:$0xf]
          %v2424 = vld [vmem:[%s440 + $0x28] sm:$0xf]
          %v2425 = vld [vmem:[%s440 + $0x2c] sm:$0xf]
          %v2426 = vld [vmem:[%s440 + $0x30] sm:$0xf]
          %v2427 = vld [vmem:[%s440 + $0x34] sm:$0xf]
          %v2428 = vld [vmem:[%s440 + $0x38] sm:$0xf]
          %v2429 = vld [vmem:[%s440 + $0x3c] sm:$0xf]
          %v2446 = vunpack.c.l.b16 %v2414
          %v2447 = vunpack.c.l.b16 %v2415
          %v2448 = vunpack.c.l.b16 %v2416
          %v2449 = vunpack.c.l.b16 %v2417
          %v2450 = vunpack.c.l.b16 %v2418
          %v2451 = vunpack.c.l.b16 %v2419
          %v2452 = vunpack.c.l.b16 %v2420
          %v2453 = vunpack.c.l.b16 %v2421
          %v2454 = vunpack.c.l.b16 %v2422
          %v2455 = vunpack.c.l.b16 %v2423
          %v2456 = vunpack.c.l.b16 %v2424
          %v2457 = vunpack.c.l.b16 %v2425
          %v2458 = vunpack.c.l.b16 %v2426
          %v2459 = vunpack.c.l.b16 %v2427
          %v2460 = vunpack.c.l.b16 %v2428
          %v2461 = vunpack.c.l.b16 %v2429
          %v2462 = vpack.c.b16 %v2447, %v2446
          %v2463 = vpack.c.b16 %v2449, %v2448
          %v2464 = vpack.c.b16 %v2451, %v2450
          %v2465 = vpack.c.b16 %v2453, %v2452
          %v2466 = vpack.c.b16 %v2455, %v2454
          %v2467 = vpack.c.b16 %v2457, %v2456
          %v2468 = vpack.c.b16 %v2459, %v2458
          %v2469 = vpack.c.b16 %v2461, %v2460
          %2478 = vmatprep.subr.bf16.mxu0 0
          %2479 = vmatpush1.bf16.msra.mxu0 %v2462
          %2480 = vmatprep.subr.bf16.mxu0 0
          %2481 = vmatpush1.bf16.msra.mxu0 %v2463
          %2482 = vmatprep.subr.bf16.mxu0 0
          %2483 = vmatpush1.bf16.msra.mxu0 %v2464
          %2484 = vmatprep.subr.bf16.mxu0 0
          %2485 = vmatpush1.bf16.msra.mxu0 %v2465
          %2486 = vmatprep.subr.bf16.mxu0 0
          %2487 = vmatpush1.bf16.msra.mxu0 %v2466
          %2488 = vmatprep.subr.bf16.mxu0 0
          %2489 = vmatpush1.bf16.msra.mxu0 %v2467
          %2490 = vmatprep.subr.bf16.mxu0 0
          %2491 = vmatpush1.bf16.msra.mxu0 %v2468
          %2492 = vmatprep.subr.bf16.mxu0 0
          %2493 = vmatpush1.bf16.msra.mxu0 %v2469
          %2494 = vmatprep.subr.bf16.mxu0 0
          %2495 = vmatpush1.bf16.msra.mxu0 0
          %2496 = vmatprep.subr.bf16.mxu0 0
          %2497 = vmatpush1.bf16.msra.mxu0 0
          %2498 = vmatprep.subr.bf16.mxu0 0
          %2499 = vmatpush1.bf16.msra.mxu0 0
          %2500 = vmatprep.subr.bf16.mxu0 0
          %2501 = vmatpush1.bf16.msra.mxu0 0
          %2502 = vmatprep.subr.bf16.mxu0 0
          %2503 = vmatpush1.bf16.msra.mxu0 0
          %2504 = vmatprep.subr.bf16.mxu0 0
          %2505 = vmatpush1.bf16.msra.mxu0 0
          %2506 = vmatprep.subr.bf16.mxu0 0
          %2507 = vmatpush1.bf16.msra.mxu0 0
          %2508 = vmatprep.subr.bf16.mxu0 0
          %2509 = vmatpush1.bf16.msra.mxu0 0
          %2510 = vmatprep.mubr.bf16.mxu0 0
          %2511 = vmatmul.mubr.bf16.gmra.mrb[0].mxu0 %v2396
          %v2512 = vpop.f32.mrb[0].mxu0
          %v2513 = vadd.f32 0.0, %v2512
          %v2514 = vpop.f32.mrb[0].mxu0
          %v2515 = vpop.f32.mrb[0].mxu0
          %v2516 = vadd.f32 0.0, %v2515
          %v2517 = vpop.f32.mrb[0].mxu0
          %2518 = vmatprep.mubr.bf16.mxu0 0
          %2519 = vmatmul.mubr.bf16.gmra.mrb[0].mxu0 %v2397
          %v2520 = vpop.f32.mrb[0].mxu0
          %v2521 = vadd.f32 0.0, %v2520
          %v2522 = vpop.f32.mrb[0].mxu0
          %v2523 = vpop.f32.mrb[0].mxu0
          %v2524 = vadd.f32 0.0, %v2523
          %v2525 = vpop.f32.mrb[0].mxu0
          %2526 = vmatprep.mubr.bf16.mxu0 0
          %2527 = vmatmul.mubr.bf16.gmra.mrb[0].mxu0 %v2398
          %v2528 = vpop.f32.mrb[0].mxu0
          %v2529 = vadd.f32 0.0, %v2528
          %v2530 = vpop.f32.mrb[0].mxu0
          %v2531 = vpop.f32.mrb[0].mxu0
          %v2532 = vadd.f32 0.0, %v2531
          %v2533 = vpop.f32.mrb[0].mxu0
          %2534 = vmatprep.mubr.bf16.mxu0 0
          %2535 = vmatmul.mubr.bf16.gmra.mrb[0].mxu0 %v2399
          %v2536 = vpop.f32.mrb[0].mxu0
          %v2537 = vadd.f32 0.0, %v2536
          %v2538 = vpop.f32.mrb[0].mxu0
          %v2539 = vpop.f32.mrb[0].mxu0
          %v2540 = vadd.f32 0.0, %v2539
          %v2541 = vpop.f32.mrb[0].mxu0
          %2542 = vmatprep.mubr.bf16.mxu0 0
          %2543 = vmatmul.mubr.bf16.gmra.mrb[0].mxu0 %v2400
          %v2544 = vpop.f32.mrb[0].mxu0
          %v2545 = vadd.f32 0.0, %v2544
          %v2546 = vpop.f32.mrb[0].mxu0
          %v2547 = vpop.f32.mrb[0].mxu0
          %v2548 = vadd.f32 0.0, %v2547
          %v2549 = vpop.f32.mrb[0].mxu0
          %2550 = vmatprep.mubr.bf16.mxu0 0
          %2551 = vmatmul.mubr.bf16.gmra.mrb[0].mxu0 %v2401
          %v2552 = vpop.f32.mrb[0].mxu0
          %v2553 = vadd.f32 0.0, %v2552
          %v2554 = vpop.f32.mrb[0].mxu0
          %v2555 = vpop.f32.mrb[0].mxu0
          %v2556 = vadd.f32 0.0, %v2555
          %v2557 = vpop.f32.mrb[0].mxu0
          %2558 = vmatprep.mubr.bf16.mxu0 0
          %2559 = vmatmul.mubr.bf16.gmra.mrb[0].mxu0 %v2402
          %v2560 = vpop.f32.mrb[0].mxu0
          %v2561 = vadd.f32 0.0, %v2560
          %v2562 = vpop.f32.mrb[0].mxu0
          %v2563 = vpop.f32.mrb[0].mxu0
          %v2564 = vadd.f32 0.0, %v2563
          %v2565 = vpop.f32.mrb[0].mxu0
          %2566 = vmatprep.mubr.bf16.mxu0 0
          %2567 = vmatmul.mubr.bf16.gmra.mrb[0].mxu0 %v2403
          %v2568 = vpop.f32.mrb[0].mxu0
          %v2569 = vadd.f32 0.0, %v2568
          %v2570 = vpop.f32.mrb[0].mxu0
          %v2571 = vpop.f32.mrb[0].mxu0
          %v2572 = vadd.f32 0.0, %v2571
          %v2573 = vpop.f32.mrb[0].mxu0
          %2574 = vdwg.mxu0
          // Predicated region
          $region93: #{tpu_custom_call.1} parent=91 // pred_check
            %p2575 = pneg %p511
          $region94: #{tpu_custom_call.1} parent=91 // pred_check_branch
            %2577 = sbr.rel (%p2575) target = $region96
          $region95: #{tpu_custom_call.1} parent=91 // pred_region
            %v2578 = vld [vmem:[#allocation10] sm:$0xf]
            %v2579 = vld [vmem:[#allocation10 + $0x4] sm:$0xf]
            %v2580 = vld [vmem:[#allocation10 + $0x8] sm:$0xf]
            %v2581 = vld [vmem:[#allocation10 + $0xc] sm:$0xf]
            %v2582 = vld [vmem:[#allocation10 + $0x10] sm:$0xf]
            %v2583 = vld [vmem:[#allocation10 + $0x14] sm:$0xf]
            %v2584 = vld [vmem:[#allocation10 + $0x18] sm:$0xf]
            %v2585 = vld [vmem:[#allocation10 + $0x1c] sm:$0xf]
            %v2586 = vld [vmem:[#allocation10 + $0x20] sm:$0xf]
            %v2587 = vld [vmem:[#allocation10 + $0x24] sm:$0xf]
            %v2588 = vld [vmem:[#allocation10 + $0x28] sm:$0xf]
            %v2589 = vld [vmem:[#allocation10 + $0x2c] sm:$0xf]
            %v2590 = vld [vmem:[#allocation10 + $0x30] sm:$0xf]
            %v2591 = vld [vmem:[#allocation10 + $0x34] sm:$0xf]
            %v2592 = vld [vmem:[#allocation10 + $0x38] sm:$0xf]
            %v2593 = vld [vmem:[#allocation10 + $0x3c] sm:$0xf]
            %v2594 = vld [vmem:[%s8] sm:$0x1]
            %v2596 = vlaneseq
            %v2597 = vshrl.u32 %v2596, 7
            %v2598 = vsub.s32 0, %v2597
            %v2599 = vrot.slane %v2594, %v2598
            %v2617 = vunpack.c.l.b16 %v2578
            %v2618 = vunpack.c.l.b16 %v2579
            %v2619 = vunpack.c.l.b16 %v2580
            %v2620 = vunpack.c.l.b16 %v2581
            %v2621 = vunpack.c.l.b16 %v2582
            %v2622 = vunpack.c.l.b16 %v2583
            %v2623 = vunpack.c.l.b16 %v2584
            %v2624 = vunpack.c.l.b16 %v2585
            %v2625 = vunpack.c.l.b16 %v2586
            %v2626 = vunpack.c.l.b16 %v2587
            %v2627 = vunpack.c.l.b16 %v2588
            %v2628 = vunpack.c.l.b16 %v2589
            %v2629 = vunpack.c.l.b16 %v2590
            %v2630 = vunpack.c.l.b16 %v2591
            %v2631 = vunpack.c.l.b16 %v2592
            %v2632 = vunpack.c.l.b16 %v2593
            %v2633 = vpack.c.b16 %v2618, %v2617
            %v2634 = vpack.c.b16 %v2620, %v2619
            %v2635 = vpack.c.b16 %v2622, %v2621
            %v2636 = vpack.c.b16 %v2624, %v2623
            %v2637 = vpack.c.b16 %v2626, %v2625
            %v2638 = vpack.c.b16 %v2628, %v2627
            %v2639 = vpack.c.b16 %v2630, %v2629
            %v2640 = vpack.c.b16 %v2632, %v2631
            %2649 = vmatprep.subr.bf16.mxu0 0
            %2650 = vmatpush1.bf16.msra.mxu0 %v2633
            %2651 = vmatprep.subr.bf16.mxu0 0
            %2652 = vmatpush1.bf16.msra.mxu0 %v2634
            %2653 = vmatprep.subr.bf16.mxu0 0
            %2654 = vmatpush1.bf16.msra.mxu0 %v2635
            %2655 = vmatprep.subr.bf16.mxu0 0
            %2656 = vmatpush1.bf16.msra.mxu0 %v2636
            %2657 = vmatprep.subr.bf16.mxu0 0
            %2658 = vmatpush1.bf16.msra.mxu0 %v2637
            %2659 = vmatprep.subr.bf16.mxu0 0
            %2660 = vmatpush1.bf16.msra.mxu0 %v2638
            %2661 = vmatprep.subr.bf16.mxu0 0
            %2662 = vmatpush1.bf16.msra.mxu0 %v2639
            %2663 = vmatprep.subr.bf16.mxu0 0
            %2664 = vmatpush1.bf16.msra.mxu0 %v2640
            %2665 = vmatprep.subr.bf16.mxu0 0
            %2666 = vmatpush1.bf16.msra.mxu0 0
            %2667 = vmatprep.subr.bf16.mxu0 0
            %2668 = vmatpush1.bf16.msra.mxu0 0
            %2669 = vmatprep.subr.bf16.mxu0 0
            %2670 = vmatpush1.bf16.msra.mxu0 0
            %2671 = vmatprep.subr.bf16.mxu0 0
            %2672 = vmatpush1.bf16.msra.mxu0 0
            %2673 = vmatprep.subr.bf16.mxu0 0
            %2674 = vmatpush1.bf16.msra.mxu0 0
            %2675 = vmatprep.subr.bf16.mxu0 0
            %2676 = vmatpush1.bf16.msra.mxu0 0
            %2677 = vmatprep.subr.bf16.mxu0 0
            %2678 = vmatpush1.bf16.msra.mxu0 0
            %2679 = vmatprep.subr.bf16.mxu0 0
            %2680 = vmatpush1.bf16.msra.mxu0 0
            %2681 = vmatprep.mubr.bf16.mxu0 0
            %2682 = vmatmul.mubr.bf16.gmra.mrb[0].mxu0 %v2019
            %v2683 = vpop.f32.mrb[0].mxu0
            %v2684 = vadd.f32 %v2599, %v2683
            %v2685 = vpop.f32.mrb[0].mxu0
            %v2686 = vpop.f32.mrb[0].mxu0
            %v2687 = vadd.f32 %v2599, %v2686
            %v2688 = vpop.f32.mrb[0].mxu0
            %2689 = vmatprep.mubr.bf16.mxu0 0
            %2690 = vmatmul.mubr.bf16.gmra.mrb[0].mxu0 %v2020
            %v2691 = vpop.f32.mrb[0].mxu0
            %v2692 = vadd.f32 %v2599, %v2691
            %v2693 = vpop.f32.mrb[0].mxu0
            %v2694 = vpop.f32.mrb[0].mxu0
            %v2695 = vadd.f32 %v2599, %v2694
            %v2696 = vpop.f32.mrb[0].mxu0
            %2697 = vmatprep.mubr.bf16.mxu0 0
            %2698 = vmatmul.mubr.bf16.gmra.mrb[0].mxu0 %v2021
            %v2699 = vpop.f32.mrb[0].mxu0
            %v2700 = vadd.f32 %v2599, %v2699
            %v2701 = vpop.f32.mrb[0].mxu0
            %v2702 = vpop.f32.mrb[0].mxu0
            %v2703 = vadd.f32 %v2599, %v2702
            %v2704 = vpop.f32.mrb[0].mxu0
            %2705 = vmatprep.mubr.bf16.mxu0 0
            %2706 = vmatmul.mubr.bf16.gmra.mrb[0].mxu0 %v2022
            %v2707 = vpop.f32.mrb[0].mxu0
            %v2708 = vadd.f32 %v2599, %v2707
            %v2709 = vpop.f32.mrb[0].mxu0
            %v2710 = vpop.f32.mrb[0].mxu0
            %v2711 = vadd.f32 %v2599, %v2710
            %v2712 = vpop.f32.mrb[0].mxu0
            %2713 = vmatprep.mubr.bf16.mxu0 0
            %2714 = vmatmul.mubr.bf16.gmra.mrb[0].mxu0 %v2023
            %v2715 = vpop.f32.mrb[0].mxu0
            %v2716 = vadd.f32 %v2599, %v2715
            %v2717 = vpop.f32.mrb[0].mxu0
            %v2718 = vpop.f32.mrb[0].mxu0
            %v2719 = vadd.f32 %v2599, %v2718
            %v2720 = vpop.f32.mrb[0].mxu0
            %2721 = vmatprep.mubr.bf16.mxu0 0
            %2722 = vmatmul.mubr.bf16.gmra.mrb[0].mxu0 %v2024
            %v2723 = vpop.f32.mrb[0].mxu0
            %v2724 = vadd.f32 %v2599, %v2723
            %v2725 = vpop.f32.mrb[0].mxu0
            %v2726 = vpop.f32.mrb[0].mxu0
            %v2727 = vadd.f32 %v2599, %v2726
            %v2728 = vpop.f32.mrb[0].mxu0
            %2729 = vmatprep.mubr.bf16.mxu0 0
            %2730 = vmatmul.mubr.bf16.gmra.mrb[0].mxu0 %v2025
            %v2731 = vpop.f32.mrb[0].mxu0
            %v2732 = vadd.f32 %v2599, %v2731
            %v2733 = vpop.f32.mrb[0].mxu0
            %v2734 = vpop.f32.mrb[0].mxu0
            %v2735 = vadd.f32 %v2599, %v2734
            %v2736 = vpop.f32.mrb[0].mxu0
            %2737 = vmatprep.mubr.bf16.mxu0 0
            %2738 = vmatmul.mubr.bf16.gmra.mrb[0].mxu0 %v2026
            %v2739 = vpop.f32.mrb[0].mxu0
            %v2740 = vadd.f32 %v2599, %v2739
            %v2741 = vpop.f32.mrb[0].mxu0
            %v2742 = vpop.f32.mrb[0].mxu0
            %v2743 = vadd.f32 %v2599, %v2742
            %v2744 = vpop.f32.mrb[0].mxu0
            %2745 = vdwg.mxu0
            %v2746 = vadd.f32 %v2684, %v2513
            %v2747 = vadd.f32 %v2687, %v2516
            %v2748 = vadd.f32 %v2692, %v2521
            %v2749 = vadd.f32 %v2695, %v2524
            %v2750 = vadd.f32 %v2700, %v2529
            %v2751 = vadd.f32 %v2703, %v2532
            %v2752 = vadd.f32 %v2708, %v2537
            %v2753 = vadd.f32 %v2711, %v2540
            %v2754 = vadd.f32 %v2716, %v2545
            %v2755 = vadd.f32 %v2719, %v2548
            %v2756 = vadd.f32 %v2724, %v2553
            %v2757 = vadd.f32 %v2727, %v2556
            %v2758 = vadd.f32 %v2732, %v2561
            %v2759 = vadd.f32 %v2735, %v2564
            %v2760 = vadd.f32 %v2740, %v2569
            %v2761 = vadd.f32 %v2743, %v2572
            %s2762 = scalar_lea.vmem [#allocation4], %s510
            %2763 = vst [vmem:[%s2762] sm:$0xff] %v2746
            %2764 = vst [vmem:[%s2762 + $0x8] sm:$0xff] %v2747
            %2765 = vst [vmem:[%s2762 + $0x10] sm:$0xff] %v2748
            %2766 = vst [vmem:[%s2762 + $0x18] sm:$0xff] %v2749
            %2767 = vst [vmem:[%s2762 + $0x20] sm:$0xff] %v2750
            %2768 = vst [vmem:[%s2762 + $0x28] sm:$0xff] %v2751
            %2769 = vst [vmem:[%s2762 + $0x30] sm:$0xff] %v2752
            %2770 = vst [vmem:[%s2762 + $0x38] sm:$0xff] %v2753
            %2771 = vst [vmem:[%s2762 + $0x40] sm:$0xff] %v2754
            %2772 = vst [vmem:[%s2762 + $0x48] sm:$0xff] %v2755
            %2773 = vst [vmem:[%s2762 + $0x50] sm:$0xff] %v2756
            %2774 = vst [vmem:[%s2762 + $0x58] sm:$0xff] %v2757
            %2775 = vst [vmem:[%s2762 + $0x60] sm:$0xff] %v2758
            %2776 = vst [vmem:[%s2762 + $0x68] sm:$0xff] %v2759
            %2777 = vst [vmem:[%s2762 + $0x70] sm:$0xff] %v2760
            %2778 = vst [vmem:[%s2762 + $0x78] sm:$0xff] %v2761
          $region96: #{tpu_custom_call.1} parent=91 // pred_fallthru
            _
          %p2779 = scmp.ne.s32.totalorder %s34, 0
          // Predicated region
          $region97: #{tpu_custom_call.1} parent=91 // pred_check
            %p2780 = pneg %p2779
          $region98: #{tpu_custom_call.1} parent=91 // pred_check_branch
            %2782 = sbr.rel (%p2780) target = $region100
          $region99: #{tpu_custom_call.1} parent=91 // pred_region
            %s2783 = scalar_lea.vmem [#allocation4], %s510
            %v2784 = vld [vmem:[%s2783] sm:$0xff]
            %v2785 = vld [vmem:[%s2783 + $0x8] sm:$0xff]
            %v2786 = vld [vmem:[%s2783 + $0x10] sm:$0xff]
            %v2787 = vld [vmem:[%s2783 + $0x18] sm:$0xff]
            %v2788 = vld [vmem:[%s2783 + $0x20] sm:$0xff]
            %v2789 = vld [vmem:[%s2783 + $0x28] sm:$0xff]
            %v2790 = vld [vmem:[%s2783 + $0x30] sm:$0xff]
            %v2791 = vld [vmem:[%s2783 + $0x38] sm:$0xff]
            %v2792 = vld [vmem:[%s2783 + $0x40] sm:$0xff]
            %v2793 = vld [vmem:[%s2783 + $0x48] sm:$0xff]
            %v2794 = vld [vmem:[%s2783 + $0x50] sm:$0xff]
            %v2795 = vld [vmem:[%s2783 + $0x58] sm:$0xff]
            %v2796 = vld [vmem:[%s2783 + $0x60] sm:$0xff]
            %v2797 = vld [vmem:[%s2783 + $0x68] sm:$0xff]
            %v2798 = vld [vmem:[%s2783 + $0x70] sm:$0xff]
            %v2799 = vld [vmem:[%s2783 + $0x78] sm:$0xff]
            %v2800 = vadd.f32 %v2784, %v2513
            %v2801 = vadd.f32 %v2785, %v2516
            %v2802 = vadd.f32 %v2786, %v2521
            %v2803 = vadd.f32 %v2787, %v2524
            %v2804 = vadd.f32 %v2788, %v2529
            %v2805 = vadd.f32 %v2789, %v2532
            %v2806 = vadd.f32 %v2790, %v2537
            %v2807 = vadd.f32 %v2791, %v2540
            %v2808 = vadd.f32 %v2792, %v2545
            %v2809 = vadd.f32 %v2793, %v2548
            %v2810 = vadd.f32 %v2794, %v2553
            %v2811 = vadd.f32 %v2795, %v2556
            %v2812 = vadd.f32 %v2796, %v2561
            %v2813 = vadd.f32 %v2797, %v2564
            %v2814 = vadd.f32 %v2798, %v2569
            %v2815 = vadd.f32 %v2799, %v2572
            %2816 = vst [vmem:[%s2783] sm:$0xff] %v2800
            %2817 = vst [vmem:[%s2783 + $0x8] sm:$0xff] %v2801
            %2818 = vst [vmem:[%s2783 + $0x10] sm:$0xff] %v2802
            %2819 = vst [vmem:[%s2783 + $0x18] sm:$0xff] %v2803
            %2820 = vst [vmem:[%s2783 + $0x20] sm:$0xff] %v2804
            %2821 = vst [vmem:[%s2783 + $0x28] sm:$0xff] %v2805
            %2822 = vst [vmem:[%s2783 + $0x30] sm:$0xff] %v2806
            %2823 = vst [vmem:[%s2783 + $0x38] sm:$0xff] %v2807
            %2824 = vst [vmem:[%s2783 + $0x40] sm:$0xff] %v2808
            %2825 = vst [vmem:[%s2783 + $0x48] sm:$0xff] %v2809
            %2826 = vst [vmem:[%s2783 + $0x50] sm:$0xff] %v2810
            %2827 = vst [vmem:[%s2783 + $0x58] sm:$0xff] %v2811
            %2828 = vst [vmem:[%s2783 + $0x60] sm:$0xff] %v2812
            %2829 = vst [vmem:[%s2783 + $0x68] sm:$0xff] %v2813
            %2830 = vst [vmem:[%s2783 + $0x70] sm:$0xff] %v2814
            %2831 = vst [vmem:[%s2783 + $0x78] sm:$0xff] %v2815
          $region100: #{tpu_custom_call.1} parent=91 // pred_fallthru
            _
          %s2832 = scalar_lea.vmem [#allocation4], %s510
          %v2833 = vld [vmem:[%s2832] sm:$0xff]
          %v2834 = vld [vmem:[%s2832 + $0x8] sm:$0xff]
          %v2835 = vld [vmem:[%s2832 + $0x10] sm:$0xff]
          %v2836 = vld [vmem:[%s2832 + $0x18] sm:$0xff]
          %v2837 = vld [vmem:[%s2832 + $0x20] sm:$0xff]
          %v2838 = vld [vmem:[%s2832 + $0x28] sm:$0xff]
          %v2839 = vld [vmem:[%s2832 + $0x30] sm:$0xff]
          %v2840 = vld [vmem:[%s2832 + $0x38] sm:$0xff]
          %v2841 = vld [vmem:[%s2832 + $0x40] sm:$0xff]
          %v2842 = vld [vmem:[%s2832 + $0x48] sm:$0xff]
          %v2843 = vld [vmem:[%s2832 + $0x50] sm:$0xff]
          %v2844 = vld [vmem:[%s2832 + $0x58] sm:$0xff]
          %v2845 = vld [vmem:[%s2832 + $0x60] sm:$0xff]
          %v2846 = vld [vmem:[%s2832 + $0x68] sm:$0xff]
          %v2847 = vld [vmem:[%s2832 + $0x70] sm:$0xff]
          %v2848 = vld [vmem:[%s2832 + $0x78] sm:$0xff]
          %2849 = vst [vmem:[#allocation13] sm:$0xff] %v2833
          %2850 = vst [vmem:[#allocation13 + $0x8] sm:$0xff] %v2834
          %2851 = vst [vmem:[#allocation13 + $0x10] sm:$0xff] %v2835
          %2852 = vst [vmem:[#allocation13 + $0x18] sm:$0xff] %v2836
          %2853 = vst [vmem:[#allocation13 + $0x20] sm:$0xff] %v2837
          %2854 = vst [vmem:[#allocation13 + $0x28] sm:$0xff] %v2838
          %2855 = vst [vmem:[#allocation13 + $0x30] sm:$0xff] %v2839
          %2856 = vst [vmem:[#allocation13 + $0x38] sm:$0xff] %v2840
          %2857 = vst [vmem:[#allocation13 + $0x40] sm:$0xff] %v2841
          %2858 = vst [vmem:[#allocation13 + $0x48] sm:$0xff] %v2842
          %2859 = vst [vmem:[#allocation13 + $0x50] sm:$0xff] %v2843
          %2860 = vst [vmem:[#allocation13 + $0x58] sm:$0xff] %v2844
          %2861 = vst [vmem:[#allocation13 + $0x60] sm:$0xff] %v2845
          %2862 = vst [vmem:[#allocation13 + $0x68] sm:$0xff] %v2846
          %2863 = vst [vmem:[#allocation13 + $0x70] sm:$0xff] %v2847
          %2864 = vst [vmem:[#allocation13 + $0x78] sm:$0xff] %v2848
        $region92: #{tpu_custom_call.1} parent=55 // pred_fallthru
          _
        // Predicated region
        $region101: #{tpu_custom_call.1} parent=55 // pred_check
          %p2865 = pneg %p279
        $region102: #{tpu_custom_call.1} parent=55 // pred_check_branch
          %2867 = sbr.rel (%p2865) target = $region104
        $region103: #{tpu_custom_call.1} parent=55 // pred_region
          %s2868 = smul.u32 16, %s35
          %s2870 = ssub.s32 2048, 2048
          %2871 = vsyncadd [#allocation7], %s2870
          %s2872 = smul.addr %s2868, 128
          %s2873 = scalar_lea.hbm %s9, %s2872
          %s2874 = sshll.u32 [#allocation13], 4
          %s2875 = int_to_ptr.vmem [resolvable:$true] %s2874
          %2880 = dma.vmem_to_hbm [thread:$0]  %s2875, 2048, %s2873, [#allocation7], 128, 128, 8
        $region104: #{tpu_custom_call.1} parent=55 // pred_fallthru
          _
        // Predicated region
        $region105: #{tpu_custom_call.1} parent=55 // pred_check
          %p2881 = pneg %p279
        $region106: #{tpu_custom_call.1} parent=55 // pred_check_branch
          %2883 = sbr.rel (%p2881) target = $region108
        $region107: #{tpu_custom_call.1} parent=55 // pred_region
          %2884 = dma.done [#allocation7], 2048
        $region108: #{tpu_custom_call.1} parent=55 // pred_fallthru
          _
      $region56: #{tpu_custom_call.1} parent=5 // pred_fallthru
        _
      %p2885 = scmp.le.s32.totalorder 2, %s25
      // Predicated region
      $region109: #{tpu_custom_call.1} parent=5 // pred_check
        %p2886 = pneg %p2885
      $region110: #{tpu_custom_call.1} parent=5 // pred_check_branch
        %2888 = sbr.rel (%p2886) target = $region112
      $region111: #{tpu_custom_call.1} parent=5 // pred_region
        %s2889 = ssub.s32 %s25, 2
      $region112: #{tpu_custom_call.1} parent=5 // pred_fallthru
        _
    $region6: #{tpu_custom_call.1} parent=1 // loop_footer
      %s29 = sadd.s32 1, %s25
    $region7: #{tpu_custom_call.1} parent=1 // loop_footer_branch
      %24 = sbr.rel target = $region3
    $region8: #{tpu_custom_call.1} parent=1 // loop_exit
      _
    %2890 = vsyncpa [#allocation6], 1
    %s2891 = scalar_lea.sflag [#allocation6], 1
    %2892 = vsyncpa %s2891, 1
    %2893 = vsyncpa [#allocation9], 1
    %s2894 = scalar_lea.sflag [#allocation9], 1
    %2895 = vsyncpa %s2894, 1
    %2896 = vsyncpa [#allocation12], 1
    %s2897 = scalar_lea.sflag [#allocation12], 1
    %2898 = vsyncpa %s2897, 1
    %2899 = vsyncpa [#allocation7], 1
    %s2900 = scalar_lea.sflag [#allocation7], 1
    %2901 = vsyncpa %s2900, 1

</llo_original>
